<compile_context>
chip_gen: v7x
topology: tpu7x:2x2x1
jax: 0.10.0
libtpu: 0.0.40
codegen_flags: <defaults>
</compile_context>

<pallas_src>
import functools

import jax
import jax.numpy as jnp
from jax import lax
from jax.experimental import pallas as pl
from jax.experimental.pallas import tpu as pltpu


_INV_SQRT2 = 0.7071067811865476

# Depthwise branch description: (param prefix, kh, kw).
_DW_SPECS = (("dw5", 5, 5), ("dw1_7", 1, 7), ("dw7_1", 7, 1),
             ("dw1_11", 1, 11), ("dw11_1", 11, 1),
             ("dw1_21", 1, 21), ("dw21_1", 21, 1))

# Row offsets of each conv's (taps..., bias) inside the packed depthwise weight slab.
_DW_OFFSETS = {}
_row = 0
for _name, _kh, _kw in _DW_SPECS:
    _DW_OFFSETS[_name] = (_row, _row + _kh * _kw)   # (first tap row, bias row)
    _row += _kh * _kw + 1
_DW_NROWS = _row                                    # 110 rows total
_PAD = 10                                           # max half-kernel (21 // 2)


def _gelu_exact(x):
    # nn.GELU() default: exact erf-based GELU.
    return 0.5 * x * (1.0 + lax.erf(x * _INV_SQRT2))


# ----------------------------------------------------------------------------
# Fused CPCA kernel: one grid step per batch element, lane-dense (H, W*C) slab.
# ----------------------------------------------------------------------------
def _cpca_fused_kernel(x_ref, cw_ref, cb_ref, f1w_ref, f1b_ref, f2w_ref, f2b_ref,
                       dw_ref, o_ref, p5_ref, pw_ref, ph_ref, *, H, W, C):
    WC = W * C
    f32 = jnp.float32

    # ---------------- stage 1: 1x1 conv (block-diag, lane-dense) + exact GELU ------
    cw = cw_ref[...]                                   # (WC, WC) block-diagonal
    cb = cb_ref[...]                                   # (1, WC)
    y = jnp.dot(x_ref[...], cw, preferred_element_type=f32) + cb
    y = _gelu_exact(y)                                 # (H, WC)

    # ---------------- stage 2: channel attention ------------------------------------
    # Column pools over rows, then a circular-roll tree over the W pixel groups so every
    # C-lane block of the (1, WC) vector holds the full per-channel pool.  The coset
    # reduction is roll-direction agnostic, so the tree is robust to rotate sign.
    avg = jnp.sum(y, axis=0, keepdims=True) * (1.0 / (H * W))   # adaptive_avg_pool2d
    mx = jnp.max(y, axis=0, keepdims=True)                      # adaptive_max_pool2d
    shift = WC // 2
    while shift >= C:
        avg = avg + pltpu.roll(avg, shift, axis=1)
        mx = jnp.maximum(mx, pltpu.roll(mx, shift, axis=1))
        shift //= 2

    # Batch the avg/max squeeze-excite branches into one (2, WC) matmul pair.
    row_id = lax.broadcasted_iota(jnp.int32, (2, WC), 0)
    pooled = jnp.where(row_id == 0,
                       jnp.broadcast_to(avg, (2, WC)),
                       jnp.broadcast_to(mx, (2, WC)))
    hdn = jnp.dot(pooled, f1w_ref[...], preferred_element_type=f32) + f1b_ref[...]
    hdn = jnp.maximum(hdn, 0.0)                                  # ReLU
    se_out = jax.nn.sigmoid(
        jnp.dot(hdn, f2w_ref[...], preferred_element_type=f32) + f2b_ref[...])
    scale = se_out[0:1, :] + se_out[1:2, :]            # per-channel, replicated over W
    y = y * scale                                      # channel attention applied

    # ---------------- stage 3: multi-scale depthwise chain --------------------------
    def wrow(r):                                       # one packed tap/bias row
        return dw_ref[pl.ds(r, 1), :]                  # (1, WC)

    # Zero only the pad *borders*; interiors are fully rewritten every grid step, and
    # zeroing per step stays correct even if the parallel batch axis is core-split.
    p5_ref[pl.ds(0, 2), :] = jnp.zeros((2, (W + 4) * C), f32)
    p5_ref[pl.ds(H + 2, 2), :] = jnp.zeros((2, (W + 4) * C), f32)
    p5_ref[pl.ds(2, H), pl.ds(0, 2 * C)] = jnp.zeros((H, 2 * C), f32)
    p5_ref[pl.ds(2, H), pl.ds((W + 2) * C, 2 * C)] = jnp.zeros((H, 2 * C), f32)
    pw_ref[pl.ds(0, H), pl.ds(0, _PAD * C)] = jnp.zeros((H, _PAD * C), f32)
    pw_ref[pl.ds(0, H), pl.ds((_PAD + W) * C, _PAD * C)] = jnp.zeros((H, _PAD * C), f32)
    ph_ref[pl.ds(0, _PAD), :] = jnp.zeros((_PAD, WC), f32)
    ph_ref[pl.ds(_PAD + H, _PAD), :] = jnp.zeros((_PAD, WC), f32)

    # x_init = dw5x5(y): pad 2 in H and W (zero borders above), 25 taps, bias folded in
    # as one broadcast add at the end (no zeros+add accumulator init).
    p5_ref[pl.ds(2, H), pl.ds(2 * C, WC)] = y
    w0, b0 = _DW_OFFSETS["dw5"]
    x_init = p5_ref[pl.ds(0, H), pl.ds(0, WC)] * wrow(w0)
    for tap in range(1, 25):
        i, j = divmod(tap, 5)
        x_init = x_init + p5_ref[pl.ds(i, H), pl.ds(j * C, WC)] * wrow(w0 + tap)
    x_init = x_init + wrow(b0)

    # Stash x_init once with _PAD zero columns each side; serves all three 1xk convs.
    pw_ref[pl.ds(0, H), pl.ds(_PAD * C, WC)] = x_init
    # TODO(synk): the lane-shifted reloads below are at offsets that are multiples of C
    # (not 128); for production shapes consider pltpu.roll on a register-resident slab
    # with boundary masks folded into the packed weight rows to move shifts to the XLU.

    acc = x_init                                       # x1 + x2 + x3 + x_init
    for hname, vname, k in (("dw1_7", "dw7_1", 7),
                            ("dw1_11", "dw11_1", 11),
                            ("dw1_21", "dw21_1", 21)):
        p = k // 2
        hw0, hb = _DW_OFFSETS[hname]
        vw0, vb = _DW_OFFSETS[vname]
        # horizontal 1xk over x_init: lane shifts in steps of C over the W-padded slab
        t = pw_ref[pl.ds(0, H), pl.ds((_PAD - p) * C, WC)] * wrow(hw0)
        for j in range(1, k):
            t = t + pw_ref[pl.ds(0, H), pl.ds((_PAD - p + j) * C, WC)] * wrow(hw0 + j)
        t = t + wrow(hb)
        # vertical kx1 over t: single aligned interior store, sublane-shifted reads
        ph_ref[pl.ds(_PAD, H), :] = t
        br = ph_ref[pl.ds(_PAD - p, H), :] * wrow(vw0)
        for i in range(1, k):
            br = br + ph_ref[pl.ds(_PAD - p + i, H), :] * wrow(vw0 + i)
        acc = acc + br + wrow(vb)

    # ---------------- stage 4: spatial attention + output projection ----------------
    # The reference module reuses the same self.conv for all three 1x1 convolutions.
    att = jnp.dot(acc, cw, preferred_element_type=f32) + cb
    out = jnp.dot(att * y, cw, preferred_element_type=f32) + cb
    o_ref[...] = out.astype(o_ref.dtype)


# ----------------------------------------------------------------------------
# Host-side parameter packing (hoisted out of the jitted forward).
# ----------------------------------------------------------------------------
def _pack_dw_params(p, W):
    """Pack every depthwise tap/bias as a (1, W*C) row: row[w*C + c] = weight[c]."""
    rows = []
    for name, kh, kw in _DW_SPECS:
        w = p[name + "_w"].reshape(kh * kw, -1)        # (taps, C)
        b = p[name + "_b"].reshape(1, -1)              # (1, C)
        rows.append(jnp.tile(w, (1, W)))
        rows.append(jnp.tile(b, (1, W)))
    return jnp.concatenate(rows, axis=0).astype(jnp.float32)   # (_DW_NROWS, W*C)


def prepare_params(p, W):
    """Block-diagonal packing of the 1x1-conv / SE weights (W pixels per lane group) plus
    per-tap depthwise rows.  Done once, outside the jit, so no re-packing per call."""
    C = p["conv_w"].shape[0]
    Cr = p["fc1_w"].shape[1]
    eye = jnp.eye(W, dtype=jnp.float32)
    return {
        "cw": jnp.kron(eye, p["conv_w"]),                       # (W*C, W*C)
        "cb": jnp.tile(p["conv_b"].reshape(1, C), (1, W)),      # (1, W*C)
        "f1w": jnp.kron(eye, p["fc1_w"]),                       # (W*C, W*Cr)
        "f1b": jnp.tile(p["fc1_b"].reshape(1, Cr), (1, W)),     # (1, W*Cr)
        "f2w": jnp.kron(eye, p["fc2_w"]),                       # (W*Cr, W*C)
        "f2b": jnp.tile(p["fc2_b"].reshape(1, C), (1, W)),      # (1, W*C)
        "dww": _pack_dw_params(p, W),                           # (110, W*C)
    }


# ----------------------------------------------------------------------------
# CPCA forward (single fused pallas_call)
# ----------------------------------------------------------------------------
@jax.jit
def cpca_forward(x_nhwc, pk):
    N, H, W, C = x_nhwc.shape
    WC = W * C
    WCr = pk["f1w"].shape[1]
    assert W & (W - 1) == 0 and W > 0, "W must be a power of two (pooling roll-tree)"
    # TODO(synk): for production shapes, cap the block-diag group width at 128 (v5e) /
    # 256 (v6e, v7x) lanes and reshape the slab to (H*W*C/group, group); tile H inside
    # the kernel with a fori_loop so scratch + live ranges stay under v7x's 64 MiB VMEM.
    # TODO(synk): when N == 1, add an H-tile "parallel" grid axis so v7x's second
    # TensorCore is not idle.
    x3 = x_nhwc.reshape(N, H, WC)                      # contiguous reshape (lane-dense)
    out = pl.pallas_call(
        functools.partial(_cpca_fused_kernel, H=H, W=W, C=C),
        out_shape=jax.ShapeDtypeStruct((N, H, WC), jnp.float32),
        grid_spec=pltpu.PrefetchScalarGridSpec(
            num_scalar_prefetch=0,
            grid=(N,),
            in_specs=[
                pl.BlockSpec((None, H, WC), lambda n: (n, 0, 0)),   # x
                pl.BlockSpec((WC, WC), lambda n: (0, 0)),           # conv (block-diag)
                pl.BlockSpec((1, WC), lambda n: (0, 0)),            # conv bias
                pl.BlockSpec((WC, WCr), lambda n: (0, 0)),          # fc1 (block-diag)
                pl.BlockSpec((1, WCr), lambda n: (0, 0)),           # fc1 bias
                pl.BlockSpec((WCr, WC), lambda n: (0, 0)),          # fc2 (block-diag)
                pl.BlockSpec((1, WC), lambda n: (0, 0)),            # fc2 bias
                pl.BlockSpec((_DW_NROWS, WC), lambda n: (0, 0)),    # depthwise taps
            ],
            out_specs=pl.BlockSpec((None, H, WC), lambda n: (n, 0, 0)),
            scratch_shapes=[
                pltpu.VMEM((H + 4, (W + 4) * C), jnp.float32),      # 5x5-padded y
                pltpu.VMEM((H, (W + 2 * _PAD) * C), jnp.float32),   # W-padded x_init
                pltpu.VMEM((H + 2 * _PAD, WC), jnp.float32),        # H-padded branch buf
            ],
        ),
        compiler_params=pltpu.CompilerParams(
            dimension_semantics=("parallel",),
            # Explicit scoped-VMEM budget (re-derive against 64 MiB/TC on v7x).
            vmem_limit_bytes=32 * 1024 * 1024,
        ),
    )(x3, pk["cw"], pk["cb"], pk["f1w"], pk["f1b"], pk["f2w"], pk["f2b"], pk["dww"])
    return out.reshape(N, H, W, C)


# ----------------------------------------------------------------------------
# Parameter init and a pure-JAX (non-Pallas) reference for structural verification.
# ----------------------------------------------------------------------------
def init_params(key, channels, reduce=4):
    cr = channels // reduce
    keys = iter(jax.random.split(key, 32))

    def w(shape):
        return 0.1 * jax.random.normal(next(keys), shape, jnp.float32)

    p = {
        "conv_w": w((channels, channels)),   # (Cin, Cout): applied as x @ W
        "conv_b": w((channels,)),
        "fc1_w": w((channels, cr)),
        "fc1_b": w((cr,)),
        "fc2_w": w((cr, channels)),
        "fc2_b": w((channels,)),
    }
    # NOTE: real PyTorch weights are (Cout, Cin, 1, 1) and (C, 1, kh, kw); transpose at
    # the boundary when loading them into this layout.
    for name, kh, kw in _DW_SPECS:
        p[name + "_w"] = w((kh, kw, channels))   # depthwise weight, channel-last
        p[name + "_b"] = w((channels,))
    return p


def cpca_reference(x_nhwc, p):
    """Pure-JAX reference of the CPCA forward (f32, HIGHEST matmul/conv precision)."""
    hp = lax.Precision.HIGHEST
    N, H, W, C = x_nhwc.shape

    def conv1x1(v):
        return jnp.einsum("nhwc,cd->nhwd", v, p["conv_w"], precision=hp) + p["conv_b"]

    y = _gelu_exact(conv1x1(x_nhwc))
    avg = jnp.mean(y, axis=(1, 2))
    mx = jnp.max(y, axis=(1, 2))

    def se(v):
        hdn = jnp.maximum(jnp.dot(v, p["fc1_w"], precision=hp) + p["fc1_b"], 0.0)
        return jax.nn.sigmoid(jnp.dot(hdn, p["fc2_w"], precision=hp) + p["fc2_b"])

    y = y * (se(avg) + se(mx))[:, None, None, :]

    def dw(v, name):
        w = p[name + "_w"]
        kh, kw, _ = w.shape
        o = lax.conv_general_dilated(
            v, w.reshape(kh, kw, 1, C), (1, 1),
            ((kh // 2, kh // 2), (kw // 2, kw // 2)),
            dimension_numbers=("NHWC", "HWIO", "NHWC"),
            feature_group_count=C, precision=hp)
        return o + p[name + "_b"]

    x_init = dw(y, "dw5")
    x1 = dw(dw(x_init, "dw1_7"), "dw7_1")
    x2 = dw(dw(x_init, "dw1_11"), "dw11_1")
    x3 = dw(dw(x_init, "dw1_21"), "dw21_1")
    s = x1 + x2 + x3 + x_init
    return conv1x1(conv1x1(s) * y)


if __name__ == "__main__":
    key = jax.random.PRNGKey(0)
    k_x, k_p = jax.random.split(key)

    # Module-consistent small shapes: NCHW input, C divisible by the SE reduction (4),
    # W*C = 128 so each (H, W*C) slab is exactly one lane group.
    N, C, H, W = 2, 8, 16, 16
    x_nchw = jax.random.normal(k_x, (N, C, H, W), jnp.float32)
    x_nhwc = jnp.transpose(x_nchw, (0, 2, 3, 1))        # kernel layout: NHWC

    raw = init_params(k_p, C, reduce=4)
    packed = prepare_params(raw, W)                     # host-side packing, outside jit

    out_nhwc = jax.block_until_ready(cpca_forward(x_nhwc, packed))
    out_nchw = jnp.transpose(out_nhwc, (0, 3, 1, 2))

    assert out_nchw.shape == (N, C, H, W)
    assert bool(jnp.all(jnp.isfinite(out_nchw)))

    # Structural-correctness check against the pure-JAX reference.  Loose tolerance
    # covers MXU-precision differences; a layout/packing/shift bug would be O(1) off.
    ref = cpca_reference(x_nhwc, raw)
    rel_err = jnp.linalg.norm(out_nhwc - ref) / jnp.linalg.norm(ref)
    assert float(rel_err) < 2e-2, f"relative error vs reference too high: {float(rel_err)}"

    print("KERNEL_OK")
</pallas_src>

<mosaic_0001>
module attributes {stable_mosaic.version = 11 : i64} {
  func.func @_cpca_fused_kernel(%arg0: i32, %arg1: memref<1x16x128xf32, #tpu.memory_space<vmem>>, %arg2: memref<128x128xf32, #tpu.memory_space<vmem>>, %arg3: memref<1x128xf32, #tpu.memory_space<vmem>>, %arg4: memref<128x32xf32, #tpu.memory_space<vmem>>, %arg5: memref<1x32xf32, #tpu.memory_space<vmem>>, %arg6: memref<32x128xf32, #tpu.memory_space<vmem>>, %arg7: memref<1x128xf32, #tpu.memory_space<vmem>>, %arg8: memref<110x128xf32, #tpu.memory_space<vmem>>, %arg9: memref<1x16x128xf32, #tpu.memory_space<vmem>>, %arg10: memref<20x160xf32, #tpu.memory_space<vmem>>, %arg11: memref<16x288xf32, #tpu.memory_space<vmem>>, %arg12: memref<36x128xf32, #tpu.memory_space<vmem>>) attributes {dimension_semantics = [#tpu.dimension_semantics<parallel>], iteration_bounds = array<i64: 2>, scalar_prefetch = 0 : i64, scratch_operands = 3 : i64, tpu.core_type = #tpu.core_type<tc>, window_params = [{transform_indices = @transform_0, window_bounds = array<i64: 1, 16, 128>}, {pipeline_mode = #tpu.pipeline_mode<synchronous>, transform_indices = @transform_1, window_bounds = array<i64: 128, 128>}, {pipeline_mode = #tpu.pipeline_mode<synchronous>, transform_indices = @transform_2, window_bounds = array<i64: 1, 128>}, {pipeline_mode = #tpu.pipeline_mode<synchronous>, transform_indices = @transform_3, window_bounds = array<i64: 128, 32>}, {pipeline_mode = #tpu.pipeline_mode<synchronous>, transform_indices = @transform_4, window_bounds = array<i64: 1, 32>}, {pipeline_mode = #tpu.pipeline_mode<synchronous>, transform_indices = @transform_5, window_bounds = array<i64: 32, 128>}, {pipeline_mode = #tpu.pipeline_mode<synchronous>, transform_indices = @transform_6, window_bounds = array<i64: 1, 128>}, {pipeline_mode = #tpu.pipeline_mode<synchronous>, transform_indices = @transform_7, window_bounds = array<i64: 110, 128>}, {transform_indices = @transform_8, window_bounds = array<i64: 1, 16, 128>}]} {
    %c0 = arith.constant 0 : index
    %c0_0 = arith.constant 0 : index
    %0 = vector.load %arg2[%c0, %c0_0] : memref<128x128xf32, #tpu.memory_space<vmem>>, vector<128x128xf32>
    %c0_1 = arith.constant 0 : index
    %c0_2 = arith.constant 0 : index
    %1 = vector.load %arg3[%c0_1, %c0_2] : memref<1x128xf32, #tpu.memory_space<vmem>>, vector<1x128xf32>
    %c0_3 = arith.constant 0 : index
    %c0_4 = arith.constant 0 : index
    %c0_5 = arith.constant 0 : index
    %2 = vector.load %arg1[%c0_3, %c0_4, %c0_5] : memref<1x16x128xf32, #tpu.memory_space<vmem>>, vector<1x16x128xf32>
    %3 = vector.shape_cast %2 : vector<1x16x128xf32> to vector<16x128xf32>
    %cst = arith.constant dense<0.000000e+00> : vector<16x128xf32>
    %4 = tpu.matmul %3, %0, %cst {dimension_numbers = #tpu.dot_dimension_numbers<[1], [0], [0], [1], [0, 0, 1, 1], [], []>} : vector<16x128xf32>, vector<128x128xf32>, vector<16x128xf32> -> vector<16x128xf32>
    %5 = vector.broadcast %1 : vector<1x128xf32> to vector<16x128xf32>
    %6 = arith.addf %4, %5 : vector<16x128xf32>
    %cst_6 = arith.constant 5.000000e-01 : f32
    %7 = vector.broadcast %cst_6 : f32 to vector<16x128xf32>
    %8 = arith.mulf %7, %6 : vector<16x128xf32>
    %cst_7 = arith.constant 0.707106769 : f32
    %9 = vector.broadcast %cst_7 : f32 to vector<16x128xf32>
    %10 = arith.mulf %6, %9 : vector<16x128xf32>
    %11 = math.erf %10 : vector<16x128xf32>
    %cst_8 = arith.constant 1.000000e+00 : f32
    %12 = vector.broadcast %cst_8 : f32 to vector<16x128xf32>
    %13 = arith.addf %12, %11 : vector<16x128xf32>
    %14 = arith.mulf %8, %13 : vector<16x128xf32>
    %cst_9 = arith.constant dense<0.000000e+00> : vector<128xf32>
    %15 = vector.multi_reduction <add>, %14, %cst_9 [0] : vector<16x128xf32> to vector<128xf32>
    %16 = vector.shape_cast %15 : vector<128xf32> to vector<1x128xf32>
    %cst_10 = arith.constant 3.906250e-03 : f32
    %17 = vector.broadcast %cst_10 : f32 to vector<1x128xf32>
    %18 = arith.mulf %16, %17 : vector<1x128xf32>
    %cst_11 = arith.constant dense<0xFF800000> : vector<128xf32>
    %19 = vector.multi_reduction <maximumf>, %14, %cst_11 [0] : vector<16x128xf32> to vector<128xf32>
    %20 = vector.shape_cast %19 : vector<128xf32> to vector<1x128xf32>
    %c64_i32 = arith.constant 64 : i32
    %21 = tpu.dynamic_rotate %18 by %c64_i32 dim 1 : vector<1x128xf32>, i32 -> vector<1x128xf32>
    %22 = arith.addf %18, %21 : vector<1x128xf32>
    %c64_i32_12 = arith.constant 64 : i32
    %23 = tpu.dynamic_rotate %20 by %c64_i32_12 dim 1 : vector<1x128xf32>, i32 -> vector<1x128xf32>
    %24 = arith.maximumf %20, %23 : vector<1x128xf32>
    %c32_i32 = arith.constant 32 : i32
    %25 = tpu.dynamic_rotate %22 by %c32_i32 dim 1 : vector<1x128xf32>, i32 -> vector<1x128xf32>
    %26 = arith.addf %22, %25 : vector<1x128xf32>
    %c32_i32_13 = arith.constant 32 : i32
    %27 = tpu.dynamic_rotate %24 by %c32_i32_13 dim 1 : vector<1x128xf32>, i32 -> vector<1x128xf32>
    %28 = arith.maximumf %24, %27 : vector<1x128xf32>
    %c16_i32 = arith.constant 16 : i32
    %29 = tpu.dynamic_rotate %26 by %c16_i32 dim 1 : vector<1x128xf32>, i32 -> vector<1x128xf32>
    %30 = arith.addf %26, %29 : vector<1x128xf32>
    %c16_i32_14 = arith.constant 16 : i32
    %31 = tpu.dynamic_rotate %28 by %c16_i32_14 dim 1 : vector<1x128xf32>, i32 -> vector<1x128xf32>
    %32 = arith.maximumf %28, %31 : vector<1x128xf32>
    %c8_i32 = arith.constant 8 : i32
    %33 = tpu.dynamic_rotate %30 by %c8_i32 dim 1 : vector<1x128xf32>, i32 -> vector<1x128xf32>
    %34 = arith.addf %30, %33 : vector<1x128xf32>
    %c8_i32_15 = arith.constant 8 : i32
    %35 = tpu.dynamic_rotate %32 by %c8_i32_15 dim 1 : vector<1x128xf32>, i32 -> vector<1x128xf32>
    %36 = arith.maximumf %32, %35 : vector<1x128xf32>
    %37 = tpu.iota {dimensions = array<i32: 0>} : vector<2x128xi32>
    %c0_i32 = arith.constant 0 : i32
    %38 = vector.broadcast %c0_i32 : i32 to vector<2x128xi32>
    %39 = arith.cmpi eq, %37, %38 : vector<2x128xi32>
    %40 = vector.shape_cast %34 : vector<1x128xf32> to vector<1x128xf32>
    %41 = vector.broadcast %40 : vector<1x128xf32> to vector<2x128xf32>
    %42 = vector.shape_cast %36 : vector<1x128xf32> to vector<1x128xf32>
    %43 = vector.broadcast %42 : vector<1x128xf32> to vector<2x128xf32>
    %44 = arith.select %39, %41, %43 : vector<2x128xi1>, vector<2x128xf32>
    %c0_16 = arith.constant 0 : index
    %c0_17 = arith.constant 0 : index
    %45 = vector.load %arg4[%c0_16, %c0_17] : memref<128x32xf32, #tpu.memory_space<vmem>>, vector<128x32xf32>
    %cst_18 = arith.constant dense<0.000000e+00> : vector<2x32xf32>
    %46 = tpu.matmul %44, %45, %cst_18 {dimension_numbers = #tpu.dot_dimension_numbers<[1], [0], [0], [1], [0, 0, 1, 1], [], []>} : vector<2x128xf32>, vector<128x32xf32>, vector<2x32xf32> -> vector<2x32xf32>
    %c0_19 = arith.constant 0 : index
    %c0_20 = arith.constant 0 : index
    %47 = vector.load %arg5[%c0_19, %c0_20] : memref<1x32xf32, #tpu.memory_space<vmem>>, vector<1x32xf32>
    %48 = vector.broadcast %47 : vector<1x32xf32> to vector<2x32xf32>
    %49 = arith.addf %46, %48 : vector<2x32xf32>
    %cst_21 = arith.constant 0.000000e+00 : f32
    %50 = vector.broadcast %cst_21 : f32 to vector<2x32xf32>
    %51 = arith.maximumf %49, %50 : vector<2x32xf32>
    %c0_22 = arith.constant 0 : index
    %c0_23 = arith.constant 0 : index
    %52 = vector.load %arg6[%c0_22, %c0_23] : memref<32x128xf32, #tpu.memory_space<vmem>>, vector<32x128xf32>
    %cst_24 = arith.constant dense<0.000000e+00> : vector<2x128xf32>
    %53 = tpu.matmul %51, %52, %cst_24 {dimension_numbers = #tpu.dot_dimension_numbers<[1], [0], [0], [1], [0, 0, 1, 1], [], []>} : vector<2x32xf32>, vector<32x128xf32>, vector<2x128xf32> -> vector<2x128xf32>
    %c0_25 = arith.constant 0 : index
    %c0_26 = arith.constant 0 : index
    %54 = vector.load %arg7[%c0_25, %c0_26] : memref<1x128xf32, #tpu.memory_space<vmem>>, vector<1x128xf32>
    %55 = vector.broadcast %54 : vector<1x128xf32> to vector<2x128xf32>
    %56 = arith.addf %53, %55 : vector<2x128xf32>
    %57 = arith.negf %56 : vector<2x128xf32>
    %58 = math.exp %57 : vector<2x128xf32>
    %cst_27 = arith.constant 1.000000e+00 : f32
    %59 = vector.broadcast %cst_27 : f32 to vector<2x128xf32>
    %60 = arith.addf %59, %58 : vector<2x128xf32>
    %61 = arith.divf %59, %60 : vector<2x128xf32>
    %62 = vector.extract_strided_slice %61 {offsets = [0, 0], sizes = [1, 128], strides = [1, 1]} : vector<2x128xf32> to vector<1x128xf32>
    %63 = vector.extract_strided_slice %61 {offsets = [1, 0], sizes = [1, 128], strides = [1, 1]} : vector<2x128xf32> to vector<1x128xf32>
    %64 = arith.addf %62, %63 : vector<1x128xf32>
    %65 = vector.broadcast %64 : vector<1x128xf32> to vector<16x128xf32>
    %66 = arith.mulf %14, %65 : vector<16x128xf32>
    %cst_28 = arith.constant 0.000000e+00 : f32
    %67 = vector.broadcast %cst_28 : f32 to vector<2x160xf32>
    %c0_29 = arith.constant 0 : index
    %c0_30 = arith.constant 0 : index
    %68 = vector.load %arg10[%c0_29, %c0_30] : memref<20x160xf32, #tpu.memory_space<vmem>>, vector<2x160xf32>
    tpu.vector_store %arg10[%c0_29, %c0_30], %67 {strides = array<i32>} : memref<20x160xf32, #tpu.memory_space<vmem>>, vector<2x160xf32>,
    %cst_31 = arith.constant 0.000000e+00 : f32
    %69 = vector.broadcast %cst_31 : f32 to vector<2x160xf32>
    %c18 = arith.constant 18 : index
    %c0_32 = arith.constant 0 : index
    %70 = vector.load %arg10[%c18, %c0_32] : memref<20x160xf32, #tpu.memory_space<vmem>>, vector<2x160xf32>
    tpu.vector_store %arg10[%c18, %c0_32], %69 {strides = array<i32>} : memref<20x160xf32, #tpu.memory_space<vmem>>, vector<2x160xf32>,
    %cst_33 = arith.constant 0.000000e+00 : f32
    %71 = vector.broadcast %cst_33 : f32 to vector<16x16xf32>
    %c2 = arith.constant 2 : index
    %c0_34 = arith.constant 0 : index
    %72 = vector.load %arg10[%c2, %c0_34] : memref<20x160xf32, #tpu.memory_space<vmem>>, vector<16x16xf32>
    tpu.vector_store %arg10[%c2, %c0_34], %71 {strides = array<i32>} : memref<20x160xf32, #tpu.memory_space<vmem>>, vector<16x16xf32>,
    %cst_35 = arith.constant 0.000000e+00 : f32
    %73 = vector.broadcast %cst_35 : f32 to vector<16x16xf32>
    %c2_36 = arith.constant 2 : index
    %c144 = arith.constant 144 : index
    %74 = vector.load %arg10[%c2_36, %c144] : memref<20x160xf32, #tpu.memory_space<vmem>>, vector<16x16xf32>
    tpu.vector_store %arg10[%c2_36, %c144], %73 {strides = array<i32>} : memref<20x160xf32, #tpu.memory_space<vmem>>, vector<16x16xf32>,
    %cst_37 = arith.constant 0.000000e+00 : f32
    %75 = vector.broadcast %cst_37 : f32 to vector<16x80xf32>
    %c0_38 = arith.constant 0 : index
    %c0_39 = arith.constant 0 : index
    %76 = vector.load %arg11[%c0_38, %c0_39] : memref<16x288xf32, #tpu.memory_space<vmem>>, vector<16x80xf32>
    tpu.vector_store %arg11[%c0_38, %c0_39], %75 {strides = array<i32>} : memref<16x288xf32, #tpu.memory_space<vmem>>, vector<16x80xf32>,
    %cst_40 = arith.constant 0.000000e+00 : f32
    %77 = vector.broadcast %cst_40 : f32 to vector<16x80xf32>
    %c0_41 = arith.constant 0 : index
    %c208 = arith.constant 208 : index
    %78 = vector.load %arg11[%c0_41, %c208] : memref<16x288xf32, #tpu.memory_space<vmem>>, vector<16x80xf32>
    tpu.vector_store %arg11[%c0_41, %c208], %77 {strides = array<i32>} : memref<16x288xf32, #tpu.memory_space<vmem>>, vector<16x80xf32>,
    %cst_42 = arith.constant 0.000000e+00 : f32
    %79 = vector.broadcast %cst_42 : f32 to vector<10x128xf32>
    %c0_43 = arith.constant 0 : index
    %c0_44 = arith.constant 0 : index
    %80 = vector.load %arg12[%c0_43, %c0_44] : memref<36x128xf32, #tpu.memory_space<vmem>>, vector<10x128xf32>
    tpu.vector_store %arg12[%c0_43, %c0_44], %79 {strides = array<i32>} : memref<36x128xf32, #tpu.memory_space<vmem>>, vector<10x128xf32>,
    %cst_45 = arith.constant 0.000000e+00 : f32
    %81 = vector.broadcast %cst_45 : f32 to vector<10x128xf32>
    %c26 = arith.constant 26 : index
    %c0_46 = arith.constant 0 : index
    %82 = vector.load %arg12[%c26, %c0_46] : memref<36x128xf32, #tpu.memory_space<vmem>>, vector<10x128xf32>
    tpu.vector_store %arg12[%c26, %c0_46], %81 {strides = array<i32>} : memref<36x128xf32, #tpu.memory_space<vmem>>, vector<10x128xf32>,
    %c2_47 = arith.constant 2 : index
    %c16 = arith.constant 16 : index
    %83 = vector.load %arg10[%c2_47, %c16] : memref<20x160xf32, #tpu.memory_space<vmem>>, vector<16x128xf32>
    tpu.vector_store %arg10[%c2_47, %c16], %66 {strides = array<i32>} : memref<20x160xf32, #tpu.memory_space<vmem>>, vector<16x128xf32>,
    %c0_48 = arith.constant 0 : index
    %c0_49 = arith.constant 0 : index
    %84 = vector.load %arg10[%c0_48, %c0_49] : memref<20x160xf32, #tpu.memory_space<vmem>>, vector<16x128xf32>
    %c0_50 = arith.constant 0 : index
    %c0_51 = arith.constant 0 : index
    %85 = vector.load %arg8[%c0_50, %c0_51] : memref<110x128xf32, #tpu.memory_space<vmem>>, vector<1x128xf32>
    %86 = vector.broadcast %85 : vector<1x128xf32> to vector<16x128xf32>
    %87 = arith.mulf %84, %86 : vector<16x128xf32>
    %c0_52 = arith.constant 0 : index
    %c8 = arith.constant 8 : index
    %88 = vector.load %arg10[%c0_52, %c8] : memref<20x160xf32, #tpu.memory_space<vmem>>, vector<16x128xf32>
    %c1 = arith.constant 1 : index
    %c0_53 = arith.constant 0 : index
    %89 = vector.load %arg8[%c1, %c0_53] : memref<110x128xf32, #tpu.memory_space<vmem>>, vector<1x128xf32>
    %90 = vector.broadcast %89 : vector<1x128xf32> to vector<16x128xf32>
    %91 = arith.mulf %88, %90 : vector<16x128xf32>
    %92 = arith.addf %87, %91 : vector<16x128xf32>
    %c0_54 = arith.constant 0 : index
    %c16_55 = arith.constant 16 : index
    %93 = vector.load %arg10[%c0_54, %c16_55] : memref<20x160xf32, #tpu.memory_space<vmem>>, vector<16x128xf32>
    %c2_56 = arith.constant 2 : index
    %c0_57 = arith.constant 0 : index
    %94 = vector.load %arg8[%c2_56, %c0_57] : memref<110x128xf32, #tpu.memory_space<vmem>>, vector<1x128xf32>
    %95 = vector.broadcast %94 : vector<1x128xf32> to vector<16x128xf32>
    %96 = arith.mulf %93, %95 : vector<16x128xf32>
    %97 = arith.addf %92, %96 : vector<16x128xf32>
    %c0_58 = arith.constant 0 : index
    %c24 = arith.constant 24 : index
    %98 = vector.load %arg10[%c0_58, %c24] : memref<20x160xf32, #tpu.memory_space<vmem>>, vector<16x128xf32>
    %c3 = arith.constant 3 : index
    %c0_59 = arith.constant 0 : index
    %99 = vector.load %arg8[%c3, %c0_59] : memref<110x128xf32, #tpu.memory_space<vmem>>, vector<1x128xf32>
    %100 = vector.broadcast %99 : vector<1x128xf32> to vector<16x128xf32>
    %101 = arith.mulf %98, %100 : vector<16x128xf32>
    %102 = arith.addf %97, %101 : vector<16x128xf32>
    %c0_60 = arith.constant 0 : index
    %c32 = arith.constant 32 : index
    %103 = vector.load %arg10[%c0_60, %c32] : memref<20x160xf32, #tpu.memory_space<vmem>>, vector<16x128xf32>
    %c4 = arith.constant 4 : index
    %c0_61 = arith.constant 0 : index
    %104 = vector.load %arg8[%c4, %c0_61] : memref<110x128xf32, #tpu.memory_space<vmem>>, vector<1x128xf32>
    %105 = vector.broadcast %104 : vector<1x128xf32> to vector<16x128xf32>
    %106 = arith.mulf %103, %105 : vector<16x128xf32>
    %107 = arith.addf %102, %106 : vector<16x128xf32>
    %c1_62 = arith.constant 1 : index
    %c0_63 = arith.constant 0 : index
    %108 = vector.load %arg10[%c1_62, %c0_63] : memref<20x160xf32, #tpu.memory_space<vmem>>, vector<16x128xf32>
    %c5 = arith.constant 5 : index
    %c0_64 = arith.constant 0 : index
    %109 = vector.load %arg8[%c5, %c0_64] : memref<110x128xf32, #tpu.memory_space<vmem>>, vector<1x128xf32>
    %110 = vector.broadcast %109 : vector<1x128xf32> to vector<16x128xf32>
    %111 = arith.mulf %108, %110 : vector<16x128xf32>
    %112 = arith.addf %107, %111 : vector<16x128xf32>
    %c1_65 = arith.constant 1 : index
    %c8_66 = arith.constant 8 : index
    %113 = vector.load %arg10[%c1_65, %c8_66] : memref<20x160xf32, #tpu.memory_space<vmem>>, vector<16x128xf32>
    %c6 = arith.constant 6 : index
    %c0_67 = arith.constant 0 : index
    %114 = vector.load %arg8[%c6, %c0_67] : memref<110x128xf32, #tpu.memory_space<vmem>>, vector<1x128xf32>
    %115 = vector.broadcast %114 : vector<1x128xf32> to vector<16x128xf32>
    %116 = arith.mulf %113, %115 : vector<16x128xf32>
    %117 = arith.addf %112, %116 : vector<16x128xf32>
    %c1_68 = arith.constant 1 : index
    %c16_69 = arith.constant 16 : index
    %118 = vector.load %arg10[%c1_68, %c16_69] : memref<20x160xf32, #tpu.memory_space<vmem>>, vector<16x128xf32>
    %c7 = arith.constant 7 : index
    %c0_70 = arith.constant 0 : index
    %119 = vector.load %arg8[%c7, %c0_70] : memref<110x128xf32, #tpu.memory_space<vmem>>, vector<1x128xf32>
    %120 = vector.broadcast %119 : vector<1x128xf32> to vector<16x128xf32>
    %121 = arith.mulf %118, %120 : vector<16x128xf32>
    %122 = arith.addf %117, %121 : vector<16x128xf32>
    %c1_71 = arith.constant 1 : index
    %c24_72 = arith.constant 24 : index
    %123 = vector.load %arg10[%c1_71, %c24_72] : memref<20x160xf32, #tpu.memory_space<vmem>>, vector<16x128xf32>
    %c8_73 = arith.constant 8 : index
    %c0_74 = arith.constant 0 : index
    %124 = vector.load %arg8[%c8_73, %c0_74] : memref<110x128xf32, #tpu.memory_space<vmem>>, vector<1x128xf32>
    %125 = vector.broadcast %124 : vector<1x128xf32> to vector<16x128xf32>
    %126 = arith.mulf %123, %125 : vector<16x128xf32>
    %127 = arith.addf %122, %126 : vector<16x128xf32>
    %c1_75 = arith.constant 1 : index
    %c32_76 = arith.constant 32 : index
    %128 = vector.load %arg10[%c1_75, %c32_76] : memref<20x160xf32, #tpu.memory_space<vmem>>, vector<16x128xf32>
    %c9 = arith.constant 9 : index
    %c0_77 = arith.constant 0 : index
    %129 = vector.load %arg8[%c9, %c0_77] : memref<110x128xf32, #tpu.memory_space<vmem>>, vector<1x128xf32>
    %130 = vector.broadcast %129 : vector<1x128xf32> to vector<16x128xf32>
    %131 = arith.mulf %128, %130 : vector<16x128xf32>
    %132 = arith.addf %127, %131 : vector<16x128xf32>
    %c2_78 = arith.constant 2 : index
    %c0_79 = arith.constant 0 : index
    %133 = vector.load %arg10[%c2_78, %c0_79] : memref<20x160xf32, #tpu.memory_space<vmem>>, vector<16x128xf32>
    %c10 = arith.constant 10 : index
    %c0_80 = arith.constant 0 : index
    %134 = vector.load %arg8[%c10, %c0_80] : memref<110x128xf32, #tpu.memory_space<vmem>>, vector<1x128xf32>
    %135 = vector.broadcast %134 : vector<1x128xf32> to vector<16x128xf32>
    %136 = arith.mulf %133, %135 : vector<16x128xf32>
    %137 = arith.addf %132, %136 : vector<16x128xf32>
    %c2_81 = arith.constant 2 : index
    %c8_82 = arith.constant 8 : index
    %138 = vector.load %arg10[%c2_81, %c8_82] : memref<20x160xf32, #tpu.memory_space<vmem>>, vector<16x128xf32>
    %c11 = arith.constant 11 : index
    %c0_83 = arith.constant 0 : index
    %139 = vector.load %arg8[%c11, %c0_83] : memref<110x128xf32, #tpu.memory_space<vmem>>, vector<1x128xf32>
    %140 = vector.broadcast %139 : vector<1x128xf32> to vector<16x128xf32>
    %141 = arith.mulf %138, %140 : vector<16x128xf32>
    %142 = arith.addf %137, %141 : vector<16x128xf32>
    %c2_84 = arith.constant 2 : index
    %c16_85 = arith.constant 16 : index
    %143 = vector.load %arg10[%c2_84, %c16_85] : memref<20x160xf32, #tpu.memory_space<vmem>>, vector<16x128xf32>
    %c12 = arith.constant 12 : index
    %c0_86 = arith.constant 0 : index
    %144 = vector.load %arg8[%c12, %c0_86] : memref<110x128xf32, #tpu.memory_space<vmem>>, vector<1x128xf32>
    %145 = vector.broadcast %144 : vector<1x128xf32> to vector<16x128xf32>
    %146 = arith.mulf %143, %145 : vector<16x128xf32>
    %147 = arith.addf %142, %146 : vector<16x128xf32>
    %c2_87 = arith.constant 2 : index
    %c24_88 = arith.constant 24 : index
    %148 = vector.load %arg10[%c2_87, %c24_88] : memref<20x160xf32, #tpu.memory_space<vmem>>, vector<16x128xf32>
    %c13 = arith.constant 13 : index
    %c0_89 = arith.constant 0 : index
    %149 = vector.load %arg8[%c13, %c0_89] : memref<110x128xf32, #tpu.memory_space<vmem>>, vector<1x128xf32>
    %150 = vector.broadcast %149 : vector<1x128xf32> to vector<16x128xf32>
    %151 = arith.mulf %148, %150 : vector<16x128xf32>
    %152 = arith.addf %147, %151 : vector<16x128xf32>
    %c2_90 = arith.constant 2 : index
    %c32_91 = arith.constant 32 : index
    %153 = vector.load %arg10[%c2_90, %c32_91] : memref<20x160xf32, #tpu.memory_space<vmem>>, vector<16x128xf32>
    %c14 = arith.constant 14 : index
    %c0_92 = arith.constant 0 : index
    %154 = vector.load %arg8[%c14, %c0_92] : memref<110x128xf32, #tpu.memory_space<vmem>>, vector<1x128xf32>
    %155 = vector.broadcast %154 : vector<1x128xf32> to vector<16x128xf32>
    %156 = arith.mulf %153, %155 : vector<16x128xf32>
    %157 = arith.addf %152, %156 : vector<16x128xf32>
    %c3_93 = arith.constant 3 : index
    %c0_94 = arith.constant 0 : index
    %158 = vector.load %arg10[%c3_93, %c0_94] : memref<20x160xf32, #tpu.memory_space<vmem>>, vector<16x128xf32>
    %c15 = arith.constant 15 : index
    %c0_95 = arith.constant 0 : index
    %159 = vector.load %arg8[%c15, %c0_95] : memref<110x128xf32, #tpu.memory_space<vmem>>, vector<1x128xf32>
    %160 = vector.broadcast %159 : vector<1x128xf32> to vector<16x128xf32>
    %161 = arith.mulf %158, %160 : vector<16x128xf32>
    %162 = arith.addf %157, %161 : vector<16x128xf32>
    %c3_96 = arith.constant 3 : index
    %c8_97 = arith.constant 8 : index
    %163 = vector.load %arg10[%c3_96, %c8_97] : memref<20x160xf32, #tpu.memory_space<vmem>>, vector<16x128xf32>
    %c16_98 = arith.constant 16 : index
    %c0_99 = arith.constant 0 : index
    %164 = vector.load %arg8[%c16_98, %c0_99] : memref<110x128xf32, #tpu.memory_space<vmem>>, vector<1x128xf32>
    %165 = vector.broadcast %164 : vector<1x128xf32> to vector<16x128xf32>
    %166 = arith.mulf %163, %165 : vector<16x128xf32>
    %167 = arith.addf %162, %166 : vector<16x128xf32>
    %c3_100 = arith.constant 3 : index
    %c16_101 = arith.constant 16 : index
    %168 = vector.load %arg10[%c3_100, %c16_101] : memref<20x160xf32, #tpu.memory_space<vmem>>, vector<16x128xf32>
    %c17 = arith.constant 17 : index
    %c0_102 = arith.constant 0 : index
    %169 = vector.load %arg8[%c17, %c0_102] : memref<110x128xf32, #tpu.memory_space<vmem>>, vector<1x128xf32>
    %170 = vector.broadcast %169 : vector<1x128xf32> to vector<16x128xf32>
    %171 = arith.mulf %168, %170 : vector<16x128xf32>
    %172 = arith.addf %167, %171 : vector<16x128xf32>
    %c3_103 = arith.constant 3 : index
    %c24_104 = arith.constant 24 : index
    %173 = vector.load %arg10[%c3_103, %c24_104] : memref<20x160xf32, #tpu.memory_space<vmem>>, vector<16x128xf32>
    %c18_105 = arith.constant 18 : index
    %c0_106 = arith.constant 0 : index
    %174 = vector.load %arg8[%c18_105, %c0_106] : memref<110x128xf32, #tpu.memory_space<vmem>>, vector<1x128xf32>
    %175 = vector.broadcast %174 : vector<1x128xf32> to vector<16x128xf32>
    %176 = arith.mulf %173, %175 : vector<16x128xf32>
    %177 = arith.addf %172, %176 : vector<16x128xf32>
    %c3_107 = arith.constant 3 : index
    %c32_108 = arith.constant 32 : index
    %178 = vector.load %arg10[%c3_107, %c32_108] : memref<20x160xf32, #tpu.memory_space<vmem>>, vector<16x128xf32>
    %c19 = arith.constant 19 : index
    %c0_109 = arith.constant 0 : index
    %179 = vector.load %arg8[%c19, %c0_109] : memref<110x128xf32, #tpu.memory_space<vmem>>, vector<1x128xf32>
    %180 = vector.broadcast %179 : vector<1x128xf32> to vector<16x128xf32>
    %181 = arith.mulf %178, %180 : vector<16x128xf32>
    %182 = arith.addf %177, %181 : vector<16x128xf32>
    %c4_110 = arith.constant 4 : index
    %c0_111 = arith.constant 0 : index
    %183 = vector.load %arg10[%c4_110, %c0_111] : memref<20x160xf32, #tpu.memory_space<vmem>>, vector<16x128xf32>
    %c20 = arith.constant 20 : index
    %c0_112 = arith.constant 0 : index
    %184 = vector.load %arg8[%c20, %c0_112] : memref<110x128xf32, #tpu.memory_space<vmem>>, vector<1x128xf32>
    %185 = vector.broadcast %184 : vector<1x128xf32> to vector<16x128xf32>
    %186 = arith.mulf %183, %185 : vector<16x128xf32>
    %187 = arith.addf %182, %186 : vector<16x128xf32>
    %c4_113 = arith.constant 4 : index
    %c8_114 = arith.constant 8 : index
    %188 = vector.load %arg10[%c4_113, %c8_114] : memref<20x160xf32, #tpu.memory_space<vmem>>, vector<16x128xf32>
    %c21 = arith.constant 21 : index
    %c0_115 = arith.constant 0 : index
    %189 = vector.load %arg8[%c21, %c0_115] : memref<110x128xf32, #tpu.memory_space<vmem>>, vector<1x128xf32>
    %190 = vector.broadcast %189 : vector<1x128xf32> to vector<16x128xf32>
    %191 = arith.mulf %188, %190 : vector<16x128xf32>
    %192 = arith.addf %187, %191 : vector<16x128xf32>
    %c4_116 = arith.constant 4 : index
    %c16_117 = arith.constant 16 : index
    %193 = vector.load %arg10[%c4_116, %c16_117] : memref<20x160xf32, #tpu.memory_space<vmem>>, vector<16x128xf32>
    %c22 = arith.constant 22 : index
    %c0_118 = arith.constant 0 : index
    %194 = vector.load %arg8[%c22, %c0_118] : memref<110x128xf32, #tpu.memory_space<vmem>>, vector<1x128xf32>
    %195 = vector.broadcast %194 : vector<1x128xf32> to vector<16x128xf32>
    %196 = arith.mulf %193, %195 : vector<16x128xf32>
    %197 = arith.addf %192, %196 : vector<16x128xf32>
    %c4_119 = arith.constant 4 : index
    %c24_120 = arith.constant 24 : index
    %198 = vector.load %arg10[%c4_119, %c24_120] : memref<20x160xf32, #tpu.memory_space<vmem>>, vector<16x128xf32>
    %c23 = arith.constant 23 : index
    %c0_121 = arith.constant 0 : index
    %199 = vector.load %arg8[%c23, %c0_121] : memref<110x128xf32, #tpu.memory_space<vmem>>, vector<1x128xf32>
    %200 = vector.broadcast %199 : vector<1x128xf32> to vector<16x128xf32>
    %201 = arith.mulf %198, %200 : vector<16x128xf32>
    %202 = arith.addf %197, %201 : vector<16x128xf32>
    %c4_122 = arith.constant 4 : index
    %c32_123 = arith.constant 32 : index
    %203 = vector.load %arg10[%c4_122, %c32_123] : memref<20x160xf32, #tpu.memory_space<vmem>>, vector<16x128xf32>
    %c24_124 = arith.constant 24 : index
    %c0_125 = arith.constant 0 : index
    %204 = vector.load %arg8[%c24_124, %c0_125] : memref<110x128xf32, #tpu.memory_space<vmem>>, vector<1x128xf32>
    %205 = vector.broadcast %204 : vector<1x128xf32> to vector<16x128xf32>
    %206 = arith.mulf %203, %205 : vector<16x128xf32>
    %207 = arith.addf %202, %206 : vector<16x128xf32>
    %c25 = arith.constant 25 : index
    %c0_126 = arith.constant 0 : index
    %208 = vector.load %arg8[%c25, %c0_126] : memref<110x128xf32, #tpu.memory_space<vmem>>, vector<1x128xf32>
    %209 = vector.broadcast %208 : vector<1x128xf32> to vector<16x128xf32>
    %210 = arith.addf %207, %209 : vector<16x128xf32>
    %c0_127 = arith.constant 0 : index
    %c80 = arith.constant 80 : index
    %211 = vector.load %arg11[%c0_127, %c80] : memref<16x288xf32, #tpu.memory_space<vmem>>, vector<16x128xf32>
    tpu.vector_store %arg11[%c0_127, %c80], %210 {strides = array<i32>} : memref<16x288xf32, #tpu.memory_space<vmem>>, vector<16x128xf32>,
    %c0_128 = arith.constant 0 : index
    %c56 = arith.constant 56 : index
    %212 = vector.load %arg11[%c0_128, %c56] : memref<16x288xf32, #tpu.memory_space<vmem>>, vector<16x128xf32>
    %c26_129 = arith.constant 26 : index
    %c0_130 = arith.constant 0 : index
    %213 = vector.load %arg8[%c26_129, %c0_130] : memref<110x128xf32, #tpu.memory_space<vmem>>, vector<1x128xf32>
    %214 = vector.broadcast %213 : vector<1x128xf32> to vector<16x128xf32>
    %215 = arith.mulf %212, %214 : vector<16x128xf32>
    %c0_131 = arith.constant 0 : index
    %c64 = arith.constant 64 : index
    %216 = vector.load %arg11[%c0_131, %c64] : memref<16x288xf32, #tpu.memory_space<vmem>>, vector<16x128xf32>
    %c27 = arith.constant 27 : index
    %c0_132 = arith.constant 0 : index
    %217 = vector.load %arg8[%c27, %c0_132] : memref<110x128xf32, #tpu.memory_space<vmem>>, vector<1x128xf32>
    %218 = vector.broadcast %217 : vector<1x128xf32> to vector<16x128xf32>
    %219 = arith.mulf %216, %218 : vector<16x128xf32>
    %220 = arith.addf %215, %219 : vector<16x128xf32>
    %c0_133 = arith.constant 0 : index
    %c72 = arith.constant 72 : index
    %221 = vector.load %arg11[%c0_133, %c72] : memref<16x288xf32, #tpu.memory_space<vmem>>, vector<16x128xf32>
    %c28 = arith.constant 28 : index
    %c0_134 = arith.constant 0 : index
    %222 = vector.load %arg8[%c28, %c0_134] : memref<110x128xf32, #tpu.memory_space<vmem>>, vector<1x128xf32>
    %223 = vector.broadcast %222 : vector<1x128xf32> to vector<16x128xf32>
    %224 = arith.mulf %221, %223 : vector<16x128xf32>
    %225 = arith.addf %220, %224 : vector<16x128xf32>
    %c0_135 = arith.constant 0 : index
    %c80_136 = arith.constant 80 : index
    %226 = vector.load %arg11[%c0_135, %c80_136] : memref<16x288xf32, #tpu.memory_space<vmem>>, vector<16x128xf32>
    %c29 = arith.constant 29 : index
    %c0_137 = arith.constant 0 : index
    %227 = vector.load %arg8[%c29, %c0_137] : memref<110x128xf32, #tpu.memory_space<vmem>>, vector<1x128xf32>
    %228 = vector.broadcast %227 : vector<1x128xf32> to vector<16x128xf32>
    %229 = arith.mulf %226, %228 : vector<16x128xf32>
    %230 = arith.addf %225, %229 : vector<16x128xf32>
    %c0_138 = arith.constant 0 : index
    %c88 = arith.constant 88 : index
    %231 = vector.load %arg11[%c0_138, %c88] : memref<16x288xf32, #tpu.memory_space<vmem>>, vector<16x128xf32>
    %c30 = arith.constant 30 : index
    %c0_139 = arith.constant 0 : index
    %232 = vector.load %arg8[%c30, %c0_139] : memref<110x128xf32, #tpu.memory_space<vmem>>, vector<1x128xf32>
    %233 = vector.broadcast %232 : vector<1x128xf32> to vector<16x128xf32>
    %234 = arith.mulf %231, %233 : vector<16x128xf32>
    %235 = arith.addf %230, %234 : vector<16x128xf32>
    %c0_140 = arith.constant 0 : index
    %c96 = arith.constant 96 : index
    %236 = vector.load %arg11[%c0_140, %c96] : memref<16x288xf32, #tpu.memory_space<vmem>>, vector<16x128xf32>
    %c31 = arith.constant 31 : index
    %c0_141 = arith.constant 0 : index
    %237 = vector.load %arg8[%c31, %c0_141] : memref<110x128xf32, #tpu.memory_space<vmem>>, vector<1x128xf32>
    %238 = vector.broadcast %237 : vector<1x128xf32> to vector<16x128xf32>
    %239 = arith.mulf %236, %238 : vector<16x128xf32>
    %240 = arith.addf %235, %239 : vector<16x128xf32>
    %c0_142 = arith.constant 0 : index
    %c104 = arith.constant 104 : index
    %241 = vector.load %arg11[%c0_142, %c104] : memref<16x288xf32, #tpu.memory_space<vmem>>, vector<16x128xf32>
    %c32_143 = arith.constant 32 : index
    %c0_144 = arith.constant 0 : index
    %242 = vector.load %arg8[%c32_143, %c0_144] : memref<110x128xf32, #tpu.memory_space<vmem>>, vector<1x128xf32>
    %243 = vector.broadcast %242 : vector<1x128xf32> to vector<16x128xf32>
    %244 = arith.mulf %241, %243 : vector<16x128xf32>
    %245 = arith.addf %240, %244 : vector<16x128xf32>
    %c33 = arith.constant 33 : index
    %c0_145 = arith.constant 0 : index
    %246 = vector.load %arg8[%c33, %c0_145] : memref<110x128xf32, #tpu.memory_space<vmem>>, vector<1x128xf32>
    %247 = vector.broadcast %246 : vector<1x128xf32> to vector<16x128xf32>
    %248 = arith.addf %245, %247 : vector<16x128xf32>
    %c10_146 = arith.constant 10 : index
    %c0_147 = arith.constant 0 : index
    %249 = vector.load %arg12[%c10_146, %c0_147] : memref<36x128xf32, #tpu.memory_space<vmem>>, vector<16x128xf32>
    tpu.vector_store %arg12[%c10_146, %c0_147], %248 {strides = array<i32>} : memref<36x128xf32, #tpu.memory_space<vmem>>, vector<16x128xf32>,
    %c7_148 = arith.constant 7 : index
    %c0_149 = arith.constant 0 : index
    %250 = vector.load %arg12[%c7_148, %c0_149] : memref<36x128xf32, #tpu.memory_space<vmem>>, vector<16x128xf32>
    %c34 = arith.constant 34 : index
    %c0_150 = arith.constant 0 : index
    %251 = vector.load %arg8[%c34, %c0_150] : memref<110x128xf32, #tpu.memory_space<vmem>>, vector<1x128xf32>
    %252 = vector.broadcast %251 : vector<1x128xf32> to vector<16x128xf32>
    %253 = arith.mulf %250, %252 : vector<16x128xf32>
    %c8_151 = arith.constant 8 : index
    %c0_152 = arith.constant 0 : index
    %254 = vector.load %arg12[%c8_151, %c0_152] : memref<36x128xf32, #tpu.memory_space<vmem>>, vector<16x128xf32>
    %c35 = arith.constant 35 : index
    %c0_153 = arith.constant 0 : index
    %255 = vector.load %arg8[%c35, %c0_153] : memref<110x128xf32, #tpu.memory_space<vmem>>, vector<1x128xf32>
    %256 = vector.broadcast %255 : vector<1x128xf32> to vector<16x128xf32>
    %257 = arith.mulf %254, %256 : vector<16x128xf32>
    %258 = arith.addf %253, %257 : vector<16x128xf32>
    %c9_154 = arith.constant 9 : index
    %c0_155 = arith.constant 0 : index
    %259 = vector.load %arg12[%c9_154, %c0_155] : memref<36x128xf32, #tpu.memory_space<vmem>>, vector<16x128xf32>
    %c36 = arith.constant 36 : index
    %c0_156 = arith.constant 0 : index
    %260 = vector.load %arg8[%c36, %c0_156] : memref<110x128xf32, #tpu.memory_space<vmem>>, vector<1x128xf32>
    %261 = vector.broadcast %260 : vector<1x128xf32> to vector<16x128xf32>
    %262 = arith.mulf %259, %261 : vector<16x128xf32>
    %263 = arith.addf %258, %262 : vector<16x128xf32>
    %c10_157 = arith.constant 10 : index
    %c0_158 = arith.constant 0 : index
    %264 = vector.load %arg12[%c10_157, %c0_158] : memref<36x128xf32, #tpu.memory_space<vmem>>, vector<16x128xf32>
    %c37 = arith.constant 37 : index
    %c0_159 = arith.constant 0 : index
    %265 = vector.load %arg8[%c37, %c0_159] : memref<110x128xf32, #tpu.memory_space<vmem>>, vector<1x128xf32>
    %266 = vector.broadcast %265 : vector<1x128xf32> to vector<16x128xf32>
    %267 = arith.mulf %264, %266 : vector<16x128xf32>
    %268 = arith.addf %263, %267 : vector<16x128xf32>
    %c11_160 = arith.constant 11 : index
    %c0_161 = arith.constant 0 : index
    %269 = vector.load %arg12[%c11_160, %c0_161] : memref<36x128xf32, #tpu.memory_space<vmem>>, vector<16x128xf32>
    %c38 = arith.constant 38 : index
    %c0_162 = arith.constant 0 : index
    %270 = vector.load %arg8[%c38, %c0_162] : memref<110x128xf32, #tpu.memory_space<vmem>>, vector<1x128xf32>
    %271 = vector.broadcast %270 : vector<1x128xf32> to vector<16x128xf32>
    %272 = arith.mulf %269, %271 : vector<16x128xf32>
    %273 = arith.addf %268, %272 : vector<16x128xf32>
    %c12_163 = arith.constant 12 : index
    %c0_164 = arith.constant 0 : index
    %274 = vector.load %arg12[%c12_163, %c0_164] : memref<36x128xf32, #tpu.memory_space<vmem>>, vector<16x128xf32>
    %c39 = arith.constant 39 : index
    %c0_165 = arith.constant 0 : index
    %275 = vector.load %arg8[%c39, %c0_165] : memref<110x128xf32, #tpu.memory_space<vmem>>, vector<1x128xf32>
    %276 = vector.broadcast %275 : vector<1x128xf32> to vector<16x128xf32>
    %277 = arith.mulf %274, %276 : vector<16x128xf32>
    %278 = arith.addf %273, %277 : vector<16x128xf32>
    %c13_166 = arith.constant 13 : index
    %c0_167 = arith.constant 0 : index
    %279 = vector.load %arg12[%c13_166, %c0_167] : memref<36x128xf32, #tpu.memory_space<vmem>>, vector<16x128xf32>
    %c40 = arith.constant 40 : index
    %c0_168 = arith.constant 0 : index
    %280 = vector.load %arg8[%c40, %c0_168] : memref<110x128xf32, #tpu.memory_space<vmem>>, vector<1x128xf32>
    %281 = vector.broadcast %280 : vector<1x128xf32> to vector<16x128xf32>
    %282 = arith.mulf %279, %281 : vector<16x128xf32>
    %283 = arith.addf %278, %282 : vector<16x128xf32>
    %284 = arith.addf %210, %283 : vector<16x128xf32>
    %c41 = arith.constant 41 : index
    %c0_169 = arith.constant 0 : index
    %285 = vector.load %arg8[%c41, %c0_169] : memref<110x128xf32, #tpu.memory_space<vmem>>, vector<1x128xf32>
    %286 = vector.broadcast %285 : vector<1x128xf32> to vector<16x128xf32>
    %287 = arith.addf %284, %286 : vector<16x128xf32>
    %c0_170 = arith.constant 0 : index
    %c40_171 = arith.constant 40 : index
    %288 = vector.load %arg11[%c0_170, %c40_171] : memref<16x288xf32, #tpu.memory_space<vmem>>, vector<16x128xf32>
    %c42 = arith.constant 42 : index
    %c0_172 = arith.constant 0 : index
    %289 = vector.load %arg8[%c42, %c0_172] : memref<110x128xf32, #tpu.memory_space<vmem>>, vector<1x128xf32>
    %290 = vector.broadcast %289 : vector<1x128xf32> to vector<16x128xf32>
    %291 = arith.mulf %288, %290 : vector<16x128xf32>
    %c0_173 = arith.constant 0 : index
    %c48 = arith.constant 48 : index
    %292 = vector.load %arg11[%c0_173, %c48] : memref<16x288xf32, #tpu.memory_space<vmem>>, vector<16x128xf32>
    %c43 = arith.constant 43 : index
    %c0_174 = arith.constant 0 : index
    %293 = vector.load %arg8[%c43, %c0_174] : memref<110x128xf32, #tpu.memory_space<vmem>>, vector<1x128xf32>
    %294 = vector.broadcast %293 : vector<1x128xf32> to vector<16x128xf32>
    %295 = arith.mulf %292, %294 : vector<16x128xf32>
    %296 = arith.addf %291, %295 : vector<16x128xf32>
    %c0_175 = arith.constant 0 : index
    %c56_176 = arith.constant 56 : index
    %297 = vector.load %arg11[%c0_175, %c56_176] : memref<16x288xf32, #tpu.memory_space<vmem>>, vector<16x128xf32>
    %c44 = arith.constant 44 : index
    %c0_177 = arith.constant 0 : index
    %298 = vector.load %arg8[%c44, %c0_177] : memref<110x128xf32, #tpu.memory_space<vmem>>, vector<1x128xf32>
    %299 = vector.broadcast %298 : vector<1x128xf32> to vector<16x128xf32>
    %300 = arith.mulf %297, %299 : vector<16x128xf32>
    %301 = arith.addf %296, %300 : vector<16x128xf32>
    %c0_178 = arith.constant 0 : index
    %c64_179 = arith.constant 64 : index
    %302 = vector.load %arg11[%c0_178, %c64_179] : memref<16x288xf32, #tpu.memory_space<vmem>>, vector<16x128xf32>
    %c45 = arith.constant 45 : index
    %c0_180 = arith.constant 0 : index
    %303 = vector.load %arg8[%c45, %c0_180] : memref<110x128xf32, #tpu.memory_space<vmem>>, vector<1x128xf32>
    %304 = vector.broadcast %303 : vector<1x128xf32> to vector<16x128xf32>
    %305 = arith.mulf %302, %304 : vector<16x128xf32>
    %306 = arith.addf %301, %305 : vector<16x128xf32>
    %c0_181 = arith.constant 0 : index
    %c72_182 = arith.constant 72 : index
    %307 = vector.load %arg11[%c0_181, %c72_182] : memref<16x288xf32, #tpu.memory_space<vmem>>, vector<16x128xf32>
    %c46 = arith.constant 46 : index
    %c0_183 = arith.constant 0 : index
    %308 = vector.load %arg8[%c46, %c0_183] : memref<110x128xf32, #tpu.memory_space<vmem>>, vector<1x128xf32>
    %309 = vector.broadcast %308 : vector<1x128xf32> to vector<16x128xf32>
    %310 = arith.mulf %307, %309 : vector<16x128xf32>
    %311 = arith.addf %306, %310 : vector<16x128xf32>
    %c0_184 = arith.constant 0 : index
    %c80_185 = arith.constant 80 : index
    %312 = vector.load %arg11[%c0_184, %c80_185] : memref<16x288xf32, #tpu.memory_space<vmem>>, vector<16x128xf32>
    %c47 = arith.constant 47 : index
    %c0_186 = arith.constant 0 : index
    %313 = vector.load %arg8[%c47, %c0_186] : memref<110x128xf32, #tpu.memory_space<vmem>>, vector<1x128xf32>
    %314 = vector.broadcast %313 : vector<1x128xf32> to vector<16x128xf32>
    %315 = arith.mulf %312, %314 : vector<16x128xf32>
    %316 = arith.addf %311, %315 : vector<16x128xf32>
    %c0_187 = arith.constant 0 : index
    %c88_188 = arith.constant 88 : index
    %317 = vector.load %arg11[%c0_187, %c88_188] : memref<16x288xf32, #tpu.memory_space<vmem>>, vector<16x128xf32>
    %c48_189 = arith.constant 48 : index
    %c0_190 = arith.constant 0 : index
    %318 = vector.load %arg8[%c48_189, %c0_190] : memref<110x128xf32, #tpu.memory_space<vmem>>, vector<1x128xf32>
    %319 = vector.broadcast %318 : vector<1x128xf32> to vector<16x128xf32>
    %320 = arith.mulf %317, %319 : vector<16x128xf32>
    %321 = arith.addf %316, %320 : vector<16x128xf32>
    %c0_191 = arith.constant 0 : index
    %c96_192 = arith.constant 96 : index
    %322 = vector.load %arg11[%c0_191, %c96_192] : memref<16x288xf32, #tpu.memory_space<vmem>>, vector<16x128xf32>
    %c49 = arith.constant 49 : index
    %c0_193 = arith.constant 0 : index
    %323 = vector.load %arg8[%c49, %c0_193] : memref<110x128xf32, #tpu.memory_space<vmem>>, vector<1x128xf32>
    %324 = vector.broadcast %323 : vector<1x128xf32> to vector<16x128xf32>
    %325 = arith.mulf %322, %324 : vector<16x128xf32>
    %326 = arith.addf %321, %325 : vector<16x128xf32>
    %c0_194 = arith.constant 0 : index
    %c104_195 = arith.constant 104 : index
    %327 = vector.load %arg11[%c0_194, %c104_195] : memref<16x288xf32, #tpu.memory_space<vmem>>, vector<16x128xf32>
    %c50 = arith.constant 50 : index
    %c0_196 = arith.constant 0 : index
    %328 = vector.load %arg8[%c50, %c0_196] : memref<110x128xf32, #tpu.memory_space<vmem>>, vector<1x128xf32>
    %329 = vector.broadcast %328 : vector<1x128xf32> to vector<16x128xf32>
    %330 = arith.mulf %327, %329 : vector<16x128xf32>
    %331 = arith.addf %326, %330 : vector<16x128xf32>
    %c0_197 = arith.constant 0 : index
    %c112 = arith.constant 112 : index
    %332 = vector.load %arg11[%c0_197, %c112] : memref<16x288xf32, #tpu.memory_space<vmem>>, vector<16x128xf32>
    %c51 = arith.constant 51 : index
    %c0_198 = arith.constant 0 : index
    %333 = vector.load %arg8[%c51, %c0_198] : memref<110x128xf32, #tpu.memory_space<vmem>>, vector<1x128xf32>
    %334 = vector.broadcast %333 : vector<1x128xf32> to vector<16x128xf32>
    %335 = arith.mulf %332, %334 : vector<16x128xf32>
    %336 = arith.addf %331, %335 : vector<16x128xf32>
    %c0_199 = arith.constant 0 : index
    %c120 = arith.constant 120 : index
    %337 = vector.load %arg11[%c0_199, %c120] : memref<16x288xf32, #tpu.memory_space<vmem>>, vector<16x128xf32>
    %c52 = arith.constant 52 : index
    %c0_200 = arith.constant 0 : index
    %338 = vector.load %arg8[%c52, %c0_200] : memref<110x128xf32, #tpu.memory_space<vmem>>, vector<1x128xf32>
    %339 = vector.broadcast %338 : vector<1x128xf32> to vector<16x128xf32>
    %340 = arith.mulf %337, %339 : vector<16x128xf32>
    %341 = arith.addf %336, %340 : vector<16x128xf32>
    %c53 = arith.constant 53 : index
    %c0_201 = arith.constant 0 : index
    %342 = vector.load %arg8[%c53, %c0_201] : memref<110x128xf32, #tpu.memory_space<vmem>>, vector<1x128xf32>
    %343 = vector.broadcast %342 : vector<1x128xf32> to vector<16x128xf32>
    %344 = arith.addf %341, %343 : vector<16x128xf32>
    %c10_202 = arith.constant 10 : index
    %c0_203 = arith.constant 0 : index
    %345 = vector.load %arg12[%c10_202, %c0_203] : memref<36x128xf32, #tpu.memory_space<vmem>>, vector<16x128xf32>
    tpu.vector_store %arg12[%c10_202, %c0_203], %344 {strides = array<i32>} : memref<36x128xf32, #tpu.memory_space<vmem>>, vector<16x128xf32>,
    %c5_204 = arith.constant 5 : index
    %c0_205 = arith.constant 0 : index
    %346 = vector.load %arg12[%c5_204, %c0_205] : memref<36x128xf32, #tpu.memory_space<vmem>>, vector<16x128xf32>
    %c54 = arith.constant 54 : index
    %c0_206 = arith.constant 0 : index
    %347 = vector.load %arg8[%c54, %c0_206] : memref<110x128xf32, #tpu.memory_space<vmem>>, vector<1x128xf32>
    %348 = vector.broadcast %347 : vector<1x128xf32> to vector<16x128xf32>
    %349 = arith.mulf %346, %348 : vector<16x128xf32>
    %c6_207 = arith.constant 6 : index
    %c0_208 = arith.constant 0 : index
    %350 = vector.load %arg12[%c6_207, %c0_208] : memref<36x128xf32, #tpu.memory_space<vmem>>, vector<16x128xf32>
    %c55 = arith.constant 55 : index
    %c0_209 = arith.constant 0 : index
    %351 = vector.load %arg8[%c55, %c0_209] : memref<110x128xf32, #tpu.memory_space<vmem>>, vector<1x128xf32>
    %352 = vector.broadcast %351 : vector<1x128xf32> to vector<16x128xf32>
    %353 = arith.mulf %350, %352 : vector<16x128xf32>
    %354 = arith.addf %349, %353 : vector<16x128xf32>
    %c7_210 = arith.constant 7 : index
    %c0_211 = arith.constant 0 : index
    %355 = vector.load %arg12[%c7_210, %c0_211] : memref<36x128xf32, #tpu.memory_space<vmem>>, vector<16x128xf32>
    %c56_212 = arith.constant 56 : index
    %c0_213 = arith.constant 0 : index
    %356 = vector.load %arg8[%c56_212, %c0_213] : memref<110x128xf32, #tpu.memory_space<vmem>>, vector<1x128xf32>
    %357 = vector.broadcast %356 : vector<1x128xf32> to vector<16x128xf32>
    %358 = arith.mulf %355, %357 : vector<16x128xf32>
    %359 = arith.addf %354, %358 : vector<16x128xf32>
    %c8_214 = arith.constant 8 : index
    %c0_215 = arith.constant 0 : index
    %360 = vector.load %arg12[%c8_214, %c0_215] : memref<36x128xf32, #tpu.memory_space<vmem>>, vector<16x128xf32>
    %c57 = arith.constant 57 : index
    %c0_216 = arith.constant 0 : index
    %361 = vector.load %arg8[%c57, %c0_216] : memref<110x128xf32, #tpu.memory_space<vmem>>, vector<1x128xf32>
    %362 = vector.broadcast %361 : vector<1x128xf32> to vector<16x128xf32>
    %363 = arith.mulf %360, %362 : vector<16x128xf32>
    %364 = arith.addf %359, %363 : vector<16x128xf32>
    %c9_217 = arith.constant 9 : index
    %c0_218 = arith.constant 0 : index
    %365 = vector.load %arg12[%c9_217, %c0_218] : memref<36x128xf32, #tpu.memory_space<vmem>>, vector<16x128xf32>
    %c58 = arith.constant 58 : index
    %c0_219 = arith.constant 0 : index
    %366 = vector.load %arg8[%c58, %c0_219] : memref<110x128xf32, #tpu.memory_space<vmem>>, vector<1x128xf32>
    %367 = vector.broadcast %366 : vector<1x128xf32> to vector<16x128xf32>
    %368 = arith.mulf %365, %367 : vector<16x128xf32>
    %369 = arith.addf %364, %368 : vector<16x128xf32>
    %c10_220 = arith.constant 10 : index
    %c0_221 = arith.constant 0 : index
    %370 = vector.load %arg12[%c10_220, %c0_221] : memref<36x128xf32, #tpu.memory_space<vmem>>, vector<16x128xf32>
    %c59 = arith.constant 59 : index
    %c0_222 = arith.constant 0 : index
    %371 = vector.load %arg8[%c59, %c0_222] : memref<110x128xf32, #tpu.memory_space<vmem>>, vector<1x128xf32>
    %372 = vector.broadcast %371 : vector<1x128xf32> to vector<16x128xf32>
    %373 = arith.mulf %370, %372 : vector<16x128xf32>
    %374 = arith.addf %369, %373 : vector<16x128xf32>
    %c11_223 = arith.constant 11 : index
    %c0_224 = arith.constant 0 : index
    %375 = vector.load %arg12[%c11_223, %c0_224] : memref<36x128xf32, #tpu.memory_space<vmem>>, vector<16x128xf32>
    %c60 = arith.constant 60 : index
    %c0_225 = arith.constant 0 : index
    %376 = vector.load %arg8[%c60, %c0_225] : memref<110x128xf32, #tpu.memory_space<vmem>>, vector<1x128xf32>
    %377 = vector.broadcast %376 : vector<1x128xf32> to vector<16x128xf32>
    %378 = arith.mulf %375, %377 : vector<16x128xf32>
    %379 = arith.addf %374, %378 : vector<16x128xf32>
    %c12_226 = arith.constant 12 : index
    %c0_227 = arith.constant 0 : index
    %380 = vector.load %arg12[%c12_226, %c0_227] : memref<36x128xf32, #tpu.memory_space<vmem>>, vector<16x128xf32>
    %c61 = arith.constant 61 : index
    %c0_228 = arith.constant 0 : index
    %381 = vector.load %arg8[%c61, %c0_228] : memref<110x128xf32, #tpu.memory_space<vmem>>, vector<1x128xf32>
    %382 = vector.broadcast %381 : vector<1x128xf32> to vector<16x128xf32>
    %383 = arith.mulf %380, %382 : vector<16x128xf32>
    %384 = arith.addf %379, %383 : vector<16x128xf32>
    %c13_229 = arith.constant 13 : index
    %c0_230 = arith.constant 0 : index
    %385 = vector.load %arg12[%c13_229, %c0_230] : memref<36x128xf32, #tpu.memory_space<vmem>>, vector<16x128xf32>
    %c62 = arith.constant 62 : index
    %c0_231 = arith.constant 0 : index
    %386 = vector.load %arg8[%c62, %c0_231] : memref<110x128xf32, #tpu.memory_space<vmem>>, vector<1x128xf32>
    %387 = vector.broadcast %386 : vector<1x128xf32> to vector<16x128xf32>
    %388 = arith.mulf %385, %387 : vector<16x128xf32>
    %389 = arith.addf %384, %388 : vector<16x128xf32>
    %c14_232 = arith.constant 14 : index
    %c0_233 = arith.constant 0 : index
    %390 = vector.load %arg12[%c14_232, %c0_233] : memref<36x128xf32, #tpu.memory_space<vmem>>, vector<16x128xf32>
    %c63 = arith.constant 63 : index
    %c0_234 = arith.constant 0 : index
    %391 = vector.load %arg8[%c63, %c0_234] : memref<110x128xf32, #tpu.memory_space<vmem>>, vector<1x128xf32>
    %392 = vector.broadcast %391 : vector<1x128xf32> to vector<16x128xf32>
    %393 = arith.mulf %390, %392 : vector<16x128xf32>
    %394 = arith.addf %389, %393 : vector<16x128xf32>
    %c15_235 = arith.constant 15 : index
    %c0_236 = arith.constant 0 : index
    %395 = vector.load %arg12[%c15_235, %c0_236] : memref<36x128xf32, #tpu.memory_space<vmem>>, vector<16x128xf32>
    %c64_237 = arith.constant 64 : index
    %c0_238 = arith.constant 0 : index
    %396 = vector.load %arg8[%c64_237, %c0_238] : memref<110x128xf32, #tpu.memory_space<vmem>>, vector<1x128xf32>
    %397 = vector.broadcast %396 : vector<1x128xf32> to vector<16x128xf32>
    %398 = arith.mulf %395, %397 : vector<16x128xf32>
    %399 = arith.addf %394, %398 : vector<16x128xf32>
    %400 = arith.addf %287, %399 : vector<16x128xf32>
    %c65 = arith.constant 65 : index
    %c0_239 = arith.constant 0 : index
    %401 = vector.load %arg8[%c65, %c0_239] : memref<110x128xf32, #tpu.memory_space<vmem>>, vector<1x128xf32>
    %402 = vector.broadcast %401 : vector<1x128xf32> to vector<16x128xf32>
    %403 = arith.addf %400, %402 : vector<16x128xf32>
    %c0_240 = arith.constant 0 : index
    %c0_241 = arith.constant 0 : index
    %404 = vector.load %arg11[%c0_240, %c0_241] : memref<16x288xf32, #tpu.memory_space<vmem>>, vector<16x128xf32>
    %c66 = arith.constant 66 : index
    %c0_242 = arith.constant 0 : index
    %405 = vector.load %arg8[%c66, %c0_242] : memref<110x128xf32, #tpu.memory_space<vmem>>, vector<1x128xf32>
    %406 = vector.broadcast %405 : vector<1x128xf32> to vector<16x128xf32>
    %407 = arith.mulf %404, %406 : vector<16x128xf32>
    %c0_243 = arith.constant 0 : index
    %c8_244 = arith.constant 8 : index
    %408 = vector.load %arg11[%c0_243, %c8_244] : memref<16x288xf32, #tpu.memory_space<vmem>>, vector<16x128xf32>
    %c67 = arith.constant 67 : index
    %c0_245 = arith.constant 0 : index
    %409 = vector.load %arg8[%c67, %c0_245] : memref<110x128xf32, #tpu.memory_space<vmem>>, vector<1x128xf32>
    %410 = vector.broadcast %409 : vector<1x128xf32> to vector<16x128xf32>
    %411 = arith.mulf %408, %410 : vector<16x128xf32>
    %412 = arith.addf %407, %411 : vector<16x128xf32>
    %c0_246 = arith.constant 0 : index
    %c16_247 = arith.constant 16 : index
    %413 = vector.load %arg11[%c0_246, %c16_247] : memref<16x288xf32, #tpu.memory_space<vmem>>, vector<16x128xf32>
    %c68 = arith.constant 68 : index
    %c0_248 = arith.constant 0 : index
    %414 = vector.load %arg8[%c68, %c0_248] : memref<110x128xf32, #tpu.memory_space<vmem>>, vector<1x128xf32>
    %415 = vector.broadcast %414 : vector<1x128xf32> to vector<16x128xf32>
    %416 = arith.mulf %413, %415 : vector<16x128xf32>
    %417 = arith.addf %412, %416 : vector<16x128xf32>
    %c0_249 = arith.constant 0 : index
    %c24_250 = arith.constant 24 : index
    %418 = vector.load %arg11[%c0_249, %c24_250] : memref<16x288xf32, #tpu.memory_space<vmem>>, vector<16x128xf32>
    %c69 = arith.constant 69 : index
    %c0_251 = arith.constant 0 : index
    %419 = vector.load %arg8[%c69, %c0_251] : memref<110x128xf32, #tpu.memory_space<vmem>>, vector<1x128xf32>
    %420 = vector.broadcast %419 : vector<1x128xf32> to vector<16x128xf32>
    %421 = arith.mulf %418, %420 : vector<16x128xf32>
    %422 = arith.addf %417, %421 : vector<16x128xf32>
    %c0_252 = arith.constant 0 : index
    %c32_253 = arith.constant 32 : index
    %423 = vector.load %arg11[%c0_252, %c32_253] : memref<16x288xf32, #tpu.memory_space<vmem>>, vector<16x128xf32>
    %c70 = arith.constant 70 : index
    %c0_254 = arith.constant 0 : index
    %424 = vector.load %arg8[%c70, %c0_254] : memref<110x128xf32, #tpu.memory_space<vmem>>, vector<1x128xf32>
    %425 = vector.broadcast %424 : vector<1x128xf32> to vector<16x128xf32>
    %426 = arith.mulf %423, %425 : vector<16x128xf32>
    %427 = arith.addf %422, %426 : vector<16x128xf32>
    %c0_255 = arith.constant 0 : index
    %c40_256 = arith.constant 40 : index
    %428 = vector.load %arg11[%c0_255, %c40_256] : memref<16x288xf32, #tpu.memory_space<vmem>>, vector<16x128xf32>
    %c71 = arith.constant 71 : index
    %c0_257 = arith.constant 0 : index
    %429 = vector.load %arg8[%c71, %c0_257] : memref<110x128xf32, #tpu.memory_space<vmem>>, vector<1x128xf32>
    %430 = vector.broadcast %429 : vector<1x128xf32> to vector<16x128xf32>
    %431 = arith.mulf %428, %430 : vector<16x128xf32>
    %432 = arith.addf %427, %431 : vector<16x128xf32>
    %c0_258 = arith.constant 0 : index
    %c48_259 = arith.constant 48 : index
    %433 = vector.load %arg11[%c0_258, %c48_259] : memref<16x288xf32, #tpu.memory_space<vmem>>, vector<16x128xf32>
    %c72_260 = arith.constant 72 : index
    %c0_261 = arith.constant 0 : index
    %434 = vector.load %arg8[%c72_260, %c0_261] : memref<110x128xf32, #tpu.memory_space<vmem>>, vector<1x128xf32>
    %435 = vector.broadcast %434 : vector<1x128xf32> to vector<16x128xf32>
    %436 = arith.mulf %433, %435 : vector<16x128xf32>
    %437 = arith.addf %432, %436 : vector<16x128xf32>
    %c0_262 = arith.constant 0 : index
    %c56_263 = arith.constant 56 : index
    %438 = vector.load %arg11[%c0_262, %c56_263] : memref<16x288xf32, #tpu.memory_space<vmem>>, vector<16x128xf32>
    %c73 = arith.constant 73 : index
    %c0_264 = arith.constant 0 : index
    %439 = vector.load %arg8[%c73, %c0_264] : memref<110x128xf32, #tpu.memory_space<vmem>>, vector<1x128xf32>
    %440 = vector.broadcast %439 : vector<1x128xf32> to vector<16x128xf32>
    %441 = arith.mulf %438, %440 : vector<16x128xf32>
    %442 = arith.addf %437, %441 : vector<16x128xf32>
    %c0_265 = arith.constant 0 : index
    %c64_266 = arith.constant 64 : index
    %443 = vector.load %arg11[%c0_265, %c64_266] : memref<16x288xf32, #tpu.memory_space<vmem>>, vector<16x128xf32>
    %c74 = arith.constant 74 : index
    %c0_267 = arith.constant 0 : index
    %444 = vector.load %arg8[%c74, %c0_267] : memref<110x128xf32, #tpu.memory_space<vmem>>, vector<1x128xf32>
    %445 = vector.broadcast %444 : vector<1x128xf32> to vector<16x128xf32>
    %446 = arith.mulf %443, %445 : vector<16x128xf32>
    %447 = arith.addf %442, %446 : vector<16x128xf32>
    %c0_268 = arith.constant 0 : index
    %c72_269 = arith.constant 72 : index
    %448 = vector.load %arg11[%c0_268, %c72_269] : memref<16x288xf32, #tpu.memory_space<vmem>>, vector<16x128xf32>
    %c75 = arith.constant 75 : index
    %c0_270 = arith.constant 0 : index
    %449 = vector.load %arg8[%c75, %c0_270] : memref<110x128xf32, #tpu.memory_space<vmem>>, vector<1x128xf32>
    %450 = vector.broadcast %449 : vector<1x128xf32> to vector<16x128xf32>
    %451 = arith.mulf %448, %450 : vector<16x128xf32>
    %452 = arith.addf %447, %451 : vector<16x128xf32>
    %c0_271 = arith.constant 0 : index
    %c80_272 = arith.constant 80 : index
    %453 = vector.load %arg11[%c0_271, %c80_272] : memref<16x288xf32, #tpu.memory_space<vmem>>, vector<16x128xf32>
    %c76 = arith.constant 76 : index
    %c0_273 = arith.constant 0 : index
    %454 = vector.load %arg8[%c76, %c0_273] : memref<110x128xf32, #tpu.memory_space<vmem>>, vector<1x128xf32>
    %455 = vector.broadcast %454 : vector<1x128xf32> to vector<16x128xf32>
    %456 = arith.mulf %453, %455 : vector<16x128xf32>
    %457 = arith.addf %452, %456 : vector<16x128xf32>
    %c0_274 = arith.constant 0 : index
    %c88_275 = arith.constant 88 : index
    %458 = vector.load %arg11[%c0_274, %c88_275] : memref<16x288xf32, #tpu.memory_space<vmem>>, vector<16x128xf32>
    %c77 = arith.constant 77 : index
    %c0_276 = arith.constant 0 : index
    %459 = vector.load %arg8[%c77, %c0_276] : memref<110x128xf32, #tpu.memory_space<vmem>>, vector<1x128xf32>
    %460 = vector.broadcast %459 : vector<1x128xf32> to vector<16x128xf32>
    %461 = arith.mulf %458, %460 : vector<16x128xf32>
    %462 = arith.addf %457, %461 : vector<16x128xf32>
    %c0_277 = arith.constant 0 : index
    %c96_278 = arith.constant 96 : index
    %463 = vector.load %arg11[%c0_277, %c96_278] : memref<16x288xf32, #tpu.memory_space<vmem>>, vector<16x128xf32>
    %c78 = arith.constant 78 : index
    %c0_279 = arith.constant 0 : index
    %464 = vector.load %arg8[%c78, %c0_279] : memref<110x128xf32, #tpu.memory_space<vmem>>, vector<1x128xf32>
    %465 = vector.broadcast %464 : vector<1x128xf32> to vector<16x128xf32>
    %466 = arith.mulf %463, %465 : vector<16x128xf32>
    %467 = arith.addf %462, %466 : vector<16x128xf32>
    %c0_280 = arith.constant 0 : index
    %c104_281 = arith.constant 104 : index
    %468 = vector.load %arg11[%c0_280, %c104_281] : memref<16x288xf32, #tpu.memory_space<vmem>>, vector<16x128xf32>
    %c79 = arith.constant 79 : index
    %c0_282 = arith.constant 0 : index
    %469 = vector.load %arg8[%c79, %c0_282] : memref<110x128xf32, #tpu.memory_space<vmem>>, vector<1x128xf32>
    %470 = vector.broadcast %469 : vector<1x128xf32> to vector<16x128xf32>
    %471 = arith.mulf %468, %470 : vector<16x128xf32>
    %472 = arith.addf %467, %471 : vector<16x128xf32>
    %c0_283 = arith.constant 0 : index
    %c112_284 = arith.constant 112 : index
    %473 = vector.load %arg11[%c0_283, %c112_284] : memref<16x288xf32, #tpu.memory_space<vmem>>, vector<16x128xf32>
    %c80_285 = arith.constant 80 : index
    %c0_286 = arith.constant 0 : index
    %474 = vector.load %arg8[%c80_285, %c0_286] : memref<110x128xf32, #tpu.memory_space<vmem>>, vector<1x128xf32>
    %475 = vector.broadcast %474 : vector<1x128xf32> to vector<16x128xf32>
    %476 = arith.mulf %473, %475 : vector<16x128xf32>
    %477 = arith.addf %472, %476 : vector<16x128xf32>
    %c0_287 = arith.constant 0 : index
    %c120_288 = arith.constant 120 : index
    %478 = vector.load %arg11[%c0_287, %c120_288] : memref<16x288xf32, #tpu.memory_space<vmem>>, vector<16x128xf32>
    %c81 = arith.constant 81 : index
    %c0_289 = arith.constant 0 : index
    %479 = vector.load %arg8[%c81, %c0_289] : memref<110x128xf32, #tpu.memory_space<vmem>>, vector<1x128xf32>
    %480 = vector.broadcast %479 : vector<1x128xf32> to vector<16x128xf32>
    %481 = arith.mulf %478, %480 : vector<16x128xf32>
    %482 = arith.addf %477, %481 : vector<16x128xf32>
    %c0_290 = arith.constant 0 : index
    %c128 = arith.constant 128 : index
    %483 = vector.load %arg11[%c0_290, %c128] : memref<16x288xf32, #tpu.memory_space<vmem>>, vector<16x128xf32>
    %c82 = arith.constant 82 : index
    %c0_291 = arith.constant 0 : index
    %484 = vector.load %arg8[%c82, %c0_291] : memref<110x128xf32, #tpu.memory_space<vmem>>, vector<1x128xf32>
    %485 = vector.broadcast %484 : vector<1x128xf32> to vector<16x128xf32>
    %486 = arith.mulf %483, %485 : vector<16x128xf32>
    %487 = arith.addf %482, %486 : vector<16x128xf32>
    %c0_292 = arith.constant 0 : index
    %c136 = arith.constant 136 : index
    %488 = vector.load %arg11[%c0_292, %c136] : memref<16x288xf32, #tpu.memory_space<vmem>>, vector<16x128xf32>
    %c83 = arith.constant 83 : index
    %c0_293 = arith.constant 0 : index
    %489 = vector.load %arg8[%c83, %c0_293] : memref<110x128xf32, #tpu.memory_space<vmem>>, vector<1x128xf32>
    %490 = vector.broadcast %489 : vector<1x128xf32> to vector<16x128xf32>
    %491 = arith.mulf %488, %490 : vector<16x128xf32>
    %492 = arith.addf %487, %491 : vector<16x128xf32>
    %c0_294 = arith.constant 0 : index
    %c144_295 = arith.constant 144 : index
    %493 = vector.load %arg11[%c0_294, %c144_295] : memref<16x288xf32, #tpu.memory_space<vmem>>, vector<16x128xf32>
    %c84 = arith.constant 84 : index
    %c0_296 = arith.constant 0 : index
    %494 = vector.load %arg8[%c84, %c0_296] : memref<110x128xf32, #tpu.memory_space<vmem>>, vector<1x128xf32>
    %495 = vector.broadcast %494 : vector<1x128xf32> to vector<16x128xf32>
    %496 = arith.mulf %493, %495 : vector<16x128xf32>
    %497 = arith.addf %492, %496 : vector<16x128xf32>
    %c0_297 = arith.constant 0 : index
    %c152 = arith.constant 152 : index
    %498 = vector.load %arg11[%c0_297, %c152] : memref<16x288xf32, #tpu.memory_space<vmem>>, vector<16x128xf32>
    %c85 = arith.constant 85 : index
    %c0_298 = arith.constant 0 : index
    %499 = vector.load %arg8[%c85, %c0_298] : memref<110x128xf32, #tpu.memory_space<vmem>>, vector<1x128xf32>
    %500 = vector.broadcast %499 : vector<1x128xf32> to vector<16x128xf32>
    %501 = arith.mulf %498, %500 : vector<16x128xf32>
    %502 = arith.addf %497, %501 : vector<16x128xf32>
    %c0_299 = arith.constant 0 : index
    %c160 = arith.constant 160 : index
    %503 = vector.load %arg11[%c0_299, %c160] : memref<16x288xf32, #tpu.memory_space<vmem>>, vector<16x128xf32>
    %c86 = arith.constant 86 : index
    %c0_300 = arith.constant 0 : index
    %504 = vector.load %arg8[%c86, %c0_300] : memref<110x128xf32, #tpu.memory_space<vmem>>, vector<1x128xf32>
    %505 = vector.broadcast %504 : vector<1x128xf32> to vector<16x128xf32>
    %506 = arith.mulf %503, %505 : vector<16x128xf32>
    %507 = arith.addf %502, %506 : vector<16x128xf32>
    %c87 = arith.constant 87 : index
    %c0_301 = arith.constant 0 : index
    %508 = vector.load %arg8[%c87, %c0_301] : memref<110x128xf32, #tpu.memory_space<vmem>>, vector<1x128xf32>
    %509 = vector.broadcast %508 : vector<1x128xf32> to vector<16x128xf32>
    %510 = arith.addf %507, %509 : vector<16x128xf32>
    %c10_302 = arith.constant 10 : index
    %c0_303 = arith.constant 0 : index
    %511 = vector.load %arg12[%c10_302, %c0_303] : memref<36x128xf32, #tpu.memory_space<vmem>>, vector<16x128xf32>
    tpu.vector_store %arg12[%c10_302, %c0_303], %510 {strides = array<i32>} : memref<36x128xf32, #tpu.memory_space<vmem>>, vector<16x128xf32>,
    %c0_304 = arith.constant 0 : index
    %c0_305 = arith.constant 0 : index
    %512 = vector.load %arg12[%c0_304, %c0_305] : memref<36x128xf32, #tpu.memory_space<vmem>>, vector<16x128xf32>
    %c88_306 = arith.constant 88 : index
    %c0_307 = arith.constant 0 : index
    %513 = vector.load %arg8[%c88_306, %c0_307] : memref<110x128xf32, #tpu.memory_space<vmem>>, vector<1x128xf32>
    %514 = vector.broadcast %513 : vector<1x128xf32> to vector<16x128xf32>
    %515 = arith.mulf %512, %514 : vector<16x128xf32>
    %c1_308 = arith.constant 1 : index
    %c0_309 = arith.constant 0 : index
    %516 = vector.load %arg12[%c1_308, %c0_309] : memref<36x128xf32, #tpu.memory_space<vmem>>, vector<16x128xf32>
    %c89 = arith.constant 89 : index
    %c0_310 = arith.constant 0 : index
    %517 = vector.load %arg8[%c89, %c0_310] : memref<110x128xf32, #tpu.memory_space<vmem>>, vector<1x128xf32>
    %518 = vector.broadcast %517 : vector<1x128xf32> to vector<16x128xf32>
    %519 = arith.mulf %516, %518 : vector<16x128xf32>
    %520 = arith.addf %515, %519 : vector<16x128xf32>
    %c2_311 = arith.constant 2 : index
    %c0_312 = arith.constant 0 : index
    %521 = vector.load %arg12[%c2_311, %c0_312] : memref<36x128xf32, #tpu.memory_space<vmem>>, vector<16x128xf32>
    %c90 = arith.constant 90 : index
    %c0_313 = arith.constant 0 : index
    %522 = vector.load %arg8[%c90, %c0_313] : memref<110x128xf32, #tpu.memory_space<vmem>>, vector<1x128xf32>
    %523 = vector.broadcast %522 : vector<1x128xf32> to vector<16x128xf32>
    %524 = arith.mulf %521, %523 : vector<16x128xf32>
    %525 = arith.addf %520, %524 : vector<16x128xf32>
    %c3_314 = arith.constant 3 : index
    %c0_315 = arith.constant 0 : index
    %526 = vector.load %arg12[%c3_314, %c0_315] : memref<36x128xf32, #tpu.memory_space<vmem>>, vector<16x128xf32>
    %c91 = arith.constant 91 : index
    %c0_316 = arith.constant 0 : index
    %527 = vector.load %arg8[%c91, %c0_316] : memref<110x128xf32, #tpu.memory_space<vmem>>, vector<1x128xf32>
    %528 = vector.broadcast %527 : vector<1x128xf32> to vector<16x128xf32>
    %529 = arith.mulf %526, %528 : vector<16x128xf32>
    %530 = arith.addf %525, %529 : vector<16x128xf32>
    %c4_317 = arith.constant 4 : index
    %c0_318 = arith.constant 0 : index
    %531 = vector.load %arg12[%c4_317, %c0_318] : memref<36x128xf32, #tpu.memory_space<vmem>>, vector<16x128xf32>
    %c92 = arith.constant 92 : index
    %c0_319 = arith.constant 0 : index
    %532 = vector.load %arg8[%c92, %c0_319] : memref<110x128xf32, #tpu.memory_space<vmem>>, vector<1x128xf32>
    %533 = vector.broadcast %532 : vector<1x128xf32> to vector<16x128xf32>
    %534 = arith.mulf %531, %533 : vector<16x128xf32>
    %535 = arith.addf %530, %534 : vector<16x128xf32>
    %c5_320 = arith.constant 5 : index
    %c0_321 = arith.constant 0 : index
    %536 = vector.load %arg12[%c5_320, %c0_321] : memref<36x128xf32, #tpu.memory_space<vmem>>, vector<16x128xf32>
    %c93 = arith.constant 93 : index
    %c0_322 = arith.constant 0 : index
    %537 = vector.load %arg8[%c93, %c0_322] : memref<110x128xf32, #tpu.memory_space<vmem>>, vector<1x128xf32>
    %538 = vector.broadcast %537 : vector<1x128xf32> to vector<16x128xf32>
    %539 = arith.mulf %536, %538 : vector<16x128xf32>
    %540 = arith.addf %535, %539 : vector<16x128xf32>
    %c6_323 = arith.constant 6 : index
    %c0_324 = arith.constant 0 : index
    %541 = vector.load %arg12[%c6_323, %c0_324] : memref<36x128xf32, #tpu.memory_space<vmem>>, vector<16x128xf32>
    %c94 = arith.constant 94 : index
    %c0_325 = arith.constant 0 : index
    %542 = vector.load %arg8[%c94, %c0_325] : memref<110x128xf32, #tpu.memory_space<vmem>>, vector<1x128xf32>
    %543 = vector.broadcast %542 : vector<1x128xf32> to vector<16x128xf32>
    %544 = arith.mulf %541, %543 : vector<16x128xf32>
    %545 = arith.addf %540, %544 : vector<16x128xf32>
    %c7_326 = arith.constant 7 : index
    %c0_327 = arith.constant 0 : index
    %546 = vector.load %arg12[%c7_326, %c0_327] : memref<36x128xf32, #tpu.memory_space<vmem>>, vector<16x128xf32>
    %c95 = arith.constant 95 : index
    %c0_328 = arith.constant 0 : index
    %547 = vector.load %arg8[%c95, %c0_328] : memref<110x128xf32, #tpu.memory_space<vmem>>, vector<1x128xf32>
    %548 = vector.broadcast %547 : vector<1x128xf32> to vector<16x128xf32>
    %549 = arith.mulf %546, %548 : vector<16x128xf32>
    %550 = arith.addf %545, %549 : vector<16x128xf32>
    %c8_329 = arith.constant 8 : index
    %c0_330 = arith.constant 0 : index
    %551 = vector.load %arg12[%c8_329, %c0_330] : memref<36x128xf32, #tpu.memory_space<vmem>>, vector<16x128xf32>
    %c96_331 = arith.constant 96 : index
    %c0_332 = arith.constant 0 : index
    %552 = vector.load %arg8[%c96_331, %c0_332] : memref<110x128xf32, #tpu.memory_space<vmem>>, vector<1x128xf32>
    %553 = vector.broadcast %552 : vector<1x128xf32> to vector<16x128xf32>
    %554 = arith.mulf %551, %553 : vector<16x128xf32>
    %555 = arith.addf %550, %554 : vector<16x128xf32>
    %c9_333 = arith.constant 9 : index
    %c0_334 = arith.constant 0 : index
    %556 = vector.load %arg12[%c9_333, %c0_334] : memref<36x128xf32, #tpu.memory_space<vmem>>, vector<16x128xf32>
    %c97 = arith.constant 97 : index
    %c0_335 = arith.constant 0 : index
    %557 = vector.load %arg8[%c97, %c0_335] : memref<110x128xf32, #tpu.memory_space<vmem>>, vector<1x128xf32>
    %558 = vector.broadcast %557 : vector<1x128xf32> to vector<16x128xf32>
    %559 = arith.mulf %556, %558 : vector<16x128xf32>
    %560 = arith.addf %555, %559 : vector<16x128xf32>
    %c10_336 = arith.constant 10 : index
    %c0_337 = arith.constant 0 : index
    %561 = vector.load %arg12[%c10_336, %c0_337] : memref<36x128xf32, #tpu.memory_space<vmem>>, vector<16x128xf32>
    %c98 = arith.constant 98 : index
    %c0_338 = arith.constant 0 : index
    %562 = vector.load %arg8[%c98, %c0_338] : memref<110x128xf32, #tpu.memory_space<vmem>>, vector<1x128xf32>
    %563 = vector.broadcast %562 : vector<1x128xf32> to vector<16x128xf32>
    %564 = arith.mulf %561, %563 : vector<16x128xf32>
    %565 = arith.addf %560, %564 : vector<16x128xf32>
    %c11_339 = arith.constant 11 : index
    %c0_340 = arith.constant 0 : index
    %566 = vector.load %arg12[%c11_339, %c0_340] : memref<36x128xf32, #tpu.memory_space<vmem>>, vector<16x128xf32>
    %c99 = arith.constant 99 : index
    %c0_341 = arith.constant 0 : index
    %567 = vector.load %arg8[%c99, %c0_341] : memref<110x128xf32, #tpu.memory_space<vmem>>, vector<1x128xf32>
    %568 = vector.broadcast %567 : vector<1x128xf32> to vector<16x128xf32>
    %569 = arith.mulf %566, %568 : vector<16x128xf32>
    %570 = arith.addf %565, %569 : vector<16x128xf32>
    %c12_342 = arith.constant 12 : index
    %c0_343 = arith.constant 0 : index
    %571 = vector.load %arg12[%c12_342, %c0_343] : memref<36x128xf32, #tpu.memory_space<vmem>>, vector<16x128xf32>
    %c100 = arith.constant 100 : index
    %c0_344 = arith.constant 0 : index
    %572 = vector.load %arg8[%c100, %c0_344] : memref<110x128xf32, #tpu.memory_space<vmem>>, vector<1x128xf32>
    %573 = vector.broadcast %572 : vector<1x128xf32> to vector<16x128xf32>
    %574 = arith.mulf %571, %573 : vector<16x128xf32>
    %575 = arith.addf %570, %574 : vector<16x128xf32>
    %c13_345 = arith.constant 13 : index
    %c0_346 = arith.constant 0 : index
    %576 = vector.load %arg12[%c13_345, %c0_346] : memref<36x128xf32, #tpu.memory_space<vmem>>, vector<16x128xf32>
    %c101 = arith.constant 101 : index
    %c0_347 = arith.constant 0 : index
    %577 = vector.load %arg8[%c101, %c0_347] : memref<110x128xf32, #tpu.memory_space<vmem>>, vector<1x128xf32>
    %578 = vector.broadcast %577 : vector<1x128xf32> to vector<16x128xf32>
    %579 = arith.mulf %576, %578 : vector<16x128xf32>
    %580 = arith.addf %575, %579 : vector<16x128xf32>
    %c14_348 = arith.constant 14 : index
    %c0_349 = arith.constant 0 : index
    %581 = vector.load %arg12[%c14_348, %c0_349] : memref<36x128xf32, #tpu.memory_space<vmem>>, vector<16x128xf32>
    %c102 = arith.constant 102 : index
    %c0_350 = arith.constant 0 : index
    %582 = vector.load %arg8[%c102, %c0_350] : memref<110x128xf32, #tpu.memory_space<vmem>>, vector<1x128xf32>
    %583 = vector.broadcast %582 : vector<1x128xf32> to vector<16x128xf32>
    %584 = arith.mulf %581, %583 : vector<16x128xf32>
    %585 = arith.addf %580, %584 : vector<16x128xf32>
    %c15_351 = arith.constant 15 : index
    %c0_352 = arith.constant 0 : index
    %586 = vector.load %arg12[%c15_351, %c0_352] : memref<36x128xf32, #tpu.memory_space<vmem>>, vector<16x128xf32>
    %c103 = arith.constant 103 : index
    %c0_353 = arith.constant 0 : index
    %587 = vector.load %arg8[%c103, %c0_353] : memref<110x128xf32, #tpu.memory_space<vmem>>, vector<1x128xf32>
    %588 = vector.broadcast %587 : vector<1x128xf32> to vector<16x128xf32>
    %589 = arith.mulf %586, %588 : vector<16x128xf32>
    %590 = arith.addf %585, %589 : vector<16x128xf32>
    %c16_354 = arith.constant 16 : index
    %c0_355 = arith.constant 0 : index
    %591 = vector.load %arg12[%c16_354, %c0_355] : memref<36x128xf32, #tpu.memory_space<vmem>>, vector<16x128xf32>
    %c104_356 = arith.constant 104 : index
    %c0_357 = arith.constant 0 : index
    %592 = vector.load %arg8[%c104_356, %c0_357] : memref<110x128xf32, #tpu.memory_space<vmem>>, vector<1x128xf32>
    %593 = vector.broadcast %592 : vector<1x128xf32> to vector<16x128xf32>
    %594 = arith.mulf %591, %593 : vector<16x128xf32>
    %595 = arith.addf %590, %594 : vector<16x128xf32>
    %c17_358 = arith.constant 17 : index
    %c0_359 = arith.constant 0 : index
    %596 = vector.load %arg12[%c17_358, %c0_359] : memref<36x128xf32, #tpu.memory_space<vmem>>, vector<16x128xf32>
    %c105 = arith.constant 105 : index
    %c0_360 = arith.constant 0 : index
    %597 = vector.load %arg8[%c105, %c0_360] : memref<110x128xf32, #tpu.memory_space<vmem>>, vector<1x128xf32>
    %598 = vector.broadcast %597 : vector<1x128xf32> to vector<16x128xf32>
    %599 = arith.mulf %596, %598 : vector<16x128xf32>
    %600 = arith.addf %595, %599 : vector<16x128xf32>
    %c18_361 = arith.constant 18 : index
    %c0_362 = arith.constant 0 : index
    %601 = vector.load %arg12[%c18_361, %c0_362] : memref<36x128xf32, #tpu.memory_space<vmem>>, vector<16x128xf32>
    %c106 = arith.constant 106 : index
    %c0_363 = arith.constant 0 : index
    %602 = vector.load %arg8[%c106, %c0_363] : memref<110x128xf32, #tpu.memory_space<vmem>>, vector<1x128xf32>
    %603 = vector.broadcast %602 : vector<1x128xf32> to vector<16x128xf32>
    %604 = arith.mulf %601, %603 : vector<16x128xf32>
    %605 = arith.addf %600, %604 : vector<16x128xf32>
    %c19_364 = arith.constant 19 : index
    %c0_365 = arith.constant 0 : index
    %606 = vector.load %arg12[%c19_364, %c0_365] : memref<36x128xf32, #tpu.memory_space<vmem>>, vector<16x128xf32>
    %c107 = arith.constant 107 : index
    %c0_366 = arith.constant 0 : index
    %607 = vector.load %arg8[%c107, %c0_366] : memref<110x128xf32, #tpu.memory_space<vmem>>, vector<1x128xf32>
    %608 = vector.broadcast %607 : vector<1x128xf32> to vector<16x128xf32>
    %609 = arith.mulf %606, %608 : vector<16x128xf32>
    %610 = arith.addf %605, %609 : vector<16x128xf32>
    %c20_367 = arith.constant 20 : index
    %c0_368 = arith.constant 0 : index
    %611 = vector.load %arg12[%c20_367, %c0_368] : memref<36x128xf32, #tpu.memory_space<vmem>>, vector<16x128xf32>
    %c108 = arith.constant 108 : index
    %c0_369 = arith.constant 0 : index
    %612 = vector.load %arg8[%c108, %c0_369] : memref<110x128xf32, #tpu.memory_space<vmem>>, vector<1x128xf32>
    %613 = vector.broadcast %612 : vector<1x128xf32> to vector<16x128xf32>
    %614 = arith.mulf %611, %613 : vector<16x128xf32>
    %615 = arith.addf %610, %614 : vector<16x128xf32>
    %616 = arith.addf %403, %615 : vector<16x128xf32>
    %c109 = arith.constant 109 : index
    %c0_370 = arith.constant 0 : index
    %617 = vector.load %arg8[%c109, %c0_370] : memref<110x128xf32, #tpu.memory_space<vmem>>, vector<1x128xf32>
    %618 = vector.broadcast %617 : vector<1x128xf32> to vector<16x128xf32>
    %619 = arith.addf %616, %618 : vector<16x128xf32>
    %cst_371 = arith.constant dense<0.000000e+00> : vector<16x128xf32>
    %620 = tpu.matmul %619, %0, %cst_371 {dimension_numbers = #tpu.dot_dimension_numbers<[1], [0], [0], [1], [0, 0, 1, 1], [], []>} : vector<16x128xf32>, vector<128x128xf32>, vector<16x128xf32> -> vector<16x128xf32>
    %621 = vector.broadcast %1 : vector<1x128xf32> to vector<16x128xf32>
    %622 = arith.addf %620, %621 : vector<16x128xf32>
    %623 = arith.mulf %622, %66 : vector<16x128xf32>
    %cst_372 = arith.constant dense<0.000000e+00> : vector<16x128xf32>
    %624 = tpu.matmul %623, %0, %cst_372 {dimension_numbers = #tpu.dot_dimension_numbers<[1], [0], [0], [1], [0, 0, 1, 1], [], []>} : vector<16x128xf32>, vector<128x128xf32>, vector<16x128xf32> -> vector<16x128xf32>
    %625 = vector.broadcast %1 : vector<1x128xf32> to vector<16x128xf32>
    %626 = arith.addf %624, %625 : vector<16x128xf32>
    %c0_373 = arith.constant 0 : index
    %c0_374 = arith.constant 0 : index
    %c0_375 = arith.constant 0 : index
    %627 = vector.load %arg9[%c0_373, %c0_374, %c0_375] : memref<1x16x128xf32, #tpu.memory_space<vmem>>, vector<1x16x128xf32>
    %628 = vector.shape_cast %627 : vector<1x16x128xf32> to vector<16x128xf32>
    %629 = vector.shape_cast %626 : vector<16x128xf32> to vector<1x16x128xf32>
    tpu.vector_store %arg9[%c0_373, %c0_374, %c0_375], %629 {strides = array<i32>} : memref<1x16x128xf32, #tpu.memory_space<vmem>>, vector<1x16x128xf32>,
    return
  }
  func.func @transform_0(%arg0: i32) -> (i32, i32, i32) {
    %c0_i32 = arith.constant 0 : i32
    %c0_i32_0 = arith.constant 0 : i32
    %c0_i32_1 = arith.constant 0 : i32
    return %arg0, %c0_i32, %c0_i32_0 : i32, i32, i32
  }
  func.func @transform_1(%arg0: i32) -> (i32, i32) {
    %c0_i32 = arith.constant 0 : i32
    %c0_i32_0 = arith.constant 0 : i32
    %c0_i32_1 = arith.constant 0 : i32
    return %c0_i32, %c0_i32_0 : i32, i32
  }
  func.func @transform_2(%arg0: i32) -> (i32, i32) {
    %c0_i32 = arith.constant 0 : i32
    %c0_i32_0 = arith.constant 0 : i32
    %c0_i32_1 = arith.constant 0 : i32
    return %c0_i32, %c0_i32_0 : i32, i32
  }
  func.func @transform_3(%arg0: i32) -> (i32, i32) {
    %c0_i32 = arith.constant 0 : i32
    %c0_i32_0 = arith.constant 0 : i32
    %c0_i32_1 = arith.constant 0 : i32
    return %c0_i32, %c0_i32_0 : i32, i32
  }
  func.func @transform_4(%arg0: i32) -> (i32, i32) {
    %c0_i32 = arith.constant 0 : i32
    %c0_i32_0 = arith.constant 0 : i32
    %c0_i32_1 = arith.constant 0 : i32
    return %c0_i32, %c0_i32_0 : i32, i32
  }
  func.func @transform_5(%arg0: i32) -> (i32, i32) {
    %c0_i32 = arith.constant 0 : i32
    %c0_i32_0 = arith.constant 0 : i32
    %c0_i32_1 = arith.constant 0 : i32
    return %c0_i32, %c0_i32_0 : i32, i32
  }
  func.func @transform_6(%arg0: i32) -> (i32, i32) {
    %c0_i32 = arith.constant 0 : i32
    %c0_i32_0 = arith.constant 0 : i32
    %c0_i32_1 = arith.constant 0 : i32
    return %c0_i32, %c0_i32_0 : i32, i32
  }
  func.func @transform_7(%arg0: i32) -> (i32, i32) {
    %c0_i32 = arith.constant 0 : i32
    %c0_i32_0 = arith.constant 0 : i32
    %c0_i32_1 = arith.constant 0 : i32
    return %c0_i32, %c0_i32_0 : i32, i32
  }
  func.func @transform_8(%arg0: i32) -> (i32, i32, i32) {
    %c0_i32 = arith.constant 0 : i32
    %c0_i32_0 = arith.constant 0 : i32
    %c0_i32_1 = arith.constant 0 : i32
    return %arg0, %c0_i32, %c0_i32_0 : i32, i32, i32
  }
}

</mosaic_0001>

<llo_original>
// kernel: cpca_forward.1
$region0: #{cpca_forward.1}
  #allocation0 [shape = 'u32[]', space=smem, size = 0x4, offset = 0x4, fixed_abs, tag = 'smem constant byte address 0x4 - core index']
  #allocation1 [shape = 'u32[144,128]{1,0:T(1,128)}', space=vmem, size = 0x12000, scoped, tag = 'internal scratch']
  #allocation2 [shape = 'f32[20,160]{1,0:T(8,128)}', space=vmem, size = 0x6000, scoped, tag = 'scratch operand']
  #allocation3 [shape = 'f32[16,288]{1,0:T(8,128)}', space=vmem, size = 0x6000, scoped, tag = 'scratch operand']
  #allocation4 [shape = 'f32[36,128]{1,0:T(8,128)}', space=vmem, size = 0x5000, scoped, tag = 'scratch operand']
  %s0 = inlined_call_operand.vmem [shape: f32[2,16,128], index: 0, kind: input, shape index: {}]
  %s1 = inlined_call_operand.vmem [shape: f32[128,128], index: 1, kind: input, shape index: {}]
  %s2 = inlined_call_operand.vmem [shape: f32[1,128], index: 2, kind: input, shape index: {}]
  %s3 = inlined_call_operand.vmem [shape: f32[128,32], index: 3, kind: input, shape index: {}]
  %s4 = inlined_call_operand.vmem [shape: f32[1,32], index: 4, kind: input, shape index: {}]
  %s5 = inlined_call_operand.vmem [shape: f32[32,128], index: 5, kind: input, shape index: {}]
  %s6 = inlined_call_operand.vmem [shape: f32[1,128], index: 6, kind: input, shape index: {}]
  %s7 = inlined_call_operand.vmem [shape: f32[110,128], index: 7, kind: input, shape index: {}]
  %s8 = inlined_call_operand.vmem [shape: f32[2,16,128], index: 8, kind: output, shape index: {}]
  %s9 = sld [smem:[#allocation0]]
  $region65: #{cpca_forward.1} parent=0
    _
  %s11 = ssub.s32 1, %s9
  %s12 = scalar_select 0, %s11, %s9
  loop: start=0, step=1, limit=4
  $region2: #{cpca_forward.1} parent=0 // loop_pre_header
    _
  $region3: #{cpca_forward.1} parent=0 // loop_header
    %s14 = sphi 0, %s18
    %p15 = scmp.ge.s32.totalorder %s14, 4
    %s24 = sphi 0, %s26
    %s27 = sphi 0, %s24
    %s28 = sphi 0, %s27
    %s44 = sphi 0, %s28
    %s48 = sphi 0, %s48
    %s50 = sphi 0, %s48
    %s51 = sphi 0, %s50
    %s65 = sphi 0, %s51
    %s69 = sphi 0, %s69
    %s71 = sphi 0, %s69
    %s72 = sphi 0, %s71
    %s86 = sphi 0, %s72
    %s90 = sphi 0, %s90
    %s92 = sphi 0, %s90
    %s93 = sphi 0, %s92
    %s107 = sphi 0, %s93
    %s111 = sphi 0, %s111
    %s113 = sphi 0, %s111
    %s114 = sphi 0, %s113
    %s128 = sphi 0, %s114
    %s132 = sphi 0, %s132
    %s134 = sphi 0, %s132
    %s135 = sphi 0, %s134
    %s149 = sphi 0, %s135
    %s153 = sphi 0, %s153
    %s155 = sphi 0, %s153
    %s156 = sphi 0, %s155
    %s170 = sphi 0, %s156
    %s174 = sphi 0, %s174
    %s176 = sphi 0, %s174
    %s177 = sphi 0, %s176
    %s191 = sphi 0, %s177
    %s197 = sphi 0, %s199
    %s200 = sphi 0, %s197
    %s201 = sphi 0, %s200
    %s217 = sphi 0, %s201
  $region4: #{cpca_forward.1} parent=0 // loop_header_branch
    %17 = sbr.rel (%p15) target = $region8
  $region5: #{cpca_forward.1} parent=0 // loop_body
    %s19 = ssub.s32 %s14, 1
    %s20 = ssub.s32 %s14, 2
    %s21 = sadd.s32 %s14, 1
    %s22 = ssub.s32 %s14, %s21
    %p23 = scmp.eq.s32.totalorder %s22, 0
    %s25 = sadd.s32 %s24, 1
    %s26 = scalar_select %p23, %s24, %s25
    %p29 = pneg %p23
    %p30 = scmp.eq.s32.totalorder %s14, 1
    %p31 = por %p29, %p30
    %p32 = scmp.ne.s32.totalorder %s24, %s27
    %p33 = scmp.eq.s32.totalorder %s14, 0
    %p34 = por %p32, %p33
    %p35 = scmp.ne.s32.totalorder %s24, %s27
    %p36 = scmp.eq.s32.totalorder %s19, 1
    %p37 = por %p35, %p36
    %p38 = scmp.ne.s32.totalorder %s27, %s28
    %p39 = scmp.eq.s32.totalorder %s19, 0
    %p40 = por %p38, %p39
    %p41 = scmp.ne.s32.totalorder %s27, %s28
    %p42 = scmp.eq.s32.totalorder %s20, 1
    %p43 = por %p41, %p42
    %p45 = scmp.ne.s32.totalorder %s28, %s44
    %p46 = scmp.eq.s32.totalorder %s20, 0
    %p47 = por %p45, %p46
    %s49 = sadd.s32 %s48, 1
    %p52 = scmp.eq.s32.totalorder %s14, 1
    %p53 = scmp.ne.s32.totalorder %s48, %s50
    %p54 = scmp.eq.s32.totalorder %s14, 0
    %p55 = por %p53, %p54
    %p56 = scmp.ne.s32.totalorder %s48, %s50
    %p57 = scmp.eq.s32.totalorder %s19, 1
    %p58 = por %p56, %p57
    %p59 = scmp.ne.s32.totalorder %s50, %s51
    %p60 = scmp.eq.s32.totalorder %s19, 0
    %p61 = por %p59, %p60
    %p62 = scmp.ne.s32.totalorder %s50, %s51
    %p63 = scmp.eq.s32.totalorder %s20, 1
    %p64 = por %p62, %p63
    %p66 = scmp.ne.s32.totalorder %s51, %s65
    %p67 = scmp.eq.s32.totalorder %s20, 0
    %p68 = por %p66, %p67
    %s70 = sadd.s32 %s69, 1
    %p73 = scmp.eq.s32.totalorder %s14, 1
    %p74 = scmp.ne.s32.totalorder %s69, %s71
    %p75 = scmp.eq.s32.totalorder %s14, 0
    %p76 = por %p74, %p75
    %p77 = scmp.ne.s32.totalorder %s69, %s71
    %p78 = scmp.eq.s32.totalorder %s19, 1
    %p79 = por %p77, %p78
    %p80 = scmp.ne.s32.totalorder %s71, %s72
    %p81 = scmp.eq.s32.totalorder %s19, 0
    %p82 = por %p80, %p81
    %p83 = scmp.ne.s32.totalorder %s71, %s72
    %p84 = scmp.eq.s32.totalorder %s20, 1
    %p85 = por %p83, %p84
    %p87 = scmp.ne.s32.totalorder %s72, %s86
    %p88 = scmp.eq.s32.totalorder %s20, 0
    %p89 = por %p87, %p88
    %s91 = sadd.s32 %s90, 1
    %p94 = scmp.eq.s32.totalorder %s14, 1
    %p95 = scmp.ne.s32.totalorder %s90, %s92
    %p96 = scmp.eq.s32.totalorder %s14, 0
    %p97 = por %p95, %p96
    %p98 = scmp.ne.s32.totalorder %s90, %s92
    %p99 = scmp.eq.s32.totalorder %s19, 1
    %p100 = por %p98, %p99
    %p101 = scmp.ne.s32.totalorder %s92, %s93
    %p102 = scmp.eq.s32.totalorder %s19, 0
    %p103 = por %p101, %p102
    %p104 = scmp.ne.s32.totalorder %s92, %s93
    %p105 = scmp.eq.s32.totalorder %s20, 1
    %p106 = por %p104, %p105
    %p108 = scmp.ne.s32.totalorder %s93, %s107
    %p109 = scmp.eq.s32.totalorder %s20, 0
    %p110 = por %p108, %p109
    %s112 = sadd.s32 %s111, 1
    %p115 = scmp.eq.s32.totalorder %s14, 1
    %p116 = scmp.ne.s32.totalorder %s111, %s113
    %p117 = scmp.eq.s32.totalorder %s14, 0
    %p118 = por %p116, %p117
    %p119 = scmp.ne.s32.totalorder %s111, %s113
    %p120 = scmp.eq.s32.totalorder %s19, 1
    %p121 = por %p119, %p120
    %p122 = scmp.ne.s32.totalorder %s113, %s114
    %p123 = scmp.eq.s32.totalorder %s19, 0
    %p124 = por %p122, %p123
    %p125 = scmp.ne.s32.totalorder %s113, %s114
    %p126 = scmp.eq.s32.totalorder %s20, 1
    %p127 = por %p125, %p126
    %p129 = scmp.ne.s32.totalorder %s114, %s128
    %p130 = scmp.eq.s32.totalorder %s20, 0
    %p131 = por %p129, %p130
    %s133 = sadd.s32 %s132, 1
    %p136 = scmp.eq.s32.totalorder %s14, 1
    %p137 = scmp.ne.s32.totalorder %s132, %s134
    %p138 = scmp.eq.s32.totalorder %s14, 0
    %p139 = por %p137, %p138
    %p140 = scmp.ne.s32.totalorder %s132, %s134
    %p141 = scmp.eq.s32.totalorder %s19, 1
    %p142 = por %p140, %p141
    %p143 = scmp.ne.s32.totalorder %s134, %s135
    %p144 = scmp.eq.s32.totalorder %s19, 0
    %p145 = por %p143, %p144
    %p146 = scmp.ne.s32.totalorder %s134, %s135
    %p147 = scmp.eq.s32.totalorder %s20, 1
    %p148 = por %p146, %p147
    %p150 = scmp.ne.s32.totalorder %s135, %s149
    %p151 = scmp.eq.s32.totalorder %s20, 0
    %p152 = por %p150, %p151
    %s154 = sadd.s32 %s153, 1
    %p157 = scmp.eq.s32.totalorder %s14, 1
    %p158 = scmp.ne.s32.totalorder %s153, %s155
    %p159 = scmp.eq.s32.totalorder %s14, 0
    %p160 = por %p158, %p159
    %p161 = scmp.ne.s32.totalorder %s153, %s155
    %p162 = scmp.eq.s32.totalorder %s19, 1
    %p163 = por %p161, %p162
    %p164 = scmp.ne.s32.totalorder %s155, %s156
    %p165 = scmp.eq.s32.totalorder %s19, 0
    %p166 = por %p164, %p165
    %p167 = scmp.ne.s32.totalorder %s155, %s156
    %p168 = scmp.eq.s32.totalorder %s20, 1
    %p169 = por %p167, %p168
    %p171 = scmp.ne.s32.totalorder %s156, %s170
    %p172 = scmp.eq.s32.totalorder %s20, 0
    %p173 = por %p171, %p172
    %s175 = sadd.s32 %s174, 1
    %p178 = scmp.eq.s32.totalorder %s14, 1
    %p179 = scmp.ne.s32.totalorder %s174, %s176
    %p180 = scmp.eq.s32.totalorder %s14, 0
    %p181 = por %p179, %p180
    %p182 = scmp.ne.s32.totalorder %s174, %s176
    %p183 = scmp.eq.s32.totalorder %s19, 1
    %p184 = por %p182, %p183
    %p185 = scmp.ne.s32.totalorder %s176, %s177
    %p186 = scmp.eq.s32.totalorder %s19, 0
    %p187 = por %p185, %p186
    %p188 = scmp.ne.s32.totalorder %s176, %s177
    %p189 = scmp.eq.s32.totalorder %s20, 1
    %p190 = por %p188, %p189
    %p192 = scmp.ne.s32.totalorder %s177, %s191
    %p193 = scmp.eq.s32.totalorder %s20, 0
    %p194 = por %p192, %p193
    %s195 = ssub.s32 %s14, %s21
    %p196 = scmp.eq.s32.totalorder %s195, 0
    %s198 = sadd.s32 %s197, 1
    %s199 = scalar_select %p196, %s197, %s198
    %p202 = pneg %p196
    %p203 = scmp.eq.s32.totalorder %s14, 1
    %p204 = por %p202, %p203
    %p205 = scmp.ne.s32.totalorder %s197, %s200
    %p206 = scmp.eq.s32.totalorder %s14, 0
    %p207 = por %p205, %p206
    %p208 = scmp.ne.s32.totalorder %s197, %s200
    %p209 = scmp.eq.s32.totalorder %s19, 1
    %p210 = por %p208, %p209
    %p211 = scmp.ne.s32.totalorder %s200, %s201
    %p212 = scmp.eq.s32.totalorder %s19, 0
    %p213 = por %p211, %p212
    %p214 = scmp.ne.s32.totalorder %s200, %s201
    %p215 = scmp.eq.s32.totalorder %s20, 1
    %p216 = por %p214, %p215
    %p218 = scmp.ne.s32.totalorder %s201, %s217
    %p219 = scmp.eq.s32.totalorder %s20, 0
    %p220 = por %p218, %p219
    %p221 = scmp.le.s32.totalorder 1, %s14
    %p222 = scmp.lt.s32.totalorder %s14, 3
    %p223 = pnand %p221, %p222
    %p224 = pneg %p223
    // Predicated region
    $region9: #{cpca_forward.1} parent=5 // pred_check
      _
    $region10: #{cpca_forward.1} parent=5 // pred_check_branch
      %226 = sbr.rel (%p223) target = $region12
    $region11: #{cpca_forward.1} parent=5 // pred_region
      %s227 = ssub.s32 %s14, 1
      // Predicated region
      $region13: #{cpca_forward.1} parent=11 // pred_check
        %p228 = pneg %p61
      $region14: #{cpca_forward.1} parent=11 // pred_check_branch
        %230 = sbr.rel (%p228) target = $region16
      $region15: #{cpca_forward.1} parent=11 // pred_region
        _
      $region16: #{cpca_forward.1} parent=11 // pred_fallthru
        _
      // Predicated region
      $region17: #{cpca_forward.1} parent=11 // pred_check
        %p231 = pneg %p82
      $region18: #{cpca_forward.1} parent=11 // pred_check_branch
        %233 = sbr.rel (%p231) target = $region20
      $region19: #{cpca_forward.1} parent=11 // pred_region
        _
      $region20: #{cpca_forward.1} parent=11 // pred_fallthru
        _
      // Predicated region
      $region21: #{cpca_forward.1} parent=11 // pred_check
        %p234 = pneg %p103
      $region22: #{cpca_forward.1} parent=11 // pred_check_branch
        %236 = sbr.rel (%p234) target = $region24
      $region23: #{cpca_forward.1} parent=11 // pred_region
        _
      $region24: #{cpca_forward.1} parent=11 // pred_fallthru
        _
      // Predicated region
      $region25: #{cpca_forward.1} parent=11 // pred_check
        %p237 = pneg %p124
      $region26: #{cpca_forward.1} parent=11 // pred_check_branch
        %239 = sbr.rel (%p237) target = $region28
      $region27: #{cpca_forward.1} parent=11 // pred_region
        _
      $region28: #{cpca_forward.1} parent=11 // pred_fallthru
        _
      // Predicated region
      $region29: #{cpca_forward.1} parent=11 // pred_check
        %p240 = pneg %p145
      $region30: #{cpca_forward.1} parent=11 // pred_check_branch
        %242 = sbr.rel (%p240) target = $region32
      $region31: #{cpca_forward.1} parent=11 // pred_region
        _
      $region32: #{cpca_forward.1} parent=11 // pred_fallthru
        _
      // Predicated region
      $region33: #{cpca_forward.1} parent=11 // pred_check
        %p243 = pneg %p166
      $region34: #{cpca_forward.1} parent=11 // pred_check_branch
        %245 = sbr.rel (%p243) target = $region36
      $region35: #{cpca_forward.1} parent=11 // pred_region
        _
      $region36: #{cpca_forward.1} parent=11 // pred_fallthru
        _
      // Predicated region
      $region37: #{cpca_forward.1} parent=11 // pred_check
        %p246 = pneg %p187
      $region38: #{cpca_forward.1} parent=11 // pred_check_branch
        %248 = sbr.rel (%p246) target = $region40
      $region39: #{cpca_forward.1} parent=11 // pred_region
        _
      $region40: #{cpca_forward.1} parent=11 // pred_fallthru
        _
    $region12: #{cpca_forward.1} parent=5 // pred_fallthru
      _
    %p249 = scmp.lt.s32.totalorder %s14, 2
    // Predicated region
    $region41: #{cpca_forward.1} parent=5 // pred_check
      %p250 = pneg %p249
    $region42: #{cpca_forward.1} parent=5 // pred_check_branch
      %252 = sbr.rel (%p250) target = $region44
    $region43: #{cpca_forward.1} parent=5 // pred_region
      // Predicated region
      $region45: #{cpca_forward.1} parent=43 // pred_check
        %p253 = pneg %p34
      $region46: #{cpca_forward.1} parent=43 // pred_check_branch
        %255 = sbr.rel (%p253) target = $region48
      $region47: #{cpca_forward.1} parent=43 // pred_region
        %p256 = scmp.lt.s32.totalorder %s14, 1
        %s257 = scalar_select %p256, %s14, 1
        %s258 = smul.addr %s257, 2
        %s259 = smul.addr %s258, 8
        %s260 = scalar_lea.vmem %s0, %s259
      $region48: #{cpca_forward.1} parent=43 // pred_fallthru
        _
    $region44: #{cpca_forward.1} parent=5 // pred_fallthru
      _
    %p261 = scmp.le.s32.totalorder 1, %s14
    %p262 = scmp.lt.s32.totalorder %s14, 3
    %p263 = pnand %p261, %p262
    %p264 = pneg %p263
    // Predicated region
    $region49: #{cpca_forward.1} parent=5 // pred_check
      _
    $region50: #{cpca_forward.1} parent=5 // pred_check_branch
      %266 = sbr.rel (%p263) target = $region52
    $region51: #{cpca_forward.1} parent=5 // pred_region
      %s267 = ssub.s32 %s14, 1
      %p268 = scmp.lt.s32.totalorder %s19, 1
      %s269 = scalar_select %p268, %s19, 1
      %s270 = smul.addr %s269, 2
      %s271 = smul.addr %s270, 8
      %s272 = scalar_lea.vmem %s0, %s271
      %p273 = pneg %p40
      %p274 = pneg %p37
      %p275 = pneg %p61
      %p276 = pneg %p58
      %p277 = pneg %p82
      %p278 = pneg %p79
      %p279 = pneg %p103
      %p280 = pneg %p100
      %p281 = pneg %p124
      %p282 = pneg %p121
      %p283 = pneg %p145
      %p284 = pneg %p142
      %p285 = pneg %p166
      %p286 = pneg %p163
      %p287 = pneg %p187
      %p288 = pneg %p184
      %p289 = pneg %p213
      %p290 = pneg %p210
      %p291 = scmp.lt.s32.totalorder %s19, 1
      %s292 = scalar_select %p291, %s19, 1
      %s293 = smul.addr %s292, 2
      %s294 = smul.addr %s293, 8
      %s295 = scalar_lea.vmem %s8, %s294
      %p296 = scmp.lt.s32.totalorder %s19, 1
      %s297 = scalar_select %p296, %s19, 1
      %s298 = smul.addr %s297, 2
      %s299 = smul.addr %s298, 8
      %s300 = scalar_lea.vmem %s0, %s299
      %p301 = scmp.lt.s32.totalorder %s19, 1
      %s302 = scalar_select %p301, %s19, 1
      %s303 = smul.addr %s302, 2
      %s304 = smul.addr %s303, 8
      %s305 = scalar_lea.vmem %s8, %s304
      %v306 = vld [vmem:[%s1] sm:$0xff]
      %v307 = vld [vmem:[%s1 + $0x8] sm:$0xff]
      %v308 = vld [vmem:[%s1 + $0x10] sm:$0xff]
      %v309 = vld [vmem:[%s1 + $0x18] sm:$0xff]
      %v310 = vld [vmem:[%s1 + $0x20] sm:$0xff]
      %v311 = vld [vmem:[%s1 + $0x28] sm:$0xff]
      %v312 = vld [vmem:[%s1 + $0x30] sm:$0xff]
      %v313 = vld [vmem:[%s1 + $0x38] sm:$0xff]
      %v314 = vld [vmem:[%s1 + $0x40] sm:$0xff]
      %v315 = vld [vmem:[%s1 + $0x48] sm:$0xff]
      %v316 = vld [vmem:[%s1 + $0x50] sm:$0xff]
      %v317 = vld [vmem:[%s1 + $0x58] sm:$0xff]
      %v318 = vld [vmem:[%s1 + $0x60] sm:$0xff]
      %v319 = vld [vmem:[%s1 + $0x68] sm:$0xff]
      %v320 = vld [vmem:[%s1 + $0x70] sm:$0xff]
      %v321 = vld [vmem:[%s1 + $0x78] sm:$0xff]
      %v322 = vld [vmem:[%s2] sm:$0x1]
      %v323 = vld [vmem:[%s300] sm:$0xff]
      %v324 = vld [vmem:[%s300 + $0x8] sm:$0xff]
      %v326 = vlaneseq
      %v327 = vshrl.u32 %v326, 7
      %v328 = vsub.s32 0, %v327
      %v329 = vrot.slane %v322, %v328
      %331 = vmatprep.subr.mxu0 0.0
      %332 = vmatpush1.msra.mxu0 %v306
      %333 = vmatprep.subr.mxu0 0.0
      %334 = vmatpush1.msra.mxu0 %v307
      %335 = vmatprep.subr.mxu0 0.0
      %336 = vmatpush1.msra.mxu0 %v308
      %337 = vmatprep.subr.mxu0 0.0
      %338 = vmatpush1.msra.mxu0 %v309
      %339 = vmatprep.subr.mxu0 0.0
      %340 = vmatpush1.msra.mxu0 %v310
      %341 = vmatprep.subr.mxu0 0.0
      %342 = vmatpush1.msra.mxu0 %v311
      %343 = vmatprep.subr.mxu0 0.0
      %344 = vmatpush1.msra.mxu0 %v312
      %345 = vmatprep.subr.mxu0 0.0
      %346 = vmatpush1.msra.mxu0 %v313
      %347 = vmatprep.subr.mxu0 0.0
      %348 = vmatpush1.msra.mxu0 %v314
      %349 = vmatprep.subr.mxu0 0.0
      %350 = vmatpush1.msra.mxu0 %v315
      %351 = vmatprep.subr.mxu0 0.0
      %352 = vmatpush1.msra.mxu0 %v316
      %353 = vmatprep.subr.mxu0 0.0
      %354 = vmatpush1.msra.mxu0 %v317
      %355 = vmatprep.subr.mxu0 0.0
      %356 = vmatpush1.msra.mxu0 %v318
      %357 = vmatprep.subr.mxu0 0.0
      %358 = vmatpush1.msra.mxu0 %v319
      %359 = vmatprep.subr.mxu0 0.0
      %360 = vmatpush1.msra.mxu0 %v320
      %361 = vmatprep.subr.mxu0 0.0
      %362 = vmatpush1.msra.mxu0 %v321
      %363 = vmatprep.subr.mxu0 0.0
      %364 = vmatpush1.msra.mxu0 0.0
      %365 = vmatprep.subr.mxu0 0.0
      %366 = vmatpush1.msra.mxu0 0.0
      %367 = vmatprep.subr.mxu0 0.0
      %368 = vmatpush1.msra.mxu0 0.0
      %369 = vmatprep.subr.mxu0 0.0
      %370 = vmatpush1.msra.mxu0 0.0
      %371 = vmatprep.subr.mxu0 0.0
      %372 = vmatpush1.msra.mxu0 0.0
      %373 = vmatprep.subr.mxu0 0.0
      %374 = vmatpush1.msra.mxu0 0.0
      %375 = vmatprep.subr.mxu0 0.0
      %376 = vmatpush1.msra.mxu0 0.0
      %377 = vmatprep.subr.mxu0 0.0
      %378 = vmatpush1.msra.mxu0 0.0
      %379 = vmatprep.subr.mxu0 0.0
      %380 = vmatpush1.msra.mxu0 0.0
      %381 = vmatprep.subr.mxu0 0.0
      %382 = vmatpush1.msra.mxu0 0.0
      %383 = vmatprep.subr.mxu0 0.0
      %384 = vmatpush1.msra.mxu0 0.0
      %385 = vmatprep.subr.mxu0 0.0
      %386 = vmatpush1.msra.mxu0 0.0
      %387 = vmatprep.subr.mxu0 0.0
      %388 = vmatpush1.msra.mxu0 0.0
      %389 = vmatprep.subr.mxu0 0.0
      %390 = vmatpush1.msra.mxu0 0.0
      %391 = vmatprep.subr.mxu0 0.0
      %392 = vmatpush1.msra.mxu0 0.0
      %393 = vmatprep.subr.mxu0 0.0
      %394 = vmatpush1.msra.mxu0 0.0
      %395 = vmatprep.mubr.f32.mxu0 0.0
      %396 = vmatmul.mubr.f32.gmra.mrb[0].mxu0 %v323
      %v397 = vpop.f32.mrb[0].mxu0
      %v398 = vadd.f32 %v329, %v397
      %v399 = vpop.f32.mrb[0].mxu0
      %400 = vmatprep.mubr.f32.mxu0 0.0
      %401 = vmatmul.mubr.f32.gmra.mrb[0].mxu0 %v324
      %v402 = vpop.f32.mrb[0].mxu0
      %v403 = vadd.f32 %v329, %v402
      %v404 = vpop.f32.mrb[0].mxu0
      %405 = vdwg.mxu0
      %v406 = vmul.f32 %v398, 0.5
      %v407 = vmul.f32 %v403, 0.5
      %v408 = vmul.f32 %v398, 0.70710677
      %v409 = vmul.f32 %v403, 0.70710677
      %v410 = verf.f32.pop %v408
      %v411 = verf.f32.pop %v409
      %v412 = vadd.f32 %v410, 1.0
      %v413 = vadd.f32 %v411, 1.0
      %v414 = vmul.f32 %v406, %v412
      %v415 = vmul.f32 %v407, %v413
      %v416 = vadd.f32 %v414, %v415
      %v417 = vrot.slane %v416, 4
      %v418 = vadd.f32 %v416, %v417
      %v419 = vrot.slane %v418, 2
      %v420 = vadd.f32 %v418, %v419
      %v421 = vrot.slane %v420, 1
      %v422 = vadd.f32 %v420, %v421
      %v423 = vmul.f32 %v422, 0.00390625
      %v424 = vmax.f32 %v414, %v415
      %v425 = vrot.slane %v424, 4
      %v426 = vmax.f32 %v424, %v425
      %v427 = vrot.slane %v426, 2
      %v428 = vmax.f32 %v426, %v427
      %v429 = vrot.slane %v428, 1
      %v430 = vmax.f32 %v428, %v429
      %431 = vrot.lane.b32.xlu0 %v423, 64
      %v432 = vpop.permute.xlu0 %431
      %v433 = vadd.f32 %v423, %v432
      %434 = vrot.lane.b32.xlu0 %v430, 64
      %v435 = vpop.permute.xlu0 %434
      %v436 = vmax.f32 %v430, %v435
      %437 = vrot.lane.b32.xlu0 %v433, 32
      %v438 = vpop.permute.xlu0 %437
      %v439 = vadd.f32 %v433, %v438
      %440 = vrot.lane.b32.xlu0 %v436, 32
      %v441 = vpop.permute.xlu0 %440
      %v442 = vmax.f32 %v436, %v441
      %443 = vrot.lane.b32.xlu0 %v439, 16
      %v444 = vpop.permute.xlu0 %443
      %v445 = vadd.f32 %v439, %v444
      %446 = vrot.lane.b32.xlu0 %v442, 16
      %v447 = vpop.permute.xlu0 %446
      %v448 = vmax.f32 %v442, %v447
      %449 = vrot.lane.b32.xlu0 %v445, 8
      %v450 = vpop.permute.xlu0 %449
      %v451 = vadd.f32 %v445, %v450
      %452 = vrot.lane.b32.xlu0 %v448, 8
      %v453 = vpop.permute.xlu0 %452
      %v454 = vmax.f32 %v448, %v453
      %v455 = vlaneseq
      %v456 = vshrl.u32 %v455, 7
      %vm457 = vcmp.eq.s32.totalorder %v456, 0
      %v458 = vlaneseq
      %v459 = vshrl.u32 %v458, 7
      %v460 = vsub.s32 0, %v459
      %v461 = vrot.slane %v451, %v460
      %v462 = vlaneseq
      %v463 = vshrl.u32 %v462, 7
      %v464 = vsub.s32 0, %v463
      %v465 = vrot.slane %v454, %v464
      %v466 = vsel %vm457, %v461, %v465
      %v467 = vld [vmem:[%s3] sm:$0xff]
      %v468 = vld [vmem:[%s3 + $0x8] sm:$0xff]
      %v469 = vld [vmem:[%s3 + $0x10] sm:$0xff]
      %v470 = vld [vmem:[%s3 + $0x18] sm:$0xff]
      %v471 = vld [vmem:[%s3 + $0x20] sm:$0xff]
      %v472 = vld [vmem:[%s3 + $0x28] sm:$0xff]
      %v473 = vld [vmem:[%s3 + $0x30] sm:$0xff]
      %v474 = vld [vmem:[%s3 + $0x38] sm:$0xff]
      %v475 = vld [vmem:[%s3 + $0x40] sm:$0xff]
      %v476 = vld [vmem:[%s3 + $0x48] sm:$0xff]
      %v477 = vld [vmem:[%s3 + $0x50] sm:$0xff]
      %v478 = vld [vmem:[%s3 + $0x58] sm:$0xff]
      %v479 = vld [vmem:[%s3 + $0x60] sm:$0xff]
      %v480 = vld [vmem:[%s3 + $0x68] sm:$0xff]
      %v481 = vld [vmem:[%s3 + $0x70] sm:$0xff]
      %v482 = vld [vmem:[%s3 + $0x78] sm:$0xff]
      %v483 = vld [vmem:[%s4] sm:$0x1]
      %v485 = vlaneseq
      %v486 = vshrl.u32 %v485, 7
      %v487 = vsub.s32 0, %v486
      %v488 = vrot.slane %v483, %v487
      %490 = vmatprep.subr.mxu0 0.0
      %491 = vmatpush1.msra.mxu0 %v467
      %492 = vmatprep.subr.mxu0 0.0
      %493 = vmatpush1.msra.mxu0 %v468
      %494 = vmatprep.subr.mxu0 0.0
      %495 = vmatpush1.msra.mxu0 %v469
      %496 = vmatprep.subr.mxu0 0.0
      %497 = vmatpush1.msra.mxu0 %v470
      %498 = vmatprep.subr.mxu0 0.0
      %499 = vmatpush1.msra.mxu0 %v471
      %500 = vmatprep.subr.mxu0 0.0
      %501 = vmatpush1.msra.mxu0 %v472
      %502 = vmatprep.subr.mxu0 0.0
      %503 = vmatpush1.msra.mxu0 %v473
      %504 = vmatprep.subr.mxu0 0.0
      %505 = vmatpush1.msra.mxu0 %v474
      %506 = vmatprep.subr.mxu0 0.0
      %507 = vmatpush1.msra.mxu0 %v475
      %508 = vmatprep.subr.mxu0 0.0
      %509 = vmatpush1.msra.mxu0 %v476
      %510 = vmatprep.subr.mxu0 0.0
      %511 = vmatpush1.msra.mxu0 %v477
      %512 = vmatprep.subr.mxu0 0.0
      %513 = vmatpush1.msra.mxu0 %v478
      %514 = vmatprep.subr.mxu0 0.0
      %515 = vmatpush1.msra.mxu0 %v479
      %516 = vmatprep.subr.mxu0 0.0
      %517 = vmatpush1.msra.mxu0 %v480
      %518 = vmatprep.subr.mxu0 0.0
      %519 = vmatpush1.msra.mxu0 %v481
      %520 = vmatprep.subr.mxu0 0.0
      %521 = vmatpush1.msra.mxu0 %v482
      %522 = vmatprep.subr.mxu0 0.0
      %523 = vmatpush1.msra.mxu0 0.0
      %524 = vmatprep.subr.mxu0 0.0
      %525 = vmatpush1.msra.mxu0 0.0
      %526 = vmatprep.subr.mxu0 0.0
      %527 = vmatpush1.msra.mxu0 0.0
      %528 = vmatprep.subr.mxu0 0.0
      %529 = vmatpush1.msra.mxu0 0.0
      %530 = vmatprep.subr.mxu0 0.0
      %531 = vmatpush1.msra.mxu0 0.0
      %532 = vmatprep.subr.mxu0 0.0
      %533 = vmatpush1.msra.mxu0 0.0
      %534 = vmatprep.subr.mxu0 0.0
      %535 = vmatpush1.msra.mxu0 0.0
      %536 = vmatprep.subr.mxu0 0.0
      %537 = vmatpush1.msra.mxu0 0.0
      %538 = vmatprep.subr.mxu0 0.0
      %539 = vmatpush1.msra.mxu0 0.0
      %540 = vmatprep.subr.mxu0 0.0
      %541 = vmatpush1.msra.mxu0 0.0
      %542 = vmatprep.subr.mxu0 0.0
      %543 = vmatpush1.msra.mxu0 0.0
      %544 = vmatprep.subr.mxu0 0.0
      %545 = vmatpush1.msra.mxu0 0.0
      %546 = vmatprep.subr.mxu0 0.0
      %547 = vmatpush1.msra.mxu0 0.0
      %548 = vmatprep.subr.mxu0 0.0
      %549 = vmatpush1.msra.mxu0 0.0
      %550 = vmatprep.subr.mxu0 0.0
      %551 = vmatpush1.msra.mxu0 0.0
      %552 = vmatprep.subr.mxu0 0.0
      %553 = vmatpush1.msra.mxu0 0.0
      %554 = vmatprep.mubr.f32.mxu0 0.0
      %555 = vmatmul.mubr.f32.gmra.mrb[0].mxu0 %v466
      %v556 = vpop.f32.mrb[0].mxu0
      %v557 = vadd.f32 %v488, %v556
      %v558 = vpop.f32.mrb[0].mxu0
      %559 = vdwg.mxu0
      %v560 = vmax.f32 %v557, 0.0
      %v561 = vld [vmem:[%s5] sm:$0xff]
      %v562 = vld [vmem:[%s5 + $0x8] sm:$0xff]
      %v563 = vld [vmem:[%s5 + $0x10] sm:$0xff]
      %v564 = vld [vmem:[%s5 + $0x18] sm:$0xff]
      %v565 = vld [vmem:[%s6] sm:$0x1]
      %v567 = vlaneseq
      %v568 = vshrl.u32 %v567, 7
      %v569 = vsub.s32 0, %v568
      %v570 = vrot.slane %v565, %v569
      %vm572 = vcmask 261120
      %v574 = vsel %vm572, %v560, 0
      %576 = vmatprep.subr.mxu0 0.0
      %577 = vmatpush1.msra.mxu0 %v561
      %578 = vmatprep.subr.mxu0 0.0
      %579 = vmatpush1.msra.mxu0 %v562
      %580 = vmatprep.subr.mxu0 0.0
      %581 = vmatpush1.msra.mxu0 %v563
      %582 = vmatprep.subr.mxu0 0.0
      %583 = vmatpush1.msra.mxu0 %v564
      %584 = vmatprep.subr.mxu0 0.0
      %585 = vmatpush1.msra.mxu0 0.0
      %586 = vmatprep.subr.mxu0 0.0
      %587 = vmatpush1.msra.mxu0 0.0
      %588 = vmatprep.subr.mxu0 0.0
      %589 = vmatpush1.msra.mxu0 0.0
      %590 = vmatprep.subr.mxu0 0.0
      %591 = vmatpush1.msra.mxu0 0.0
      %592 = vmatprep.subr.mxu0 0.0
      %593 = vmatpush1.msra.mxu0 0.0
      %594 = vmatprep.subr.mxu0 0.0
      %595 = vmatpush1.msra.mxu0 0.0
      %596 = vmatprep.subr.mxu0 0.0
      %597 = vmatpush1.msra.mxu0 0.0
      %598 = vmatprep.subr.mxu0 0.0
      %599 = vmatpush1.msra.mxu0 0.0
      %600 = vmatprep.subr.mxu0 0.0
      %601 = vmatpush1.msra.mxu0 0.0
      %602 = vmatprep.subr.mxu0 0.0
      %603 = vmatpush1.msra.mxu0 0.0
      %604 = vmatprep.subr.mxu0 0.0
      %605 = vmatpush1.msra.mxu0 0.0
      %606 = vmatprep.subr.mxu0 0.0
      %607 = vmatpush1.msra.mxu0 0.0
      %608 = vmatprep.subr.mxu0 0.0
      %609 = vmatpush1.msra.mxu0 0.0
      %610 = vmatprep.subr.mxu0 0.0
      %611 = vmatpush1.msra.mxu0 0.0
      %612 = vmatprep.subr.mxu0 0.0
      %613 = vmatpush1.msra.mxu0 0.0
      %614 = vmatprep.subr.mxu0 0.0
      %615 = vmatpush1.msra.mxu0 0.0
      %616 = vmatprep.subr.mxu0 0.0
      %617 = vmatpush1.msra.mxu0 0.0
      %618 = vmatprep.subr.mxu0 0.0
      %619 = vmatpush1.msra.mxu0 0.0
      %620 = vmatprep.subr.mxu0 0.0
      %621 = vmatpush1.msra.mxu0 0.0
      %622 = vmatprep.subr.mxu0 0.0
      %623 = vmatpush1.msra.mxu0 0.0
      %624 = vmatprep.subr.mxu0 0.0
      %625 = vmatpush1.msra.mxu0 0.0
      %626 = vmatprep.subr.mxu0 0.0
      %627 = vmatpush1.msra.mxu0 0.0
      %628 = vmatprep.subr.mxu0 0.0
      %629 = vmatpush1.msra.mxu0 0.0
      %630 = vmatprep.subr.mxu0 0.0
      %631 = vmatpush1.msra.mxu0 0.0
      %632 = vmatprep.subr.mxu0 0.0
      %633 = vmatpush1.msra.mxu0 0.0
      %634 = vmatprep.subr.mxu0 0.0
      %635 = vmatpush1.msra.mxu0 0.0
      %636 = vmatprep.subr.mxu0 0.0
      %637 = vmatpush1.msra.mxu0 0.0
      %638 = vmatprep.subr.mxu0 0.0
      %639 = vmatpush1.msra.mxu0 0.0
      %640 = vmatprep.mubr.f32.mxu0 0.0
      %641 = vmatmul.mubr.f32.gmra.mrb[0].mxu0 %v574
      %v642 = vpop.f32.mrb[0].mxu0
      %v643 = vadd.f32 %v570, %v642
      %v644 = vpop.f32.mrb[0].mxu0
      %645 = vdwg.mxu0
      %v646 = vxor.u32 %v643, 2147483648
      %v647 = vmul.f32 %v646, 1.442695
      %v648 = vpow.pop %v647
      %v649 = vadd.f32 %v648, 1.0
      %v650 = vrcp.pop %v649
      %v651 = vmul.f32 1.0, %v650
      %v653 = vrot.slane %v651, 1
      %v655 = vadd.f32 %v651, %v653
      %v656 = vlaneseq
      %v657 = vshrl.u32 %v656, 7
      %v658 = vsub.s32 0, %v657
      %v659 = vrot.slane %v655, %v658
      %v660 = vmul.f32 %v414, %v659
      %v661 = vmul.f32 %v415, %v659
      %662 = vst [vmem:[#allocation2] sm:$0x3] 0.0
      %vm663 = vcmask 254976
      %664 = vst.msk [vmem:[#allocation2 + $0x8] sm:$0x3] %vm663, 0.0
      %665 = vst [vmem:[#allocation2 + $0x20] sm:$0xc] 0.0
      %vm666 = vcmask 257026
      %667 = vst.msk [vmem:[#allocation2 + $0x28] sm:$0xc] %vm666, 0.0
      %vm668 = vcmask 130050
      %669 = vst.msk [vmem:[#allocation2] sm:$0xfc] %vm668, 0.0
      %vm670 = vcmask 130048
      %671 = vst.msk [vmem:[#allocation2 + $0x10] sm:$0xff] %vm670, 0.0
      %vm672 = vcmask 123904
      %673 = vst.msk [vmem:[#allocation2 + $0x20] sm:$0x3] %vm672, 0.0
      %vm674 = vcmask 261250
      %675 = vst.msk [vmem:[#allocation2 + $0x8] sm:$0xfc] %vm674, 0.0
      %vm676 = vcmask 261248
      %677 = vst.msk [vmem:[#allocation2 + $0x18] sm:$0xff] %vm676, 0.0
      %vm678 = vcmask 255104
      %679 = vst.msk [vmem:[#allocation2 + $0x28] sm:$0x3] %vm678, 0.0
      %vm680 = vcmask 654336
      %681 = vst.msk [vmem:[#allocation3] sm:$0xff] %vm680, 0.0
      %682 = vst.msk [vmem:[#allocation3 + $0x18] sm:$0xff] %vm680, 0.0
      %vm683 = vcmask 1048192
      %684 = vst.msk [vmem:[#allocation3 + $0x8] sm:$0xff] %vm683, 0.0
      %685 = vst.msk [vmem:[#allocation3 + $0x10] sm:$0xff] %vm572, 0.0
      %686 = vst.msk [vmem:[#allocation3 + $0x20] sm:$0xff] %vm683, 0.0
      %687 = vst.msk [vmem:[#allocation3 + $0x28] sm:$0xff] %vm572, 0.0
      %688 = vst [vmem:[#allocation4] sm:$0xff] 0.0
      %689 = vst [vmem:[#allocation4 + $0x8] sm:$0x3] 0.0
      %690 = vst [vmem:[#allocation4 + $0x1a] sm:$0xff] 0.0
      %691 = vst [vmem:[#allocation4 + $0x22] sm:$0x3] 0.0
      %vm694 = vcmask 1041408
      %v695 = vrot.slane %v660, 6
      %v696 = vrot.slane %v661, 6
      %v697 = vsel %vm694, %v695, %v696
      %698 = vrot.lane.b32.xlu0 %v695, 16
      %v699 = vpop.permute.xlu0 %698
      %700 = vrot.lane.b32.xlu0 %v697, 16
      %v701 = vpop.permute.xlu0 %700
      %702 = vrot.lane.b32.xlu0 %v696, 16
      %v703 = vpop.permute.xlu0 %702
      %vm707 = vcmask 1047682
      %708 = vst.msk [vmem:[#allocation2] sm:$0xfc] %vm707, %v699
      %709 = vst.msk [vmem:[#allocation2 + $0x8] sm:$0xfc] %vm668, %v699
      %vm710 = vcmask 1047680
      %711 = vst.msk [vmem:[#allocation2 + $0x10] sm:$0xff] %vm710, %v701
      %712 = vst.msk [vmem:[#allocation2 + $0x18] sm:$0xff] %vm670, %v701
      %vm713 = vcmask 1041536
      %714 = vst.msk [vmem:[#allocation2 + $0x20] sm:$0x3] %vm713, %v703
      %715 = vst.msk [vmem:[#allocation2 + $0x28] sm:$0x3] %vm672, %v703
      %v716 = vld [vmem:[#allocation2] sm:$0xff]
      %v717 = vld [vmem:[#allocation2 + $0x10] sm:$0xff]
      %v718 = vld [vmem:[%s7] sm:$0x1]
      %v719 = vlaneseq
      %v720 = vshrl.u32 %v719, 7
      %v721 = vsub.s32 0, %v720
      %v722 = vrot.slane %v718, %v721
      %v723 = vmul.f32 %v716, %v722
      %v724 = vmul.f32 %v717, %v722
      %v725 = vld [vmem:[#allocation2 + $0x8] sm:$0xff]
      %v726 = vld [vmem:[#allocation2 + $0x18] sm:$0xff]
      %v727 = vld [vmem:[%s7 + $0x1] sm:$0x1]
      %v728 = vlaneseq
      %v729 = vshrl.u32 %v728, 7
      %v730 = vsub.s32 0, %v729
      %v731 = vrot.slane %v727, %v730
      %733 = vrot.lane.b32.xlu0 %v731, 8
      %v734 = vpop.permute.xlu0 %733
      %v736 = vmul.f32 %v716, %v734
      %v737 = vmul.f32 %v725, %v734
      %v738 = vmul.f32 %v717, %v734
      %v739 = vmul.f32 %v726, %v734
      %744 = vrot.lane.b32.xlu0 %v736, 120
      %v745 = vpop.permute.xlu0 %744
      %746 = vrot.lane.b32.xlu0 %v737, 120
      %v747 = vpop.permute.xlu0 %746
      %748 = vrot.lane.b32.xlu0 %v738, 120
      %v749 = vpop.permute.xlu0 %748
      %750 = vrot.lane.b32.xlu0 %v739, 120
      %v751 = vpop.permute.xlu0 %750
      %vm752 = vcmask 982016
      %v753 = vsel %vm752, %v745, %v747
      %v754 = vsel %vm752, %v749, %v751
      %v757 = vadd.f32 %v723, %v753
      %v758 = vadd.f32 %v724, %v754
      %v759 = vld [vmem:[%s7 + $0x2] sm:$0x1]
      %v760 = vlaneseq
      %v761 = vshrl.u32 %v760, 7
      %v762 = vsub.s32 0, %v761
      %v763 = vrot.slane %v759, %v762
      %765 = vrot.lane.b32.xlu0 %v763, 16
      %v766 = vpop.permute.xlu0 %765
      %v768 = vmul.f32 %v716, %v766
      %v769 = vmul.f32 %v725, %v766
      %v770 = vmul.f32 %v717, %v766
      %v771 = vmul.f32 %v726, %v766
      %776 = vrot.lane.b32.xlu0 %v768, 112
      %v777 = vpop.permute.xlu0 %776
      %778 = vrot.lane.b32.xlu0 %v769, 112
      %v779 = vpop.permute.xlu0 %778
      %780 = vrot.lane.b32.xlu0 %v770, 112
      %v781 = vpop.permute.xlu0 %780
      %782 = vrot.lane.b32.xlu0 %v771, 112
      %v783 = vpop.permute.xlu0 %782
      %vm784 = vcmask 916480
      %v785 = vsel %vm784, %v777, %v779
      %v786 = vsel %vm784, %v781, %v783
      %v789 = vadd.f32 %v757, %v785
      %v790 = vadd.f32 %v758, %v786
      %v791 = vld [vmem:[%s7 + $0x3] sm:$0x1]
      %v792 = vlaneseq
      %v793 = vshrl.u32 %v792, 7
      %v794 = vsub.s32 0, %v793
      %v795 = vrot.slane %v791, %v794
      %797 = vrot.lane.b32.xlu0 %v795, 24
      %v798 = vpop.permute.xlu0 %797
      %v800 = vmul.f32 %v716, %v798
      %v801 = vmul.f32 %v725, %v798
      %v802 = vmul.f32 %v717, %v798
      %v803 = vmul.f32 %v726, %v798
      %808 = vrot.lane.b32.xlu0 %v800, 104
      %v809 = vpop.permute.xlu0 %808
      %810 = vrot.lane.b32.xlu0 %v801, 104
      %v811 = vpop.permute.xlu0 %810
      %812 = vrot.lane.b32.xlu0 %v802, 104
      %v813 = vpop.permute.xlu0 %812
      %814 = vrot.lane.b32.xlu0 %v803, 104
      %v815 = vpop.permute.xlu0 %814
      %vm816 = vcmask 850944
      %v817 = vsel %vm816, %v809, %v811
      %v818 = vsel %vm816, %v813, %v815
      %v821 = vadd.f32 %v789, %v817
      %v822 = vadd.f32 %v790, %v818
      %v823 = vld [vmem:[%s7 + $0x4] sm:$0x1]
      %v824 = vlaneseq
      %v825 = vshrl.u32 %v824, 7
      %v826 = vsub.s32 0, %v825
      %v827 = vrot.slane %v823, %v826
      %829 = vrot.lane.b32.xlu0 %v827, 32
      %v830 = vpop.permute.xlu0 %829
      %v832 = vmul.f32 %v716, %v830
      %v833 = vmul.f32 %v725, %v830
      %v834 = vmul.f32 %v717, %v830
      %v835 = vmul.f32 %v726, %v830
      %840 = vrot.lane.b32.xlu0 %v832, 96
      %v841 = vpop.permute.xlu0 %840
      %842 = vrot.lane.b32.xlu0 %v833, 96
      %v843 = vpop.permute.xlu0 %842
      %844 = vrot.lane.b32.xlu0 %v834, 96
      %v845 = vpop.permute.xlu0 %844
      %846 = vrot.lane.b32.xlu0 %v835, 96
      %v847 = vpop.permute.xlu0 %846
      %vm848 = vcmask 785408
      %v849 = vsel %vm848, %v841, %v843
      %v850 = vsel %vm848, %v845, %v847
      %v853 = vadd.f32 %v821, %v849
      %v854 = vadd.f32 %v822, %v850
      %v855 = vld [vmem:[#allocation2] sm:$0xfe]
      %v856 = vld [vmem:[#allocation2 + $0x20] sm:$0x1]
      %v857 = vld [vmem:[%s7 + $0x5] sm:$0x1]
      %v858 = vlaneseq
      %v859 = vshrl.u32 %v858, 7
      %v860 = vsub.s32 0, %v859
      %v861 = vrot.slane %v857, %v860
      %v862 = vmul.f32 %v855, %v861
      %v863 = vmul.f32 %v717, %v861
      %v864 = vmul.f32 %v856, %v861
      %vm868 = vcmask 1046528
      %v869 = vrot.slane %v862, 1
      %v870 = vrot.slane %v863, 1
      %v871 = vsel %vm868, %v869, %v870
      %v872 = vrot.slane %v864, 1
      %v873 = vsel %vm868, %v870, %v872
      %v876 = vadd.f32 %v853, %v871
      %v877 = vadd.f32 %v854, %v873
      %v878 = vld [vmem:[#allocation2 + $0x8] sm:$0xfe]
      %v879 = vld [vmem:[#allocation2 + $0x28] sm:$0x1]
      %v880 = vld [vmem:[%s7 + $0x6] sm:$0x1]
      %v881 = vlaneseq
      %v882 = vshrl.u32 %v881, 7
      %v883 = vsub.s32 0, %v882
      %v884 = vrot.slane %v880, %v883
      %886 = vrot.lane.b32.xlu0 %v884, 8
      %v887 = vpop.permute.xlu0 %886
      %v889 = vmul.f32 %v855, %v887
      %v890 = vmul.f32 %v878, %v887
      %v891 = vmul.f32 %v717, %v887
      %v892 = vmul.f32 %v726, %v887
      %v893 = vmul.f32 %v856, %v887
      %v894 = vmul.f32 %v879, %v887
      %v901 = vrot.slane %v889, 1
      %v902 = vrot.slane %v891, 1
      %v903 = vsel %vm868, %v901, %v902
      %v904 = vrot.slane %v890, 1
      %v905 = vrot.slane %v892, 1
      %v906 = vsel %vm868, %v904, %v905
      %v907 = vrot.slane %v893, 1
      %v908 = vsel %vm868, %v902, %v907
      %v909 = vrot.slane %v894, 1
      %v910 = vsel %vm868, %v905, %v909
      %911 = vrot.lane.b32.xlu0 %v903, 120
      %v912 = vpop.permute.xlu0 %911
      %913 = vrot.lane.b32.xlu0 %v906, 120
      %v914 = vpop.permute.xlu0 %913
      %915 = vrot.lane.b32.xlu0 %v908, 120
      %v916 = vpop.permute.xlu0 %915
      %917 = vrot.lane.b32.xlu0 %v910, 120
      %v918 = vpop.permute.xlu0 %917
      %v919 = vsel %vm752, %v912, %v914
      %v920 = vsel %vm752, %v916, %v918
      %v923 = vadd.f32 %v876, %v919
      %v924 = vadd.f32 %v877, %v920
      %v925 = vld [vmem:[%s7 + $0x7] sm:$0x1]
      %v926 = vlaneseq
      %v927 = vshrl.u32 %v926, 7
      %v928 = vsub.s32 0, %v927
      %v929 = vrot.slane %v925, %v928
      %931 = vrot.lane.b32.xlu0 %v929, 16
      %v932 = vpop.permute.xlu0 %931
      %v934 = vmul.f32 %v855, %v932
      %v935 = vmul.f32 %v878, %v932
      %v936 = vmul.f32 %v717, %v932
      %v937 = vmul.f32 %v726, %v932
      %v938 = vmul.f32 %v856, %v932
      %v939 = vmul.f32 %v879, %v932
      %v946 = vrot.slane %v934, 1
      %v947 = vrot.slane %v936, 1
      %v948 = vsel %vm868, %v946, %v947
      %v949 = vrot.slane %v935, 1
      %v950 = vrot.slane %v937, 1
      %v951 = vsel %vm868, %v949, %v950
      %v952 = vrot.slane %v938, 1
      %v953 = vsel %vm868, %v947, %v952
      %v954 = vrot.slane %v939, 1
      %v955 = vsel %vm868, %v950, %v954
      %956 = vrot.lane.b32.xlu0 %v948, 112
      %v957 = vpop.permute.xlu0 %956
      %958 = vrot.lane.b32.xlu0 %v951, 112
      %v959 = vpop.permute.xlu0 %958
      %960 = vrot.lane.b32.xlu0 %v953, 112
      %v961 = vpop.permute.xlu0 %960
      %962 = vrot.lane.b32.xlu0 %v955, 112
      %v963 = vpop.permute.xlu0 %962
      %v964 = vsel %vm784, %v957, %v959
      %v965 = vsel %vm784, %v961, %v963
      %v968 = vadd.f32 %v923, %v964
      %v969 = vadd.f32 %v924, %v965
      %v970 = vld [vmem:[%s7 + $0x8] sm:$0x1]
      %v971 = vlaneseq
      %v972 = vshrl.u32 %v971, 7
      %v973 = vsub.s32 0, %v972
      %v974 = vrot.slane %v970, %v973
      %976 = vrot.lane.b32.xlu0 %v974, 24
      %v977 = vpop.permute.xlu0 %976
      %v979 = vmul.f32 %v855, %v977
      %v980 = vmul.f32 %v878, %v977
      %v981 = vmul.f32 %v717, %v977
      %v982 = vmul.f32 %v726, %v977
      %v983 = vmul.f32 %v856, %v977
      %v984 = vmul.f32 %v879, %v977
      %v991 = vrot.slane %v979, 1
      %v992 = vrot.slane %v981, 1
      %v993 = vsel %vm868, %v991, %v992
      %v994 = vrot.slane %v980, 1
      %v995 = vrot.slane %v982, 1
      %v996 = vsel %vm868, %v994, %v995
      %v997 = vrot.slane %v983, 1
      %v998 = vsel %vm868, %v992, %v997
      %v999 = vrot.slane %v984, 1
      %v1000 = vsel %vm868, %v995, %v999
      %1001 = vrot.lane.b32.xlu0 %v993, 104
      %v1002 = vpop.permute.xlu0 %1001
      %1003 = vrot.lane.b32.xlu0 %v996, 104
      %v1004 = vpop.permute.xlu0 %1003
      %1005 = vrot.lane.b32.xlu0 %v998, 104
      %v1006 = vpop.permute.xlu0 %1005
      %1007 = vrot.lane.b32.xlu0 %v1000, 104
      %v1008 = vpop.permute.xlu0 %1007
      %v1009 = vsel %vm816, %v1002, %v1004
      %v1010 = vsel %vm816, %v1006, %v1008
      %v1013 = vadd.f32 %v968, %v1009
      %v1014 = vadd.f32 %v969, %v1010
      %v1015 = vld [vmem:[%s7 + $0x9] sm:$0x1]
      %v1016 = vlaneseq
      %v1017 = vshrl.u32 %v1016, 7
      %v1018 = vsub.s32 0, %v1017
      %v1019 = vrot.slane %v1015, %v1018
      %1021 = vrot.lane.b32.xlu0 %v1019, 32
      %v1022 = vpop.permute.xlu0 %1021
      %v1024 = vmul.f32 %v855, %v1022
      %v1025 = vmul.f32 %v878, %v1022
      %v1026 = vmul.f32 %v717, %v1022
      %v1027 = vmul.f32 %v726, %v1022
      %v1028 = vmul.f32 %v856, %v1022
      %v1029 = vmul.f32 %v879, %v1022
      %v1036 = vrot.slane %v1024, 1
      %v1037 = vrot.slane %v1026, 1
      %v1038 = vsel %vm868, %v1036, %v1037
      %v1039 = vrot.slane %v1025, 1
      %v1040 = vrot.slane %v1027, 1
      %v1041 = vsel %vm868, %v1039, %v1040
      %v1042 = vrot.slane %v1028, 1
      %v1043 = vsel %vm868, %v1037, %v1042
      %v1044 = vrot.slane %v1029, 1
      %v1045 = vsel %vm868, %v1040, %v1044
      %1046 = vrot.lane.b32.xlu0 %v1038, 96
      %v1047 = vpop.permute.xlu0 %1046
      %1048 = vrot.lane.b32.xlu0 %v1041, 96
      %v1049 = vpop.permute.xlu0 %1048
      %1050 = vrot.lane.b32.xlu0 %v1043, 96
      %v1051 = vpop.permute.xlu0 %1050
      %1052 = vrot.lane.b32.xlu0 %v1045, 96
      %v1053 = vpop.permute.xlu0 %1052
      %v1054 = vsel %vm848, %v1047, %v1049
      %v1055 = vsel %vm848, %v1051, %v1053
      %v1058 = vadd.f32 %v1013, %v1054
      %v1059 = vadd.f32 %v1014, %v1055
      %v1060 = vld [vmem:[#allocation2] sm:$0xfc]
      %v1061 = vld [vmem:[#allocation2 + $0x20] sm:$0x3]
      %v1062 = vld [vmem:[%s7 + $0xa] sm:$0x1]
      %v1063 = vlaneseq
      %v1064 = vshrl.u32 %v1063, 7
      %v1065 = vsub.s32 0, %v1064
      %v1066 = vrot.slane %v1062, %v1065
      %v1067 = vmul.f32 %v1060, %v1066
      %v1068 = vmul.f32 %v717, %v1066
      %v1069 = vmul.f32 %v1061, %v1066
      %vm1073 = vcmask 1045504
      %v1074 = vrot.slane %v1067, 2
      %v1075 = vrot.slane %v1068, 2
      %v1076 = vsel %vm1073, %v1074, %v1075
      %v1077 = vrot.slane %v1069, 2
      %v1078 = vsel %vm1073, %v1075, %v1077
      %v1081 = vadd.f32 %v1058, %v1076
      %v1082 = vadd.f32 %v1059, %v1078
      %v1083 = vld [vmem:[#allocation2 + $0x8] sm:$0xfc]
      %v1084 = vld [vmem:[#allocation2 + $0x28] sm:$0x3]
      %v1085 = vld [vmem:[%s7 + $0xb] sm:$0x1]
      %v1086 = vlaneseq
      %v1087 = vshrl.u32 %v1086, 7
      %v1088 = vsub.s32 0, %v1087
      %v1089 = vrot.slane %v1085, %v1088
      %1091 = vrot.lane.b32.xlu0 %v1089, 8
      %v1092 = vpop.permute.xlu0 %1091
      %v1094 = vmul.f32 %v1060, %v1092
      %v1095 = vmul.f32 %v1083, %v1092
      %v1096 = vmul.f32 %v717, %v1092
      %v1097 = vmul.f32 %v726, %v1092
      %v1098 = vmul.f32 %v1061, %v1092
      %v1099 = vmul.f32 %v1084, %v1092
      %v1106 = vrot.slane %v1094, 2
      %v1107 = vrot.slane %v1096, 2
      %v1108 = vsel %vm1073, %v1106, %v1107
      %v1109 = vrot.slane %v1095, 2
      %v1110 = vrot.slane %v1097, 2
      %v1111 = vsel %vm1073, %v1109, %v1110
      %v1112 = vrot.slane %v1098, 2
      %v1113 = vsel %vm1073, %v1107, %v1112
      %v1114 = vrot.slane %v1099, 2
      %v1115 = vsel %vm1073, %v1110, %v1114
      %1116 = vrot.lane.b32.xlu0 %v1108, 120
      %v1117 = vpop.permute.xlu0 %1116
      %1118 = vrot.lane.b32.xlu0 %v1111, 120
      %v1119 = vpop.permute.xlu0 %1118
      %1120 = vrot.lane.b32.xlu0 %v1113, 120
      %v1121 = vpop.permute.xlu0 %1120
      %1122 = vrot.lane.b32.xlu0 %v1115, 120
      %v1123 = vpop.permute.xlu0 %1122
      %v1124 = vsel %vm752, %v1117, %v1119
      %v1125 = vsel %vm752, %v1121, %v1123
      %v1128 = vadd.f32 %v1081, %v1124
      %v1129 = vadd.f32 %v1082, %v1125
      %v1130 = vld [vmem:[%s7 + $0xc] sm:$0x1]
      %v1131 = vlaneseq
      %v1132 = vshrl.u32 %v1131, 7
      %v1133 = vsub.s32 0, %v1132
      %v1134 = vrot.slane %v1130, %v1133
      %1136 = vrot.lane.b32.xlu0 %v1134, 16
      %v1137 = vpop.permute.xlu0 %1136
      %v1139 = vmul.f32 %v1060, %v1137
      %v1140 = vmul.f32 %v1083, %v1137
      %v1141 = vmul.f32 %v717, %v1137
      %v1142 = vmul.f32 %v726, %v1137
      %v1143 = vmul.f32 %v1061, %v1137
      %v1144 = vmul.f32 %v1084, %v1137
      %v1151 = vrot.slane %v1139, 2
      %v1152 = vrot.slane %v1141, 2
      %v1153 = vsel %vm1073, %v1151, %v1152
      %v1154 = vrot.slane %v1140, 2
      %v1155 = vrot.slane %v1142, 2
      %v1156 = vsel %vm1073, %v1154, %v1155
      %v1157 = vrot.slane %v1143, 2
      %v1158 = vsel %vm1073, %v1152, %v1157
      %v1159 = vrot.slane %v1144, 2
      %v1160 = vsel %vm1073, %v1155, %v1159
      %1161 = vrot.lane.b32.xlu0 %v1153, 112
      %v1162 = vpop.permute.xlu0 %1161
      %1163 = vrot.lane.b32.xlu0 %v1156, 112
      %v1164 = vpop.permute.xlu0 %1163
      %1165 = vrot.lane.b32.xlu0 %v1158, 112
      %v1166 = vpop.permute.xlu0 %1165
      %1167 = vrot.lane.b32.xlu0 %v1160, 112
      %v1168 = vpop.permute.xlu0 %1167
      %v1169 = vsel %vm784, %v1162, %v1164
      %v1170 = vsel %vm784, %v1166, %v1168
      %v1173 = vadd.f32 %v1128, %v1169
      %v1174 = vadd.f32 %v1129, %v1170
      %v1175 = vld [vmem:[%s7 + $0xd] sm:$0x1]
      %v1176 = vlaneseq
      %v1177 = vshrl.u32 %v1176, 7
      %v1178 = vsub.s32 0, %v1177
      %v1179 = vrot.slane %v1175, %v1178
      %1181 = vrot.lane.b32.xlu0 %v1179, 24
      %v1182 = vpop.permute.xlu0 %1181
      %v1184 = vmul.f32 %v1060, %v1182
      %v1185 = vmul.f32 %v1083, %v1182
      %v1186 = vmul.f32 %v717, %v1182
      %v1187 = vmul.f32 %v726, %v1182
      %v1188 = vmul.f32 %v1061, %v1182
      %v1189 = vmul.f32 %v1084, %v1182
      %v1196 = vrot.slane %v1184, 2
      %v1197 = vrot.slane %v1186, 2
      %v1198 = vsel %vm1073, %v1196, %v1197
      %v1199 = vrot.slane %v1185, 2
      %v1200 = vrot.slane %v1187, 2
      %v1201 = vsel %vm1073, %v1199, %v1200
      %v1202 = vrot.slane %v1188, 2
      %v1203 = vsel %vm1073, %v1197, %v1202
      %v1204 = vrot.slane %v1189, 2
      %v1205 = vsel %vm1073, %v1200, %v1204
      %1206 = vrot.lane.b32.xlu0 %v1198, 104
      %v1207 = vpop.permute.xlu0 %1206
      %1208 = vrot.lane.b32.xlu0 %v1201, 104
      %v1209 = vpop.permute.xlu0 %1208
      %1210 = vrot.lane.b32.xlu0 %v1203, 104
      %v1211 = vpop.permute.xlu0 %1210
      %1212 = vrot.lane.b32.xlu0 %v1205, 104
      %v1213 = vpop.permute.xlu0 %1212
      %v1214 = vsel %vm816, %v1207, %v1209
      %v1215 = vsel %vm816, %v1211, %v1213
      %v1218 = vadd.f32 %v1173, %v1214
      %v1219 = vadd.f32 %v1174, %v1215
      %v1220 = vld [vmem:[%s7 + $0xe] sm:$0x1]
      %v1221 = vlaneseq
      %v1222 = vshrl.u32 %v1221, 7
      %v1223 = vsub.s32 0, %v1222
      %v1224 = vrot.slane %v1220, %v1223
      %1226 = vrot.lane.b32.xlu0 %v1224, 32
      %v1227 = vpop.permute.xlu0 %1226
      %v1229 = vmul.f32 %v1060, %v1227
      %v1230 = vmul.f32 %v1083, %v1227
      %v1231 = vmul.f32 %v717, %v1227
      %v1232 = vmul.f32 %v726, %v1227
      %v1233 = vmul.f32 %v1061, %v1227
      %v1234 = vmul.f32 %v1084, %v1227
      %v1241 = vrot.slane %v1229, 2
      %v1242 = vrot.slane %v1231, 2
      %v1243 = vsel %vm1073, %v1241, %v1242
      %v1244 = vrot.slane %v1230, 2
      %v1245 = vrot.slane %v1232, 2
      %v1246 = vsel %vm1073, %v1244, %v1245
      %v1247 = vrot.slane %v1233, 2
      %v1248 = vsel %vm1073, %v1242, %v1247
      %v1249 = vrot.slane %v1234, 2
      %v1250 = vsel %vm1073, %v1245, %v1249
      %1251 = vrot.lane.b32.xlu0 %v1243, 96
      %v1252 = vpop.permute.xlu0 %1251
      %1253 = vrot.lane.b32.xlu0 %v1246, 96
      %v1254 = vpop.permute.xlu0 %1253
      %1255 = vrot.lane.b32.xlu0 %v1248, 96
      %v1256 = vpop.permute.xlu0 %1255
      %1257 = vrot.lane.b32.xlu0 %v1250, 96
      %v1258 = vpop.permute.xlu0 %1257
      %v1259 = vsel %vm848, %v1252, %v1254
      %v1260 = vsel %vm848, %v1256, %v1258
      %v1263 = vadd.f32 %v1218, %v1259
      %v1264 = vadd.f32 %v1219, %v1260
      %v1265 = vld [vmem:[#allocation2] sm:$0xf8]
      %v1266 = vld [vmem:[#allocation2 + $0x20] sm:$0x7]
      %v1267 = vld [vmem:[%s7 + $0xf] sm:$0x1]
      %v1268 = vlaneseq
      %v1269 = vshrl.u32 %v1268, 7
      %v1270 = vsub.s32 0, %v1269
      %v1271 = vrot.slane %v1267, %v1270
      %v1272 = vmul.f32 %v1265, %v1271
      %v1273 = vmul.f32 %v717, %v1271
      %v1274 = vmul.f32 %v1266, %v1271
      %vm1278 = vcmask 1044480
      %v1279 = vrot.slane %v1272, 3
      %v1280 = vrot.slane %v1273, 3
      %v1281 = vsel %vm1278, %v1279, %v1280
      %v1282 = vrot.slane %v1274, 3
      %v1283 = vsel %vm1278, %v1280, %v1282
      %v1286 = vadd.f32 %v1263, %v1281
      %v1287 = vadd.f32 %v1264, %v1283
      %v1288 = vld [vmem:[#allocation2 + $0x8] sm:$0xf8]
      %v1289 = vld [vmem:[#allocation2 + $0x28] sm:$0x7]
      %v1290 = vld [vmem:[%s7 + $0x10] sm:$0x1]
      %v1291 = vlaneseq
      %v1292 = vshrl.u32 %v1291, 7
      %v1293 = vsub.s32 0, %v1292
      %v1294 = vrot.slane %v1290, %v1293
      %1296 = vrot.lane.b32.xlu0 %v1294, 8
      %v1297 = vpop.permute.xlu0 %1296
      %v1299 = vmul.f32 %v1265, %v1297
      %v1300 = vmul.f32 %v1288, %v1297
      %v1301 = vmul.f32 %v717, %v1297
      %v1302 = vmul.f32 %v726, %v1297
      %v1303 = vmul.f32 %v1266, %v1297
      %v1304 = vmul.f32 %v1289, %v1297
      %v1311 = vrot.slane %v1299, 3
      %v1312 = vrot.slane %v1301, 3
      %v1313 = vsel %vm1278, %v1311, %v1312
      %v1314 = vrot.slane %v1300, 3
      %v1315 = vrot.slane %v1302, 3
      %v1316 = vsel %vm1278, %v1314, %v1315
      %v1317 = vrot.slane %v1303, 3
      %v1318 = vsel %vm1278, %v1312, %v1317
      %v1319 = vrot.slane %v1304, 3
      %v1320 = vsel %vm1278, %v1315, %v1319
      %1321 = vrot.lane.b32.xlu0 %v1313, 120
      %v1322 = vpop.permute.xlu0 %1321
      %1323 = vrot.lane.b32.xlu0 %v1316, 120
      %v1324 = vpop.permute.xlu0 %1323
      %1325 = vrot.lane.b32.xlu0 %v1318, 120
      %v1326 = vpop.permute.xlu0 %1325
      %1327 = vrot.lane.b32.xlu0 %v1320, 120
      %v1328 = vpop.permute.xlu0 %1327
      %v1329 = vsel %vm752, %v1322, %v1324
      %v1330 = vsel %vm752, %v1326, %v1328
      %v1333 = vadd.f32 %v1286, %v1329
      %v1334 = vadd.f32 %v1287, %v1330
      %v1335 = vld [vmem:[%s7 + $0x11] sm:$0x1]
      %v1336 = vlaneseq
      %v1337 = vshrl.u32 %v1336, 7
      %v1338 = vsub.s32 0, %v1337
      %v1339 = vrot.slane %v1335, %v1338
      %1341 = vrot.lane.b32.xlu0 %v1339, 16
      %v1342 = vpop.permute.xlu0 %1341
      %v1344 = vmul.f32 %v1265, %v1342
      %v1345 = vmul.f32 %v1288, %v1342
      %v1346 = vmul.f32 %v717, %v1342
      %v1347 = vmul.f32 %v726, %v1342
      %v1348 = vmul.f32 %v1266, %v1342
      %v1349 = vmul.f32 %v1289, %v1342
      %v1356 = vrot.slane %v1344, 3
      %v1357 = vrot.slane %v1346, 3
      %v1358 = vsel %vm1278, %v1356, %v1357
      %v1359 = vrot.slane %v1345, 3
      %v1360 = vrot.slane %v1347, 3
      %v1361 = vsel %vm1278, %v1359, %v1360
      %v1362 = vrot.slane %v1348, 3
      %v1363 = vsel %vm1278, %v1357, %v1362
      %v1364 = vrot.slane %v1349, 3
      %v1365 = vsel %vm1278, %v1360, %v1364
      %1366 = vrot.lane.b32.xlu0 %v1358, 112
      %v1367 = vpop.permute.xlu0 %1366
      %1368 = vrot.lane.b32.xlu0 %v1361, 112
      %v1369 = vpop.permute.xlu0 %1368
      %1370 = vrot.lane.b32.xlu0 %v1363, 112
      %v1371 = vpop.permute.xlu0 %1370
      %1372 = vrot.lane.b32.xlu0 %v1365, 112
      %v1373 = vpop.permute.xlu0 %1372
      %v1374 = vsel %vm784, %v1367, %v1369
      %v1375 = vsel %vm784, %v1371, %v1373
      %v1378 = vadd.f32 %v1333, %v1374
      %v1379 = vadd.f32 %v1334, %v1375
      %v1380 = vld [vmem:[%s7 + $0x12] sm:$0x1]
      %v1381 = vlaneseq
      %v1382 = vshrl.u32 %v1381, 7
      %v1383 = vsub.s32 0, %v1382
      %v1384 = vrot.slane %v1380, %v1383
      %1386 = vrot.lane.b32.xlu0 %v1384, 24
      %v1387 = vpop.permute.xlu0 %1386
      %v1389 = vmul.f32 %v1265, %v1387
      %v1390 = vmul.f32 %v1288, %v1387
      %v1391 = vmul.f32 %v717, %v1387
      %v1392 = vmul.f32 %v726, %v1387
      %v1393 = vmul.f32 %v1266, %v1387
      %v1394 = vmul.f32 %v1289, %v1387
      %v1401 = vrot.slane %v1389, 3
      %v1402 = vrot.slane %v1391, 3
      %v1403 = vsel %vm1278, %v1401, %v1402
      %v1404 = vrot.slane %v1390, 3
      %v1405 = vrot.slane %v1392, 3
      %v1406 = vsel %vm1278, %v1404, %v1405
      %v1407 = vrot.slane %v1393, 3
      %v1408 = vsel %vm1278, %v1402, %v1407
      %v1409 = vrot.slane %v1394, 3
      %v1410 = vsel %vm1278, %v1405, %v1409
      %1411 = vrot.lane.b32.xlu0 %v1403, 104
      %v1412 = vpop.permute.xlu0 %1411
      %1413 = vrot.lane.b32.xlu0 %v1406, 104
      %v1414 = vpop.permute.xlu0 %1413
      %1415 = vrot.lane.b32.xlu0 %v1408, 104
      %v1416 = vpop.permute.xlu0 %1415
      %1417 = vrot.lane.b32.xlu0 %v1410, 104
      %v1418 = vpop.permute.xlu0 %1417
      %v1419 = vsel %vm816, %v1412, %v1414
      %v1420 = vsel %vm816, %v1416, %v1418
      %v1423 = vadd.f32 %v1378, %v1419
      %v1424 = vadd.f32 %v1379, %v1420
      %v1425 = vld [vmem:[%s7 + $0x13] sm:$0x1]
      %v1426 = vlaneseq
      %v1427 = vshrl.u32 %v1426, 7
      %v1428 = vsub.s32 0, %v1427
      %v1429 = vrot.slane %v1425, %v1428
      %1431 = vrot.lane.b32.xlu0 %v1429, 32
      %v1432 = vpop.permute.xlu0 %1431
      %v1434 = vmul.f32 %v1265, %v1432
      %v1435 = vmul.f32 %v1288, %v1432
      %v1436 = vmul.f32 %v717, %v1432
      %v1437 = vmul.f32 %v726, %v1432
      %v1438 = vmul.f32 %v1266, %v1432
      %v1439 = vmul.f32 %v1289, %v1432
      %v1446 = vrot.slane %v1434, 3
      %v1447 = vrot.slane %v1436, 3
      %v1448 = vsel %vm1278, %v1446, %v1447
      %v1449 = vrot.slane %v1435, 3
      %v1450 = vrot.slane %v1437, 3
      %v1451 = vsel %vm1278, %v1449, %v1450
      %v1452 = vrot.slane %v1438, 3
      %v1453 = vsel %vm1278, %v1447, %v1452
      %v1454 = vrot.slane %v1439, 3
      %v1455 = vsel %vm1278, %v1450, %v1454
      %1456 = vrot.lane.b32.xlu0 %v1448, 96
      %v1457 = vpop.permute.xlu0 %1456
      %1458 = vrot.lane.b32.xlu0 %v1451, 96
      %v1459 = vpop.permute.xlu0 %1458
      %1460 = vrot.lane.b32.xlu0 %v1453, 96
      %v1461 = vpop.permute.xlu0 %1460
      %1462 = vrot.lane.b32.xlu0 %v1455, 96
      %v1463 = vpop.permute.xlu0 %1462
      %v1464 = vsel %vm848, %v1457, %v1459
      %v1465 = vsel %vm848, %v1461, %v1463
      %v1468 = vadd.f32 %v1423, %v1464
      %v1469 = vadd.f32 %v1424, %v1465
      %v1470 = vld [vmem:[#allocation2] sm:$0xf0]
      %v1471 = vld [vmem:[#allocation2 + $0x20] sm:$0xf]
      %v1472 = vld [vmem:[%s7 + $0x14] sm:$0x1]
      %v1473 = vlaneseq
      %v1474 = vshrl.u32 %v1473, 7
      %v1475 = vsub.s32 0, %v1474
      %v1476 = vrot.slane %v1472, %v1475
      %v1477 = vmul.f32 %v1470, %v1476
      %v1478 = vmul.f32 %v717, %v1476
      %v1479 = vmul.f32 %v1471, %v1476
      %vm1483 = vcmask 1043456
      %v1484 = vrot.slane %v1477, 4
      %v1485 = vrot.slane %v1478, 4
      %v1486 = vsel %vm1483, %v1484, %v1485
      %v1487 = vrot.slane %v1479, 4
      %v1488 = vsel %vm1483, %v1485, %v1487
      %v1491 = vadd.f32 %v1468, %v1486
      %v1492 = vadd.f32 %v1469, %v1488
      %v1493 = vld [vmem:[#allocation2 + $0x8] sm:$0xf0]
      %v1494 = vld [vmem:[#allocation2 + $0x28] sm:$0xf]
      %v1495 = vld [vmem:[%s7 + $0x15] sm:$0x1]
      %v1496 = vlaneseq
      %v1497 = vshrl.u32 %v1496, 7
      %v1498 = vsub.s32 0, %v1497
      %v1499 = vrot.slane %v1495, %v1498
      %1501 = vrot.lane.b32.xlu0 %v1499, 8
      %v1502 = vpop.permute.xlu0 %1501
      %v1504 = vmul.f32 %v1470, %v1502
      %v1505 = vmul.f32 %v1493, %v1502
      %v1506 = vmul.f32 %v717, %v1502
      %v1507 = vmul.f32 %v726, %v1502
      %v1508 = vmul.f32 %v1471, %v1502
      %v1509 = vmul.f32 %v1494, %v1502
      %v1516 = vrot.slane %v1504, 4
      %v1517 = vrot.slane %v1506, 4
      %v1518 = vsel %vm1483, %v1516, %v1517
      %v1519 = vrot.slane %v1505, 4
      %v1520 = vrot.slane %v1507, 4
      %v1521 = vsel %vm1483, %v1519, %v1520
      %v1522 = vrot.slane %v1508, 4
      %v1523 = vsel %vm1483, %v1517, %v1522
      %v1524 = vrot.slane %v1509, 4
      %v1525 = vsel %vm1483, %v1520, %v1524
      %1526 = vrot.lane.b32.xlu0 %v1518, 120
      %v1527 = vpop.permute.xlu0 %1526
      %1528 = vrot.lane.b32.xlu0 %v1521, 120
      %v1529 = vpop.permute.xlu0 %1528
      %1530 = vrot.lane.b32.xlu0 %v1523, 120
      %v1531 = vpop.permute.xlu0 %1530
      %1532 = vrot.lane.b32.xlu0 %v1525, 120
      %v1533 = vpop.permute.xlu0 %1532
      %v1534 = vsel %vm752, %v1527, %v1529
      %v1535 = vsel %vm752, %v1531, %v1533
      %v1538 = vadd.f32 %v1491, %v1534
      %v1539 = vadd.f32 %v1492, %v1535
      %v1540 = vld [vmem:[%s7 + $0x16] sm:$0x1]
      %v1541 = vlaneseq
      %v1542 = vshrl.u32 %v1541, 7
      %v1543 = vsub.s32 0, %v1542
      %v1544 = vrot.slane %v1540, %v1543
      %1546 = vrot.lane.b32.xlu0 %v1544, 16
      %v1547 = vpop.permute.xlu0 %1546
      %v1549 = vmul.f32 %v1470, %v1547
      %v1550 = vmul.f32 %v1493, %v1547
      %v1551 = vmul.f32 %v717, %v1547
      %v1552 = vmul.f32 %v726, %v1547
      %v1553 = vmul.f32 %v1471, %v1547
      %v1554 = vmul.f32 %v1494, %v1547
      %v1561 = vrot.slane %v1549, 4
      %v1562 = vrot.slane %v1551, 4
      %v1563 = vsel %vm1483, %v1561, %v1562
      %v1564 = vrot.slane %v1550, 4
      %v1565 = vrot.slane %v1552, 4
      %v1566 = vsel %vm1483, %v1564, %v1565
      %v1567 = vrot.slane %v1553, 4
      %v1568 = vsel %vm1483, %v1562, %v1567
      %v1569 = vrot.slane %v1554, 4
      %v1570 = vsel %vm1483, %v1565, %v1569
      %1571 = vrot.lane.b32.xlu0 %v1563, 112
      %v1572 = vpop.permute.xlu0 %1571
      %1573 = vrot.lane.b32.xlu0 %v1566, 112
      %v1574 = vpop.permute.xlu0 %1573
      %1575 = vrot.lane.b32.xlu0 %v1568, 112
      %v1576 = vpop.permute.xlu0 %1575
      %1577 = vrot.lane.b32.xlu0 %v1570, 112
      %v1578 = vpop.permute.xlu0 %1577
      %v1579 = vsel %vm784, %v1572, %v1574
      %v1580 = vsel %vm784, %v1576, %v1578
      %v1583 = vadd.f32 %v1538, %v1579
      %v1584 = vadd.f32 %v1539, %v1580
      %v1585 = vld [vmem:[%s7 + $0x17] sm:$0x1]
      %v1586 = vlaneseq
      %v1587 = vshrl.u32 %v1586, 7
      %v1588 = vsub.s32 0, %v1587
      %v1589 = vrot.slane %v1585, %v1588
      %1591 = vrot.lane.b32.xlu0 %v1589, 24
      %v1592 = vpop.permute.xlu0 %1591
      %v1594 = vmul.f32 %v1470, %v1592
      %v1595 = vmul.f32 %v1493, %v1592
      %v1596 = vmul.f32 %v717, %v1592
      %v1597 = vmul.f32 %v726, %v1592
      %v1598 = vmul.f32 %v1471, %v1592
      %v1599 = vmul.f32 %v1494, %v1592
      %v1606 = vrot.slane %v1594, 4
      %v1607 = vrot.slane %v1596, 4
      %v1608 = vsel %vm1483, %v1606, %v1607
      %v1609 = vrot.slane %v1595, 4
      %v1610 = vrot.slane %v1597, 4
      %v1611 = vsel %vm1483, %v1609, %v1610
      %v1612 = vrot.slane %v1598, 4
      %v1613 = vsel %vm1483, %v1607, %v1612
      %v1614 = vrot.slane %v1599, 4
      %v1615 = vsel %vm1483, %v1610, %v1614
      %1616 = vrot.lane.b32.xlu0 %v1608, 104
      %v1617 = vpop.permute.xlu0 %1616
      %1618 = vrot.lane.b32.xlu0 %v1611, 104
      %v1619 = vpop.permute.xlu0 %1618
      %1620 = vrot.lane.b32.xlu0 %v1613, 104
      %v1621 = vpop.permute.xlu0 %1620
      %1622 = vrot.lane.b32.xlu0 %v1615, 104
      %v1623 = vpop.permute.xlu0 %1622
      %v1624 = vsel %vm816, %v1617, %v1619
      %v1625 = vsel %vm816, %v1621, %v1623
      %v1628 = vadd.f32 %v1583, %v1624
      %v1629 = vadd.f32 %v1584, %v1625
      %v1630 = vld [vmem:[%s7 + $0x18] sm:$0x1]
      %v1631 = vlaneseq
      %v1632 = vshrl.u32 %v1631, 7
      %v1633 = vsub.s32 0, %v1632
      %v1634 = vrot.slane %v1630, %v1633
      %1636 = vrot.lane.b32.xlu0 %v1634, 32
      %v1637 = vpop.permute.xlu0 %1636
      %v1639 = vmul.f32 %v1470, %v1637
      %v1640 = vmul.f32 %v1493, %v1637
      %v1641 = vmul.f32 %v717, %v1637
      %v1642 = vmul.f32 %v726, %v1637
      %v1643 = vmul.f32 %v1471, %v1637
      %v1644 = vmul.f32 %v1494, %v1637
      %v1651 = vrot.slane %v1639, 4
      %v1652 = vrot.slane %v1641, 4
      %v1653 = vsel %vm1483, %v1651, %v1652
      %v1654 = vrot.slane %v1640, 4
      %v1655 = vrot.slane %v1642, 4
      %v1656 = vsel %vm1483, %v1654, %v1655
      %v1657 = vrot.slane %v1643, 4
      %v1658 = vsel %vm1483, %v1652, %v1657
      %v1659 = vrot.slane %v1644, 4
      %v1660 = vsel %vm1483, %v1655, %v1659
      %1661 = vrot.lane.b32.xlu0 %v1653, 96
      %v1662 = vpop.permute.xlu0 %1661
      %1663 = vrot.lane.b32.xlu0 %v1656, 96
      %v1664 = vpop.permute.xlu0 %1663
      %1665 = vrot.lane.b32.xlu0 %v1658, 96
      %v1666 = vpop.permute.xlu0 %1665
      %1667 = vrot.lane.b32.xlu0 %v1660, 96
      %v1668 = vpop.permute.xlu0 %1667
      %v1669 = vsel %vm848, %v1662, %v1664
      %v1670 = vsel %vm848, %v1666, %v1668
      %v1673 = vadd.f32 %v1628, %v1669
      %v1674 = vadd.f32 %v1629, %v1670
      %v1675 = vld [vmem:[%s7 + $0x19] sm:$0x1]
      %v1676 = vlaneseq
      %v1677 = vshrl.u32 %v1676, 7
      %v1678 = vsub.s32 0, %v1677
      %v1679 = vrot.slane %v1675, %v1678
      %v1680 = vadd.f32 %v1673, %v1679
      %v1681 = vadd.f32 %v1674, %v1679
      %1684 = vrot.lane.b32.xlu0 %v1680, 80
      %v1685 = vpop.permute.xlu0 %1684
      %1686 = vrot.lane.b32.xlu0 %v1681, 80
      %v1687 = vpop.permute.xlu0 %1686
      %1690 = vst.msk [vmem:[#allocation3] sm:$0xff] %vm683, %v1685
      %1691 = vst.msk [vmem:[#allocation3 + $0x8] sm:$0xff] %vm680, %v1685
      %1692 = vst.msk [vmem:[#allocation3 + $0x18] sm:$0xff] %vm683, %v1687
      %1693 = vst.msk [vmem:[#allocation3 + $0x20] sm:$0xff] %vm680, %v1687
      %v1694 = vld [vmem:[#allocation3] sm:$0xff]
      %v1695 = vld [vmem:[#allocation3 + $0x8] sm:$0xff]
      %v1696 = vld [vmem:[#allocation3 + $0x18] sm:$0xff]
      %v1697 = vld [vmem:[#allocation3 + $0x20] sm:$0xff]
      %v1698 = vld [vmem:[%s7 + $0x1a] sm:$0x1]
      %v1699 = vlaneseq
      %v1700 = vshrl.u32 %v1699, 7
      %v1701 = vsub.s32 0, %v1700
      %v1702 = vrot.slane %v1698, %v1701
      %1704 = vrot.lane.b32.xlu0 %v1702, 56
      %v1705 = vpop.permute.xlu0 %1704
      %v1707 = vmul.f32 %v1694, %v1705
      %v1708 = vmul.f32 %v1695, %v1705
      %v1709 = vmul.f32 %v1696, %v1705
      %v1710 = vmul.f32 %v1697, %v1705
      %v1711 = vld [vmem:[%s7 + $0x1b] sm:$0x1]
      %v1712 = vlaneseq
      %v1713 = vshrl.u32 %v1712, 7
      %v1714 = vsub.s32 0, %v1713
      %v1715 = vrot.slane %v1711, %v1714
      %1717 = vrot.lane.b32.xlu0 %v1715, 64
      %v1718 = vpop.permute.xlu0 %1717
      %v1720 = vmul.f32 %v1694, %v1718
      %v1721 = vmul.f32 %v1695, %v1718
      %v1722 = vmul.f32 %v1696, %v1718
      %v1723 = vmul.f32 %v1697, %v1718
      %1728 = vrot.lane.b32.xlu0 %v1720, 120
      %v1729 = vpop.permute.xlu0 %1728
      %1730 = vrot.lane.b32.xlu0 %v1721, 120
      %v1731 = vpop.permute.xlu0 %1730
      %1732 = vrot.lane.b32.xlu0 %v1722, 120
      %v1733 = vpop.permute.xlu0 %1732
      %1734 = vrot.lane.b32.xlu0 %v1723, 120
      %v1735 = vpop.permute.xlu0 %1734
      %v1736 = vsel %vm752, %v1729, %v1731
      %v1737 = vsel %vm752, %v1733, %v1735
      %v1742 = vadd.f32 %v1707, %v1736
      %v1743 = vadd.f32 %v1708, %v1731
      %v1744 = vadd.f32 %v1709, %v1737
      %v1745 = vadd.f32 %v1710, %v1735
      %v1746 = vld [vmem:[%s7 + $0x1c] sm:$0x1]
      %v1747 = vlaneseq
      %v1748 = vshrl.u32 %v1747, 7
      %v1749 = vsub.s32 0, %v1748
      %v1750 = vrot.slane %v1746, %v1749
      %1752 = vrot.lane.b32.xlu0 %v1750, 72
      %v1753 = vpop.permute.xlu0 %1752
      %v1755 = vmul.f32 %v1694, %v1753
      %v1756 = vmul.f32 %v1695, %v1753
      %v1757 = vmul.f32 %v1696, %v1753
      %v1758 = vmul.f32 %v1697, %v1753
      %1763 = vrot.lane.b32.xlu0 %v1755, 112
      %v1764 = vpop.permute.xlu0 %1763
      %1765 = vrot.lane.b32.xlu0 %v1756, 112
      %v1766 = vpop.permute.xlu0 %1765
      %1767 = vrot.lane.b32.xlu0 %v1757, 112
      %v1768 = vpop.permute.xlu0 %1767
      %1769 = vrot.lane.b32.xlu0 %v1758, 112
      %v1770 = vpop.permute.xlu0 %1769
      %v1771 = vsel %vm784, %v1764, %v1766
      %v1772 = vsel %vm784, %v1768, %v1770
      %v1777 = vadd.f32 %v1742, %v1771
      %v1778 = vadd.f32 %v1743, %v1766
      %v1779 = vadd.f32 %v1744, %v1772
      %v1780 = vadd.f32 %v1745, %v1770
      %v1781 = vld [vmem:[%s7 + $0x1d] sm:$0x1]
      %v1782 = vlaneseq
      %v1783 = vshrl.u32 %v1782, 7
      %v1784 = vsub.s32 0, %v1783
      %v1785 = vrot.slane %v1781, %v1784
      %1787 = vrot.lane.b32.xlu0 %v1785, 80
      %v1788 = vpop.permute.xlu0 %1787
      %v1790 = vmul.f32 %v1694, %v1788
      %v1791 = vmul.f32 %v1695, %v1788
      %v1792 = vmul.f32 %v1696, %v1788
      %v1793 = vmul.f32 %v1697, %v1788
      %1798 = vrot.lane.b32.xlu0 %v1790, 104
      %v1799 = vpop.permute.xlu0 %1798
      %1800 = vrot.lane.b32.xlu0 %v1791, 104
      %v1801 = vpop.permute.xlu0 %1800
      %1802 = vrot.lane.b32.xlu0 %v1792, 104
      %v1803 = vpop.permute.xlu0 %1802
      %1804 = vrot.lane.b32.xlu0 %v1793, 104
      %v1805 = vpop.permute.xlu0 %1804
      %v1806 = vsel %vm816, %v1799, %v1801
      %v1807 = vsel %vm816, %v1803, %v1805
      %v1812 = vadd.f32 %v1777, %v1806
      %v1813 = vadd.f32 %v1778, %v1801
      %v1814 = vadd.f32 %v1779, %v1807
      %v1815 = vadd.f32 %v1780, %v1805
      %v1816 = vld [vmem:[%s7 + $0x1e] sm:$0x1]
      %v1817 = vlaneseq
      %v1818 = vshrl.u32 %v1817, 7
      %v1819 = vsub.s32 0, %v1818
      %v1820 = vrot.slane %v1816, %v1819
      %1822 = vrot.lane.b32.xlu0 %v1820, 88
      %v1823 = vpop.permute.xlu0 %1822
      %v1825 = vmul.f32 %v1694, %v1823
      %v1826 = vmul.f32 %v1695, %v1823
      %v1827 = vmul.f32 %v1696, %v1823
      %v1828 = vmul.f32 %v1697, %v1823
      %1833 = vrot.lane.b32.xlu0 %v1825, 96
      %v1834 = vpop.permute.xlu0 %1833
      %1835 = vrot.lane.b32.xlu0 %v1826, 96
      %v1836 = vpop.permute.xlu0 %1835
      %1837 = vrot.lane.b32.xlu0 %v1827, 96
      %v1838 = vpop.permute.xlu0 %1837
      %1839 = vrot.lane.b32.xlu0 %v1828, 96
      %v1840 = vpop.permute.xlu0 %1839
      %v1841 = vsel %vm848, %v1834, %v1836
      %v1842 = vsel %vm848, %v1838, %v1840
      %v1847 = vadd.f32 %v1812, %v1841
      %v1848 = vadd.f32 %v1813, %v1836
      %v1849 = vadd.f32 %v1814, %v1842
      %v1850 = vadd.f32 %v1815, %v1840
      %v1851 = vld [vmem:[%s7 + $0x1f] sm:$0x1]
      %v1852 = vlaneseq
      %v1853 = vshrl.u32 %v1852, 7
      %v1854 = vsub.s32 0, %v1853
      %v1855 = vrot.slane %v1851, %v1854
      %1857 = vrot.lane.b32.xlu0 %v1855, 96
      %v1858 = vpop.permute.xlu0 %1857
      %v1860 = vmul.f32 %v1694, %v1858
      %v1861 = vmul.f32 %v1695, %v1858
      %v1862 = vmul.f32 %v1696, %v1858
      %v1863 = vmul.f32 %v1697, %v1858
      %1868 = vrot.lane.b32.xlu0 %v1860, 88
      %v1869 = vpop.permute.xlu0 %1868
      %1870 = vrot.lane.b32.xlu0 %v1861, 88
      %v1871 = vpop.permute.xlu0 %1870
      %1872 = vrot.lane.b32.xlu0 %v1862, 88
      %v1873 = vpop.permute.xlu0 %1872
      %1874 = vrot.lane.b32.xlu0 %v1863, 88
      %v1875 = vpop.permute.xlu0 %1874
      %vm1876 = vcmask 719872
      %v1877 = vsel %vm1876, %v1869, %v1871
      %v1878 = vsel %vm1876, %v1873, %v1875
      %v1883 = vadd.f32 %v1847, %v1877
      %v1884 = vadd.f32 %v1848, %v1871
      %v1885 = vadd.f32 %v1849, %v1878
      %v1886 = vadd.f32 %v1850, %v1875
      %v1887 = vld [vmem:[%s7 + $0x20] sm:$0x1]
      %v1888 = vlaneseq
      %v1889 = vshrl.u32 %v1888, 7
      %v1890 = vsub.s32 0, %v1889
      %v1891 = vrot.slane %v1887, %v1890
      %1893 = vrot.lane.b32.xlu0 %v1891, 104
      %v1894 = vpop.permute.xlu0 %1893
      %v1896 = vmul.f32 %v1694, %v1894
      %v1897 = vmul.f32 %v1695, %v1894
      %v1898 = vmul.f32 %v1696, %v1894
      %v1899 = vmul.f32 %v1697, %v1894
      %1904 = vrot.lane.b32.xlu0 %v1896, 80
      %v1905 = vpop.permute.xlu0 %1904
      %1906 = vrot.lane.b32.xlu0 %v1897, 80
      %v1907 = vpop.permute.xlu0 %1906
      %1908 = vrot.lane.b32.xlu0 %v1898, 80
      %v1909 = vpop.permute.xlu0 %1908
      %1910 = vrot.lane.b32.xlu0 %v1899, 80
      %v1911 = vpop.permute.xlu0 %1910
      %v1912 = vsel %vm680, %v1905, %v1907
      %v1913 = vsel %vm680, %v1909, %v1911
      %v1918 = vadd.f32 %v1883, %v1912
      %v1919 = vadd.f32 %v1884, %v1907
      %v1920 = vadd.f32 %v1885, %v1913
      %v1921 = vadd.f32 %v1886, %v1911
      %v1922 = vld [vmem:[%s7 + $0x21] sm:$0x1]
      %v1923 = vlaneseq
      %v1924 = vshrl.u32 %v1923, 7
      %v1925 = vsub.s32 0, %v1924
      %v1926 = vrot.slane %v1922, %v1925
      %1928 = vrot.lane.b32.xlu0 %v1926, 56
      %v1929 = vpop.permute.xlu0 %1928
      %v1931 = vadd.f32 %v1918, %v1929
      %v1932 = vadd.f32 %v1919, %v1929
      %v1933 = vadd.f32 %v1920, %v1929
      %v1934 = vadd.f32 %v1921, %v1929
      %1939 = vrot.lane.b32.xlu0 %v1931, 72
      %v1940 = vpop.permute.xlu0 %1939
      %1941 = vrot.lane.b32.xlu0 %v1932, 72
      %v1942 = vpop.permute.xlu0 %1941
      %1943 = vrot.lane.b32.xlu0 %v1933, 72
      %v1944 = vpop.permute.xlu0 %1943
      %1945 = vrot.lane.b32.xlu0 %v1934, 72
      %v1946 = vpop.permute.xlu0 %1945
      %vm1947 = vcmask 588800
      %v1948 = vsel %vm1947, %v1940, %v1942
      %v1949 = vsel %vm1947, %v1944, %v1946
      %1952 = vst [vmem:[#allocation4 + $0xa] sm:$0xff] %v1948
      %1953 = vst [vmem:[#allocation4 + $0x12] sm:$0xff] %v1949
      %v1954 = vld [vmem:[#allocation4 + $0x7] sm:$0xff]
      %v1955 = vld [vmem:[#allocation4 + $0xf] sm:$0xff]
      %v1956 = vld [vmem:[%s7 + $0x22] sm:$0x1]
      %v1957 = vlaneseq
      %v1958 = vshrl.u32 %v1957, 7
      %v1959 = vsub.s32 0, %v1958
      %v1960 = vrot.slane %v1956, %v1959
      %v1961 = vmul.f32 %v1954, %v1960
      %v1962 = vmul.f32 %v1955, %v1960
      %v1963 = vld [vmem:[#allocation4 + $0x8] sm:$0xff]
      %v1964 = vld [vmem:[#allocation4 + $0x10] sm:$0xff]
      %v1965 = vld [vmem:[%s7 + $0x23] sm:$0x1]
      %v1966 = vlaneseq
      %v1967 = vshrl.u32 %v1966, 7
      %v1968 = vsub.s32 0, %v1967
      %v1969 = vrot.slane %v1965, %v1968
      %v1970 = vmul.f32 %v1963, %v1969
      %v1971 = vmul.f32 %v1964, %v1969
      %v1972 = vadd.f32 %v1961, %v1970
      %v1973 = vadd.f32 %v1962, %v1971
      %v1974 = vld [vmem:[#allocation4 + $0x9] sm:$0xff]
      %v1975 = vld [vmem:[#allocation4 + $0x11] sm:$0xff]
      %v1976 = vld [vmem:[%s7 + $0x24] sm:$0x1]
      %v1977 = vlaneseq
      %v1978 = vshrl.u32 %v1977, 7
      %v1979 = vsub.s32 0, %v1978
      %v1980 = vrot.slane %v1976, %v1979
      %v1981 = vmul.f32 %v1974, %v1980
      %v1982 = vmul.f32 %v1975, %v1980
      %v1983 = vadd.f32 %v1972, %v1981
      %v1984 = vadd.f32 %v1973, %v1982
      %v1985 = vld [vmem:[#allocation4 + $0xa] sm:$0xff]
      %v1986 = vld [vmem:[#allocation4 + $0x12] sm:$0xff]
      %v1987 = vld [vmem:[%s7 + $0x25] sm:$0x1]
      %v1988 = vlaneseq
      %v1989 = vshrl.u32 %v1988, 7
      %v1990 = vsub.s32 0, %v1989
      %v1991 = vrot.slane %v1987, %v1990
      %v1992 = vmul.f32 %v1985, %v1991
      %v1993 = vmul.f32 %v1986, %v1991
      %v1994 = vadd.f32 %v1983, %v1992
      %v1995 = vadd.f32 %v1984, %v1993
      %v1996 = vld [vmem:[#allocation4 + $0xb] sm:$0xff]
      %v1997 = vld [vmem:[#allocation4 + $0x13] sm:$0xff]
      %v1998 = vld [vmem:[%s7 + $0x26] sm:$0x1]
      %v1999 = vlaneseq
      %v2000 = vshrl.u32 %v1999, 7
      %v2001 = vsub.s32 0, %v2000
      %v2002 = vrot.slane %v1998, %v2001
      %v2003 = vmul.f32 %v1996, %v2002
      %v2004 = vmul.f32 %v1997, %v2002
      %v2005 = vadd.f32 %v1994, %v2003
      %v2006 = vadd.f32 %v1995, %v2004
      %v2007 = vld [vmem:[#allocation4 + $0xc] sm:$0xff]
      %v2008 = vld [vmem:[#allocation4 + $0x14] sm:$0xff]
      %v2009 = vld [vmem:[%s7 + $0x27] sm:$0x1]
      %v2010 = vlaneseq
      %v2011 = vshrl.u32 %v2010, 7
      %v2012 = vsub.s32 0, %v2011
      %v2013 = vrot.slane %v2009, %v2012
      %v2014 = vmul.f32 %v2007, %v2013
      %v2015 = vmul.f32 %v2008, %v2013
      %v2016 = vadd.f32 %v2005, %v2014
      %v2017 = vadd.f32 %v2006, %v2015
      %v2018 = vld [vmem:[#allocation4 + $0xd] sm:$0xff]
      %v2019 = vld [vmem:[#allocation4 + $0x15] sm:$0xff]
      %v2020 = vld [vmem:[%s7 + $0x28] sm:$0x1]
      %v2021 = vlaneseq
      %v2022 = vshrl.u32 %v2021, 7
      %v2023 = vsub.s32 0, %v2022
      %v2024 = vrot.slane %v2020, %v2023
      %v2025 = vmul.f32 %v2018, %v2024
      %v2026 = vmul.f32 %v2019, %v2024
      %v2027 = vadd.f32 %v2016, %v2025
      %v2028 = vadd.f32 %v2017, %v2026
      %v2029 = vadd.f32 %v1680, %v2027
      %v2030 = vadd.f32 %v1681, %v2028
      %v2031 = vld [vmem:[%s7 + $0x29] sm:$0x1]
      %v2032 = vlaneseq
      %v2033 = vshrl.u32 %v2032, 7
      %v2034 = vsub.s32 0, %v2033
      %v2035 = vrot.slane %v2031, %v2034
      %v2036 = vadd.f32 %v2029, %v2035
      %v2037 = vadd.f32 %v2030, %v2035
      %v2038 = vld [vmem:[#allocation3] sm:$0xff]
      %v2039 = vld [vmem:[#allocation3 + $0x8] sm:$0xff]
      %v2040 = vld [vmem:[#allocation3 + $0x18] sm:$0xff]
      %v2041 = vld [vmem:[#allocation3 + $0x20] sm:$0xff]
      %v2042 = vld [vmem:[%s7 + $0x2a] sm:$0x1]
      %v2043 = vlaneseq
      %v2044 = vshrl.u32 %v2043, 7
      %v2045 = vsub.s32 0, %v2044
      %v2046 = vrot.slane %v2042, %v2045
      %2048 = vrot.lane.b32.xlu0 %v2046, 40
      %v2049 = vpop.permute.xlu0 %2048
      %v2051 = vmul.f32 %v2038, %v2049
      %v2052 = vmul.f32 %v2039, %v2049
      %v2053 = vmul.f32 %v2040, %v2049
      %v2054 = vmul.f32 %v2041, %v2049
      %v2055 = vld [vmem:[%s7 + $0x2b] sm:$0x1]
      %v2056 = vlaneseq
      %v2057 = vshrl.u32 %v2056, 7
      %v2058 = vsub.s32 0, %v2057
      %v2059 = vrot.slane %v2055, %v2058
      %2061 = vrot.lane.b32.xlu0 %v2059, 48
      %v2062 = vpop.permute.xlu0 %2061
      %v2064 = vmul.f32 %v2038, %v2062
      %v2065 = vmul.f32 %v2039, %v2062
      %v2066 = vmul.f32 %v2040, %v2062
      %v2067 = vmul.f32 %v2041, %v2062
      %2072 = vrot.lane.b32.xlu0 %v2064, 120
      %v2073 = vpop.permute.xlu0 %2072
      %2074 = vrot.lane.b32.xlu0 %v2065, 120
      %v2075 = vpop.permute.xlu0 %2074
      %2076 = vrot.lane.b32.xlu0 %v2066, 120
      %v2077 = vpop.permute.xlu0 %2076
      %2078 = vrot.lane.b32.xlu0 %v2067, 120
      %v2079 = vpop.permute.xlu0 %2078
      %v2080 = vsel %vm752, %v2073, %v2075
      %v2081 = vsel %vm752, %v2077, %v2079
      %v2086 = vadd.f32 %v2051, %v2080
      %v2087 = vadd.f32 %v2052, %v2075
      %v2088 = vadd.f32 %v2053, %v2081
      %v2089 = vadd.f32 %v2054, %v2079
      %v2090 = vld [vmem:[%s7 + $0x2c] sm:$0x1]
      %v2091 = vlaneseq
      %v2092 = vshrl.u32 %v2091, 7
      %v2093 = vsub.s32 0, %v2092
      %v2094 = vrot.slane %v2090, %v2093
      %2096 = vrot.lane.b32.xlu0 %v2094, 56
      %v2097 = vpop.permute.xlu0 %2096
      %v2099 = vmul.f32 %v2038, %v2097
      %v2100 = vmul.f32 %v2039, %v2097
      %v2101 = vmul.f32 %v2040, %v2097
      %v2102 = vmul.f32 %v2041, %v2097
      %2107 = vrot.lane.b32.xlu0 %v2099, 112
      %v2108 = vpop.permute.xlu0 %2107
      %2109 = vrot.lane.b32.xlu0 %v2100, 112
      %v2110 = vpop.permute.xlu0 %2109
      %2111 = vrot.lane.b32.xlu0 %v2101, 112
      %v2112 = vpop.permute.xlu0 %2111
      %2113 = vrot.lane.b32.xlu0 %v2102, 112
      %v2114 = vpop.permute.xlu0 %2113
      %v2115 = vsel %vm784, %v2108, %v2110
      %v2116 = vsel %vm784, %v2112, %v2114
      %v2121 = vadd.f32 %v2086, %v2115
      %v2122 = vadd.f32 %v2087, %v2110
      %v2123 = vadd.f32 %v2088, %v2116
      %v2124 = vadd.f32 %v2089, %v2114
      %v2125 = vld [vmem:[%s7 + $0x2d] sm:$0x1]
      %v2126 = vlaneseq
      %v2127 = vshrl.u32 %v2126, 7
      %v2128 = vsub.s32 0, %v2127
      %v2129 = vrot.slane %v2125, %v2128
      %2131 = vrot.lane.b32.xlu0 %v2129, 64
      %v2132 = vpop.permute.xlu0 %2131
      %v2134 = vmul.f32 %v2038, %v2132
      %v2135 = vmul.f32 %v2039, %v2132
      %v2136 = vmul.f32 %v2040, %v2132
      %v2137 = vmul.f32 %v2041, %v2132
      %2142 = vrot.lane.b32.xlu0 %v2134, 104
      %v2143 = vpop.permute.xlu0 %2142
      %2144 = vrot.lane.b32.xlu0 %v2135, 104
      %v2145 = vpop.permute.xlu0 %2144
      %2146 = vrot.lane.b32.xlu0 %v2136, 104
      %v2147 = vpop.permute.xlu0 %2146
      %2148 = vrot.lane.b32.xlu0 %v2137, 104
      %v2149 = vpop.permute.xlu0 %2148
      %v2150 = vsel %vm816, %v2143, %v2145
      %v2151 = vsel %vm816, %v2147, %v2149
      %v2156 = vadd.f32 %v2121, %v2150
      %v2157 = vadd.f32 %v2122, %v2145
      %v2158 = vadd.f32 %v2123, %v2151
      %v2159 = vadd.f32 %v2124, %v2149
      %v2160 = vld [vmem:[%s7 + $0x2e] sm:$0x1]
      %v2161 = vlaneseq
      %v2162 = vshrl.u32 %v2161, 7
      %v2163 = vsub.s32 0, %v2162
      %v2164 = vrot.slane %v2160, %v2163
      %2166 = vrot.lane.b32.xlu0 %v2164, 72
      %v2167 = vpop.permute.xlu0 %2166
      %v2169 = vmul.f32 %v2038, %v2167
      %v2170 = vmul.f32 %v2039, %v2167
      %v2171 = vmul.f32 %v2040, %v2167
      %v2172 = vmul.f32 %v2041, %v2167
      %2177 = vrot.lane.b32.xlu0 %v2169, 96
      %v2178 = vpop.permute.xlu0 %2177
      %2179 = vrot.lane.b32.xlu0 %v2170, 96
      %v2180 = vpop.permute.xlu0 %2179
      %2181 = vrot.lane.b32.xlu0 %v2171, 96
      %v2182 = vpop.permute.xlu0 %2181
      %2183 = vrot.lane.b32.xlu0 %v2172, 96
      %v2184 = vpop.permute.xlu0 %2183
      %v2185 = vsel %vm848, %v2178, %v2180
      %v2186 = vsel %vm848, %v2182, %v2184
      %v2191 = vadd.f32 %v2156, %v2185
      %v2192 = vadd.f32 %v2157, %v2180
      %v2193 = vadd.f32 %v2158, %v2186
      %v2194 = vadd.f32 %v2159, %v2184
      %v2195 = vld [vmem:[%s7 + $0x2f] sm:$0x1]
      %v2196 = vlaneseq
      %v2197 = vshrl.u32 %v2196, 7
      %v2198 = vsub.s32 0, %v2197
      %v2199 = vrot.slane %v2195, %v2198
      %2201 = vrot.lane.b32.xlu0 %v2199, 80
      %v2202 = vpop.permute.xlu0 %2201
      %v2204 = vmul.f32 %v2038, %v2202
      %v2205 = vmul.f32 %v2039, %v2202
      %v2206 = vmul.f32 %v2040, %v2202
      %v2207 = vmul.f32 %v2041, %v2202
      %2212 = vrot.lane.b32.xlu0 %v2204, 88
      %v2213 = vpop.permute.xlu0 %2212
      %2214 = vrot.lane.b32.xlu0 %v2205, 88
      %v2215 = vpop.permute.xlu0 %2214
      %2216 = vrot.lane.b32.xlu0 %v2206, 88
      %v2217 = vpop.permute.xlu0 %2216
      %2218 = vrot.lane.b32.xlu0 %v2207, 88
      %v2219 = vpop.permute.xlu0 %2218
      %v2220 = vsel %vm1876, %v2213, %v2215
      %v2221 = vsel %vm1876, %v2217, %v2219
      %v2226 = vadd.f32 %v2191, %v2220
      %v2227 = vadd.f32 %v2192, %v2215
      %v2228 = vadd.f32 %v2193, %v2221
      %v2229 = vadd.f32 %v2194, %v2219
      %v2230 = vld [vmem:[%s7 + $0x30] sm:$0x1]
      %v2231 = vlaneseq
      %v2232 = vshrl.u32 %v2231, 7
      %v2233 = vsub.s32 0, %v2232
      %v2234 = vrot.slane %v2230, %v2233
      %2236 = vrot.lane.b32.xlu0 %v2234, 88
      %v2237 = vpop.permute.xlu0 %2236
      %v2239 = vmul.f32 %v2038, %v2237
      %v2240 = vmul.f32 %v2039, %v2237
      %v2241 = vmul.f32 %v2040, %v2237
      %v2242 = vmul.f32 %v2041, %v2237
      %2247 = vrot.lane.b32.xlu0 %v2239, 80
      %v2248 = vpop.permute.xlu0 %2247
      %2249 = vrot.lane.b32.xlu0 %v2240, 80
      %v2250 = vpop.permute.xlu0 %2249
      %2251 = vrot.lane.b32.xlu0 %v2241, 80
      %v2252 = vpop.permute.xlu0 %2251
      %2253 = vrot.lane.b32.xlu0 %v2242, 80
      %v2254 = vpop.permute.xlu0 %2253
      %v2255 = vsel %vm680, %v2248, %v2250
      %v2256 = vsel %vm680, %v2252, %v2254
      %v2261 = vadd.f32 %v2226, %v2255
      %v2262 = vadd.f32 %v2227, %v2250
      %v2263 = vadd.f32 %v2228, %v2256
      %v2264 = vadd.f32 %v2229, %v2254
      %v2265 = vld [vmem:[%s7 + $0x31] sm:$0x1]
      %v2266 = vlaneseq
      %v2267 = vshrl.u32 %v2266, 7
      %v2268 = vsub.s32 0, %v2267
      %v2269 = vrot.slane %v2265, %v2268
      %2271 = vrot.lane.b32.xlu0 %v2269, 96
      %v2272 = vpop.permute.xlu0 %2271
      %v2274 = vmul.f32 %v2038, %v2272
      %v2275 = vmul.f32 %v2039, %v2272
      %v2276 = vmul.f32 %v2040, %v2272
      %v2277 = vmul.f32 %v2041, %v2272
      %2282 = vrot.lane.b32.xlu0 %v2274, 72
      %v2283 = vpop.permute.xlu0 %2282
      %2284 = vrot.lane.b32.xlu0 %v2275, 72
      %v2285 = vpop.permute.xlu0 %2284
      %2286 = vrot.lane.b32.xlu0 %v2276, 72
      %v2287 = vpop.permute.xlu0 %2286
      %2288 = vrot.lane.b32.xlu0 %v2277, 72
      %v2289 = vpop.permute.xlu0 %2288
      %v2290 = vsel %vm1947, %v2283, %v2285
      %v2291 = vsel %vm1947, %v2287, %v2289
      %v2296 = vadd.f32 %v2261, %v2290
      %v2297 = vadd.f32 %v2262, %v2285
      %v2298 = vadd.f32 %v2263, %v2291
      %v2299 = vadd.f32 %v2264, %v2289
      %v2300 = vld [vmem:[%s7 + $0x32] sm:$0x1]
      %v2301 = vlaneseq
      %v2302 = vshrl.u32 %v2301, 7
      %v2303 = vsub.s32 0, %v2302
      %v2304 = vrot.slane %v2300, %v2303
      %2306 = vrot.lane.b32.xlu0 %v2304, 104
      %v2307 = vpop.permute.xlu0 %2306
      %v2309 = vmul.f32 %v2038, %v2307
      %v2310 = vmul.f32 %v2039, %v2307
      %v2311 = vmul.f32 %v2040, %v2307
      %v2312 = vmul.f32 %v2041, %v2307
      %2317 = vrot.lane.b32.xlu0 %v2309, 64
      %v2318 = vpop.permute.xlu0 %2317
      %2319 = vrot.lane.b32.xlu0 %v2310, 64
      %v2320 = vpop.permute.xlu0 %2319
      %2321 = vrot.lane.b32.xlu0 %v2311, 64
      %v2322 = vpop.permute.xlu0 %2321
      %2323 = vrot.lane.b32.xlu0 %v2312, 64
      %v2324 = vpop.permute.xlu0 %2323
      %vm2325 = vcmask 523264
      %v2326 = vsel %vm2325, %v2318, %v2320
      %v2327 = vsel %vm2325, %v2322, %v2324
      %v2332 = vadd.f32 %v2296, %v2326
      %v2333 = vadd.f32 %v2297, %v2320
      %v2334 = vadd.f32 %v2298, %v2327
      %v2335 = vadd.f32 %v2299, %v2324
      %v2336 = vld [vmem:[%s7 + $0x33] sm:$0x1]
      %v2337 = vlaneseq
      %v2338 = vshrl.u32 %v2337, 7
      %v2339 = vsub.s32 0, %v2338
      %v2340 = vrot.slane %v2336, %v2339
      %2342 = vrot.lane.b32.xlu0 %v2340, 112
      %v2343 = vpop.permute.xlu0 %2342
      %v2345 = vmul.f32 %v2038, %v2343
      %v2346 = vmul.f32 %v2039, %v2343
      %v2347 = vmul.f32 %v2040, %v2343
      %v2348 = vmul.f32 %v2041, %v2343
      %2353 = vrot.lane.b32.xlu0 %v2345, 56
      %v2354 = vpop.permute.xlu0 %2353
      %2355 = vrot.lane.b32.xlu0 %v2346, 56
      %v2356 = vpop.permute.xlu0 %2355
      %2357 = vrot.lane.b32.xlu0 %v2347, 56
      %v2358 = vpop.permute.xlu0 %2357
      %2359 = vrot.lane.b32.xlu0 %v2348, 56
      %v2360 = vpop.permute.xlu0 %2359
      %vm2361 = vcmask 457728
      %v2362 = vsel %vm2361, %v2354, %v2356
      %v2363 = vsel %vm2361, %v2358, %v2360
      %v2368 = vadd.f32 %v2332, %v2362
      %v2369 = vadd.f32 %v2333, %v2356
      %v2370 = vadd.f32 %v2334, %v2363
      %v2371 = vadd.f32 %v2335, %v2360
      %v2372 = vld [vmem:[%s7 + $0x34] sm:$0x1]
      %v2373 = vlaneseq
      %v2374 = vshrl.u32 %v2373, 7
      %v2375 = vsub.s32 0, %v2374
      %v2376 = vrot.slane %v2372, %v2375
      %2378 = vrot.lane.b32.xlu0 %v2376, 120
      %v2379 = vpop.permute.xlu0 %2378
      %v2381 = vmul.f32 %v2038, %v2379
      %v2382 = vmul.f32 %v2039, %v2379
      %v2383 = vmul.f32 %v2040, %v2379
      %v2384 = vmul.f32 %v2041, %v2379
      %2389 = vrot.lane.b32.xlu0 %v2381, 48
      %v2390 = vpop.permute.xlu0 %2389
      %2391 = vrot.lane.b32.xlu0 %v2382, 48
      %v2392 = vpop.permute.xlu0 %2391
      %2393 = vrot.lane.b32.xlu0 %v2383, 48
      %v2394 = vpop.permute.xlu0 %2393
      %2395 = vrot.lane.b32.xlu0 %v2384, 48
      %v2396 = vpop.permute.xlu0 %2395
      %vm2397 = vcmask 392192
      %v2398 = vsel %vm2397, %v2390, %v2392
      %v2399 = vsel %vm2397, %v2394, %v2396
      %v2404 = vadd.f32 %v2368, %v2398
      %v2405 = vadd.f32 %v2369, %v2392
      %v2406 = vadd.f32 %v2370, %v2399
      %v2407 = vadd.f32 %v2371, %v2396
      %v2408 = vld [vmem:[%s7 + $0x35] sm:$0x1]
      %v2409 = vlaneseq
      %v2410 = vshrl.u32 %v2409, 7
      %v2411 = vsub.s32 0, %v2410
      %v2412 = vrot.slane %v2408, %v2411
      %2414 = vrot.lane.b32.xlu0 %v2412, 40
      %v2415 = vpop.permute.xlu0 %2414
      %v2417 = vadd.f32 %v2404, %v2415
      %v2418 = vadd.f32 %v2405, %v2415
      %v2419 = vadd.f32 %v2406, %v2415
      %v2420 = vadd.f32 %v2407, %v2415
      %2425 = vrot.lane.b32.xlu0 %v2417, 88
      %v2426 = vpop.permute.xlu0 %2425
      %2427 = vrot.lane.b32.xlu0 %v2418, 88
      %v2428 = vpop.permute.xlu0 %2427
      %2429 = vrot.lane.b32.xlu0 %v2419, 88
      %v2430 = vpop.permute.xlu0 %2429
      %2431 = vrot.lane.b32.xlu0 %v2420, 88
      %v2432 = vpop.permute.xlu0 %2431
      %v2433 = vsel %vm1876, %v2426, %v2428
      %v2434 = vsel %vm1876, %v2430, %v2432
      %2437 = vst [vmem:[#allocation4 + $0xa] sm:$0xff] %v2433
      %2438 = vst [vmem:[#allocation4 + $0x12] sm:$0xff] %v2434
      %v2439 = vld [vmem:[#allocation4 + $0x5] sm:$0xff]
      %v2440 = vld [vmem:[#allocation4 + $0xd] sm:$0xff]
      %v2441 = vld [vmem:[%s7 + $0x36] sm:$0x1]
      %v2442 = vlaneseq
      %v2443 = vshrl.u32 %v2442, 7
      %v2444 = vsub.s32 0, %v2443
      %v2445 = vrot.slane %v2441, %v2444
      %v2446 = vmul.f32 %v2439, %v2445
      %v2447 = vmul.f32 %v2440, %v2445
      %v2448 = vld [vmem:[#allocation4 + $0x6] sm:$0xff]
      %v2449 = vld [vmem:[#allocation4 + $0xe] sm:$0xff]
      %v2450 = vld [vmem:[%s7 + $0x37] sm:$0x1]
      %v2451 = vlaneseq
      %v2452 = vshrl.u32 %v2451, 7
      %v2453 = vsub.s32 0, %v2452
      %v2454 = vrot.slane %v2450, %v2453
      %v2455 = vmul.f32 %v2448, %v2454
      %v2456 = vmul.f32 %v2449, %v2454
      %v2457 = vadd.f32 %v2446, %v2455
      %v2458 = vadd.f32 %v2447, %v2456
      %v2459 = vld [vmem:[#allocation4 + $0x7] sm:$0xff]
      %v2460 = vld [vmem:[#allocation4 + $0xf] sm:$0xff]
      %v2461 = vld [vmem:[%s7 + $0x38] sm:$0x1]
      %v2462 = vlaneseq
      %v2463 = vshrl.u32 %v2462, 7
      %v2464 = vsub.s32 0, %v2463
      %v2465 = vrot.slane %v2461, %v2464
      %v2466 = vmul.f32 %v2459, %v2465
      %v2467 = vmul.f32 %v2460, %v2465
      %v2468 = vadd.f32 %v2457, %v2466
      %v2469 = vadd.f32 %v2458, %v2467
      %v2470 = vld [vmem:[#allocation4 + $0x8] sm:$0xff]
      %v2471 = vld [vmem:[#allocation4 + $0x10] sm:$0xff]
      %v2472 = vld [vmem:[%s7 + $0x39] sm:$0x1]
      %v2473 = vlaneseq
      %v2474 = vshrl.u32 %v2473, 7
      %v2475 = vsub.s32 0, %v2474
      %v2476 = vrot.slane %v2472, %v2475
      %v2477 = vmul.f32 %v2470, %v2476
      %v2478 = vmul.f32 %v2471, %v2476
      %v2479 = vadd.f32 %v2468, %v2477
      %v2480 = vadd.f32 %v2469, %v2478
      %v2481 = vld [vmem:[#allocation4 + $0x9] sm:$0xff]
      %v2482 = vld [vmem:[#allocation4 + $0x11] sm:$0xff]
      %v2483 = vld [vmem:[%s7 + $0x3a] sm:$0x1]
      %v2484 = vlaneseq
      %v2485 = vshrl.u32 %v2484, 7
      %v2486 = vsub.s32 0, %v2485
      %v2487 = vrot.slane %v2483, %v2486
      %v2488 = vmul.f32 %v2481, %v2487
      %v2489 = vmul.f32 %v2482, %v2487
      %v2490 = vadd.f32 %v2479, %v2488
      %v2491 = vadd.f32 %v2480, %v2489
      %v2492 = vld [vmem:[#allocation4 + $0xa] sm:$0xff]
      %v2493 = vld [vmem:[#allocation4 + $0x12] sm:$0xff]
      %v2494 = vld [vmem:[%s7 + $0x3b] sm:$0x1]
      %v2495 = vlaneseq
      %v2496 = vshrl.u32 %v2495, 7
      %v2497 = vsub.s32 0, %v2496
      %v2498 = vrot.slane %v2494, %v2497
      %v2499 = vmul.f32 %v2492, %v2498
      %v2500 = vmul.f32 %v2493, %v2498
      %v2501 = vadd.f32 %v2490, %v2499
      %v2502 = vadd.f32 %v2491, %v2500
      %v2503 = vld [vmem:[#allocation4 + $0xb] sm:$0xff]
      %v2504 = vld [vmem:[#allocation4 + $0x13] sm:$0xff]
      %v2505 = vld [vmem:[%s7 + $0x3c] sm:$0x1]
      %v2506 = vlaneseq
      %v2507 = vshrl.u32 %v2506, 7
      %v2508 = vsub.s32 0, %v2507
      %v2509 = vrot.slane %v2505, %v2508
      %v2510 = vmul.f32 %v2503, %v2509
      %v2511 = vmul.f32 %v2504, %v2509
      %v2512 = vadd.f32 %v2501, %v2510
      %v2513 = vadd.f32 %v2502, %v2511
      %v2514 = vld [vmem:[#allocation4 + $0xc] sm:$0xff]
      %v2515 = vld [vmem:[#allocation4 + $0x14] sm:$0xff]
      %v2516 = vld [vmem:[%s7 + $0x3d] sm:$0x1]
      %v2517 = vlaneseq
      %v2518 = vshrl.u32 %v2517, 7
      %v2519 = vsub.s32 0, %v2518
      %v2520 = vrot.slane %v2516, %v2519
      %v2521 = vmul.f32 %v2514, %v2520
      %v2522 = vmul.f32 %v2515, %v2520
      %v2523 = vadd.f32 %v2512, %v2521
      %v2524 = vadd.f32 %v2513, %v2522
      %v2525 = vld [vmem:[#allocation4 + $0x15] sm:$0xff]
      %v2526 = vld [vmem:[%s7 + $0x3e] sm:$0x1]
      %v2527 = vlaneseq
      %v2528 = vshrl.u32 %v2527, 7
      %v2529 = vsub.s32 0, %v2528
      %v2530 = vrot.slane %v2526, %v2529
      %v2531 = vmul.f32 %v2440, %v2530
      %v2532 = vmul.f32 %v2525, %v2530
      %v2533 = vadd.f32 %v2523, %v2531
      %v2534 = vadd.f32 %v2524, %v2532
      %v2535 = vld [vmem:[#allocation4 + $0x16] sm:$0xff]
      %v2536 = vld [vmem:[%s7 + $0x3f] sm:$0x1]
      %v2537 = vlaneseq
      %v2538 = vshrl.u32 %v2537, 7
      %v2539 = vsub.s32 0, %v2538
      %v2540 = vrot.slane %v2536, %v2539
      %v2541 = vmul.f32 %v2449, %v2540
      %v2542 = vmul.f32 %v2535, %v2540
      %v2543 = vadd.f32 %v2533, %v2541
      %v2544 = vadd.f32 %v2534, %v2542
      %v2545 = vld [vmem:[#allocation4 + $0x17] sm:$0xff]
      %v2546 = vld [vmem:[%s7 + $0x40] sm:$0x1]
      %v2547 = vlaneseq
      %v2548 = vshrl.u32 %v2547, 7
      %v2549 = vsub.s32 0, %v2548
      %v2550 = vrot.slane %v2546, %v2549
      %v2551 = vmul.f32 %v2460, %v2550
      %v2552 = vmul.f32 %v2545, %v2550
      %v2553 = vadd.f32 %v2543, %v2551
      %v2554 = vadd.f32 %v2544, %v2552
      %v2555 = vadd.f32 %v2036, %v2553
      %v2556 = vadd.f32 %v2037, %v2554
      %v2557 = vld [vmem:[%s7 + $0x41] sm:$0x1]
      %v2558 = vlaneseq
      %v2559 = vshrl.u32 %v2558, 7
      %v2560 = vsub.s32 0, %v2559
      %v2561 = vrot.slane %v2557, %v2560
      %v2562 = vadd.f32 %v2555, %v2561
      %v2563 = vadd.f32 %v2556, %v2561
      %v2564 = vld [vmem:[#allocation3] sm:$0xff]
      %v2565 = vld [vmem:[#allocation3 + $0x18] sm:$0xff]
      %v2566 = vld [vmem:[%s7 + $0x42] sm:$0x1]
      %v2567 = vlaneseq
      %v2568 = vshrl.u32 %v2567, 7
      %v2569 = vsub.s32 0, %v2568
      %v2570 = vrot.slane %v2566, %v2569
      %v2571 = vmul.f32 %v2564, %v2570
      %v2572 = vmul.f32 %v2565, %v2570
      %v2573 = vld [vmem:[#allocation3 + $0x8] sm:$0xff]
      %v2574 = vld [vmem:[#allocation3 + $0x20] sm:$0xff]
      %v2575 = vld [vmem:[%s7 + $0x43] sm:$0x1]
      %v2576 = vlaneseq
      %v2577 = vshrl.u32 %v2576, 7
      %v2578 = vsub.s32 0, %v2577
      %v2579 = vrot.slane %v2575, %v2578
      %2581 = vrot.lane.b32.xlu0 %v2579, 8
      %v2582 = vpop.permute.xlu0 %2581
      %v2584 = vmul.f32 %v2564, %v2582
      %v2585 = vmul.f32 %v2573, %v2582
      %v2586 = vmul.f32 %v2565, %v2582
      %v2587 = vmul.f32 %v2574, %v2582
      %2592 = vrot.lane.b32.xlu0 %v2584, 120
      %v2593 = vpop.permute.xlu0 %2592
      %2594 = vrot.lane.b32.xlu0 %v2585, 120
      %v2595 = vpop.permute.xlu0 %2594
      %2596 = vrot.lane.b32.xlu0 %v2586, 120
      %v2597 = vpop.permute.xlu0 %2596
      %2598 = vrot.lane.b32.xlu0 %v2587, 120
      %v2599 = vpop.permute.xlu0 %2598
      %v2600 = vsel %vm752, %v2593, %v2595
      %v2601 = vsel %vm752, %v2597, %v2599
      %v2604 = vadd.f32 %v2571, %v2600
      %v2605 = vadd.f32 %v2572, %v2601
      %v2606 = vld [vmem:[%s7 + $0x44] sm:$0x1]
      %v2607 = vlaneseq
      %v2608 = vshrl.u32 %v2607, 7
      %v2609 = vsub.s32 0, %v2608
      %v2610 = vrot.slane %v2606, %v2609
      %2612 = vrot.lane.b32.xlu0 %v2610, 16
      %v2613 = vpop.permute.xlu0 %2612
      %v2615 = vmul.f32 %v2564, %v2613
      %v2616 = vmul.f32 %v2573, %v2613
      %v2617 = vmul.f32 %v2565, %v2613
      %v2618 = vmul.f32 %v2574, %v2613
      %2623 = vrot.lane.b32.xlu0 %v2615, 112
      %v2624 = vpop.permute.xlu0 %2623
      %2625 = vrot.lane.b32.xlu0 %v2616, 112
      %v2626 = vpop.permute.xlu0 %2625
      %2627 = vrot.lane.b32.xlu0 %v2617, 112
      %v2628 = vpop.permute.xlu0 %2627
      %2629 = vrot.lane.b32.xlu0 %v2618, 112
      %v2630 = vpop.permute.xlu0 %2629
      %v2631 = vsel %vm784, %v2624, %v2626
      %v2632 = vsel %vm784, %v2628, %v2630
      %v2635 = vadd.f32 %v2604, %v2631
      %v2636 = vadd.f32 %v2605, %v2632
      %v2637 = vld [vmem:[%s7 + $0x45] sm:$0x1]
      %v2638 = vlaneseq
      %v2639 = vshrl.u32 %v2638, 7
      %v2640 = vsub.s32 0, %v2639
      %v2641 = vrot.slane %v2637, %v2640
      %2643 = vrot.lane.b32.xlu0 %v2641, 24
      %v2644 = vpop.permute.xlu0 %2643
      %v2646 = vmul.f32 %v2564, %v2644
      %v2647 = vmul.f32 %v2573, %v2644
      %v2648 = vmul.f32 %v2565, %v2644
      %v2649 = vmul.f32 %v2574, %v2644
      %2654 = vrot.lane.b32.xlu0 %v2646, 104
      %v2655 = vpop.permute.xlu0 %2654
      %2656 = vrot.lane.b32.xlu0 %v2647, 104
      %v2657 = vpop.permute.xlu0 %2656
      %2658 = vrot.lane.b32.xlu0 %v2648, 104
      %v2659 = vpop.permute.xlu0 %2658
      %2660 = vrot.lane.b32.xlu0 %v2649, 104
      %v2661 = vpop.permute.xlu0 %2660
      %v2662 = vsel %vm816, %v2655, %v2657
      %v2663 = vsel %vm816, %v2659, %v2661
      %v2666 = vadd.f32 %v2635, %v2662
      %v2667 = vadd.f32 %v2636, %v2663
      %v2668 = vld [vmem:[%s7 + $0x46] sm:$0x1]
      %v2669 = vlaneseq
      %v2670 = vshrl.u32 %v2669, 7
      %v2671 = vsub.s32 0, %v2670
      %v2672 = vrot.slane %v2668, %v2671
      %2674 = vrot.lane.b32.xlu0 %v2672, 32
      %v2675 = vpop.permute.xlu0 %2674
      %v2677 = vmul.f32 %v2564, %v2675
      %v2678 = vmul.f32 %v2573, %v2675
      %v2679 = vmul.f32 %v2565, %v2675
      %v2680 = vmul.f32 %v2574, %v2675
      %2685 = vrot.lane.b32.xlu0 %v2677, 96
      %v2686 = vpop.permute.xlu0 %2685
      %2687 = vrot.lane.b32.xlu0 %v2678, 96
      %v2688 = vpop.permute.xlu0 %2687
      %2689 = vrot.lane.b32.xlu0 %v2679, 96
      %v2690 = vpop.permute.xlu0 %2689
      %2691 = vrot.lane.b32.xlu0 %v2680, 96
      %v2692 = vpop.permute.xlu0 %2691
      %v2693 = vsel %vm848, %v2686, %v2688
      %v2694 = vsel %vm848, %v2690, %v2692
      %v2697 = vadd.f32 %v2666, %v2693
      %v2698 = vadd.f32 %v2667, %v2694
      %v2699 = vld [vmem:[%s7 + $0x47] sm:$0x1]
      %v2700 = vlaneseq
      %v2701 = vshrl.u32 %v2700, 7
      %v2702 = vsub.s32 0, %v2701
      %v2703 = vrot.slane %v2699, %v2702
      %2705 = vrot.lane.b32.xlu0 %v2703, 40
      %v2706 = vpop.permute.xlu0 %2705
      %v2708 = vmul.f32 %v2564, %v2706
      %v2709 = vmul.f32 %v2573, %v2706
      %v2710 = vmul.f32 %v2565, %v2706
      %v2711 = vmul.f32 %v2574, %v2706
      %2716 = vrot.lane.b32.xlu0 %v2708, 88
      %v2717 = vpop.permute.xlu0 %2716
      %2718 = vrot.lane.b32.xlu0 %v2709, 88
      %v2719 = vpop.permute.xlu0 %2718
      %2720 = vrot.lane.b32.xlu0 %v2710, 88
      %v2721 = vpop.permute.xlu0 %2720
      %2722 = vrot.lane.b32.xlu0 %v2711, 88
      %v2723 = vpop.permute.xlu0 %2722
      %v2724 = vsel %vm1876, %v2717, %v2719
      %v2725 = vsel %vm1876, %v2721, %v2723
      %v2728 = vadd.f32 %v2697, %v2724
      %v2729 = vadd.f32 %v2698, %v2725
      %v2730 = vld [vmem:[%s7 + $0x48] sm:$0x1]
      %v2731 = vlaneseq
      %v2732 = vshrl.u32 %v2731, 7
      %v2733 = vsub.s32 0, %v2732
      %v2734 = vrot.slane %v2730, %v2733
      %2736 = vrot.lane.b32.xlu0 %v2734, 48
      %v2737 = vpop.permute.xlu0 %2736
      %v2739 = vmul.f32 %v2564, %v2737
      %v2740 = vmul.f32 %v2573, %v2737
      %v2741 = vmul.f32 %v2565, %v2737
      %v2742 = vmul.f32 %v2574, %v2737
      %2747 = vrot.lane.b32.xlu0 %v2739, 80
      %v2748 = vpop.permute.xlu0 %2747
      %2749 = vrot.lane.b32.xlu0 %v2740, 80
      %v2750 = vpop.permute.xlu0 %2749
      %2751 = vrot.lane.b32.xlu0 %v2741, 80
      %v2752 = vpop.permute.xlu0 %2751
      %2753 = vrot.lane.b32.xlu0 %v2742, 80
      %v2754 = vpop.permute.xlu0 %2753
      %v2755 = vsel %vm680, %v2748, %v2750
      %v2756 = vsel %vm680, %v2752, %v2754
      %v2759 = vadd.f32 %v2728, %v2755
      %v2760 = vadd.f32 %v2729, %v2756
      %v2761 = vld [vmem:[%s7 + $0x49] sm:$0x1]
      %v2762 = vlaneseq
      %v2763 = vshrl.u32 %v2762, 7
      %v2764 = vsub.s32 0, %v2763
      %v2765 = vrot.slane %v2761, %v2764
      %2767 = vrot.lane.b32.xlu0 %v2765, 56
      %v2768 = vpop.permute.xlu0 %2767
      %v2770 = vmul.f32 %v2564, %v2768
      %v2771 = vmul.f32 %v2573, %v2768
      %v2772 = vmul.f32 %v2565, %v2768
      %v2773 = vmul.f32 %v2574, %v2768
      %2778 = vrot.lane.b32.xlu0 %v2770, 72
      %v2779 = vpop.permute.xlu0 %2778
      %2780 = vrot.lane.b32.xlu0 %v2771, 72
      %v2781 = vpop.permute.xlu0 %2780
      %2782 = vrot.lane.b32.xlu0 %v2772, 72
      %v2783 = vpop.permute.xlu0 %2782
      %2784 = vrot.lane.b32.xlu0 %v2773, 72
      %v2785 = vpop.permute.xlu0 %2784
      %v2786 = vsel %vm1947, %v2779, %v2781
      %v2787 = vsel %vm1947, %v2783, %v2785
      %v2790 = vadd.f32 %v2759, %v2786
      %v2791 = vadd.f32 %v2760, %v2787
      %v2792 = vld [vmem:[%s7 + $0x4a] sm:$0x1]
      %v2793 = vlaneseq
      %v2794 = vshrl.u32 %v2793, 7
      %v2795 = vsub.s32 0, %v2794
      %v2796 = vrot.slane %v2792, %v2795
      %2798 = vrot.lane.b32.xlu0 %v2796, 64
      %v2799 = vpop.permute.xlu0 %2798
      %v2801 = vmul.f32 %v2564, %v2799
      %v2802 = vmul.f32 %v2573, %v2799
      %v2803 = vmul.f32 %v2565, %v2799
      %v2804 = vmul.f32 %v2574, %v2799
      %2809 = vrot.lane.b32.xlu0 %v2801, 64
      %v2810 = vpop.permute.xlu0 %2809
      %2811 = vrot.lane.b32.xlu0 %v2802, 64
      %v2812 = vpop.permute.xlu0 %2811
      %2813 = vrot.lane.b32.xlu0 %v2803, 64
      %v2814 = vpop.permute.xlu0 %2813
      %2815 = vrot.lane.b32.xlu0 %v2804, 64
      %v2816 = vpop.permute.xlu0 %2815
      %v2817 = vsel %vm2325, %v2810, %v2812
      %v2818 = vsel %vm2325, %v2814, %v2816
      %v2821 = vadd.f32 %v2790, %v2817
      %v2822 = vadd.f32 %v2791, %v2818
      %v2823 = vld [vmem:[%s7 + $0x4b] sm:$0x1]
      %v2824 = vlaneseq
      %v2825 = vshrl.u32 %v2824, 7
      %v2826 = vsub.s32 0, %v2825
      %v2827 = vrot.slane %v2823, %v2826
      %2829 = vrot.lane.b32.xlu0 %v2827, 72
      %v2830 = vpop.permute.xlu0 %2829
      %v2832 = vmul.f32 %v2564, %v2830
      %v2833 = vmul.f32 %v2573, %v2830
      %v2834 = vmul.f32 %v2565, %v2830
      %v2835 = vmul.f32 %v2574, %v2830
      %2840 = vrot.lane.b32.xlu0 %v2832, 56
      %v2841 = vpop.permute.xlu0 %2840
      %2842 = vrot.lane.b32.xlu0 %v2833, 56
      %v2843 = vpop.permute.xlu0 %2842
      %2844 = vrot.lane.b32.xlu0 %v2834, 56
      %v2845 = vpop.permute.xlu0 %2844
      %2846 = vrot.lane.b32.xlu0 %v2835, 56
      %v2847 = vpop.permute.xlu0 %2846
      %v2848 = vsel %vm2361, %v2841, %v2843
      %v2849 = vsel %vm2361, %v2845, %v2847
      %v2852 = vadd.f32 %v2821, %v2848
      %v2853 = vadd.f32 %v2822, %v2849
      %v2854 = vld [vmem:[%s7 + $0x4c] sm:$0x1]
      %v2855 = vlaneseq
      %v2856 = vshrl.u32 %v2855, 7
      %v2857 = vsub.s32 0, %v2856
      %v2858 = vrot.slane %v2854, %v2857
      %2860 = vrot.lane.b32.xlu0 %v2858, 80
      %v2861 = vpop.permute.xlu0 %2860
      %v2863 = vmul.f32 %v2564, %v2861
      %v2864 = vmul.f32 %v2573, %v2861
      %v2865 = vmul.f32 %v2565, %v2861
      %v2866 = vmul.f32 %v2574, %v2861
      %2871 = vrot.lane.b32.xlu0 %v2863, 48
      %v2872 = vpop.permute.xlu0 %2871
      %2873 = vrot.lane.b32.xlu0 %v2864, 48
      %v2874 = vpop.permute.xlu0 %2873
      %2875 = vrot.lane.b32.xlu0 %v2865, 48
      %v2876 = vpop.permute.xlu0 %2875
      %2877 = vrot.lane.b32.xlu0 %v2866, 48
      %v2878 = vpop.permute.xlu0 %2877
      %v2879 = vsel %vm2397, %v2872, %v2874
      %v2880 = vsel %vm2397, %v2876, %v2878
      %v2883 = vadd.f32 %v2852, %v2879
      %v2884 = vadd.f32 %v2853, %v2880
      %v2885 = vld [vmem:[%s7 + $0x4d] sm:$0x1]
      %v2886 = vlaneseq
      %v2887 = vshrl.u32 %v2886, 7
      %v2888 = vsub.s32 0, %v2887
      %v2889 = vrot.slane %v2885, %v2888
      %2891 = vrot.lane.b32.xlu0 %v2889, 88
      %v2892 = vpop.permute.xlu0 %2891
      %v2894 = vmul.f32 %v2564, %v2892
      %v2895 = vmul.f32 %v2573, %v2892
      %v2896 = vmul.f32 %v2565, %v2892
      %v2897 = vmul.f32 %v2574, %v2892
      %2902 = vrot.lane.b32.xlu0 %v2894, 40
      %v2903 = vpop.permute.xlu0 %2902
      %2904 = vrot.lane.b32.xlu0 %v2895, 40
      %v2905 = vpop.permute.xlu0 %2904
      %2906 = vrot.lane.b32.xlu0 %v2896, 40
      %v2907 = vpop.permute.xlu0 %2906
      %2908 = vrot.lane.b32.xlu0 %v2897, 40
      %v2909 = vpop.permute.xlu0 %2908
      %vm2910 = vcmask 326656
      %v2911 = vsel %vm2910, %v2903, %v2905
      %v2912 = vsel %vm2910, %v2907, %v2909
      %v2915 = vadd.f32 %v2883, %v2911
      %v2916 = vadd.f32 %v2884, %v2912
      %v2917 = vld [vmem:[%s7 + $0x4e] sm:$0x1]
      %v2918 = vlaneseq
      %v2919 = vshrl.u32 %v2918, 7
      %v2920 = vsub.s32 0, %v2919
      %v2921 = vrot.slane %v2917, %v2920
      %2923 = vrot.lane.b32.xlu0 %v2921, 96
      %v2924 = vpop.permute.xlu0 %2923
      %v2926 = vmul.f32 %v2564, %v2924
      %v2927 = vmul.f32 %v2573, %v2924
      %v2928 = vmul.f32 %v2565, %v2924
      %v2929 = vmul.f32 %v2574, %v2924
      %2934 = vrot.lane.b32.xlu0 %v2926, 32
      %v2935 = vpop.permute.xlu0 %2934
      %2936 = vrot.lane.b32.xlu0 %v2927, 32
      %v2937 = vpop.permute.xlu0 %2936
      %2938 = vrot.lane.b32.xlu0 %v2928, 32
      %v2939 = vpop.permute.xlu0 %2938
      %2940 = vrot.lane.b32.xlu0 %v2929, 32
      %v2941 = vpop.permute.xlu0 %2940
      %v2942 = vsel %vm572, %v2935, %v2937
      %v2943 = vsel %vm572, %v2939, %v2941
      %v2946 = vadd.f32 %v2915, %v2942
      %v2947 = vadd.f32 %v2916, %v2943
      %v2948 = vld [vmem:[%s7 + $0x4f] sm:$0x1]
      %v2949 = vlaneseq
      %v2950 = vshrl.u32 %v2949, 7
      %v2951 = vsub.s32 0, %v2950
      %v2952 = vrot.slane %v2948, %v2951
      %2954 = vrot.lane.b32.xlu0 %v2952, 104
      %v2955 = vpop.permute.xlu0 %2954
      %v2957 = vmul.f32 %v2564, %v2955
      %v2958 = vmul.f32 %v2573, %v2955
      %v2959 = vmul.f32 %v2565, %v2955
      %v2960 = vmul.f32 %v2574, %v2955
      %2965 = vrot.lane.b32.xlu0 %v2957, 24
      %v2966 = vpop.permute.xlu0 %2965
      %2967 = vrot.lane.b32.xlu0 %v2958, 24
      %v2968 = vpop.permute.xlu0 %2967
      %2969 = vrot.lane.b32.xlu0 %v2959, 24
      %v2970 = vpop.permute.xlu0 %2969
      %2971 = vrot.lane.b32.xlu0 %v2960, 24
      %v2972 = vpop.permute.xlu0 %2971
      %vm2973 = vcmask 195584
      %v2974 = vsel %vm2973, %v2966, %v2968
      %v2975 = vsel %vm2973, %v2970, %v2972
      %v2978 = vadd.f32 %v2946, %v2974
      %v2979 = vadd.f32 %v2947, %v2975
      %v2980 = vld [vmem:[%s7 + $0x50] sm:$0x1]
      %v2981 = vlaneseq
      %v2982 = vshrl.u32 %v2981, 7
      %v2983 = vsub.s32 0, %v2982
      %v2984 = vrot.slane %v2980, %v2983
      %2986 = vrot.lane.b32.xlu0 %v2984, 112
      %v2987 = vpop.permute.xlu0 %2986
      %v2989 = vmul.f32 %v2564, %v2987
      %v2990 = vmul.f32 %v2573, %v2987
      %v2991 = vmul.f32 %v2565, %v2987
      %v2992 = vmul.f32 %v2574, %v2987
      %2997 = vrot.lane.b32.xlu0 %v2989, 16
      %v2998 = vpop.permute.xlu0 %2997
      %2999 = vrot.lane.b32.xlu0 %v2990, 16
      %v3000 = vpop.permute.xlu0 %2999
      %3001 = vrot.lane.b32.xlu0 %v2991, 16
      %v3002 = vpop.permute.xlu0 %3001
      %3003 = vrot.lane.b32.xlu0 %v2992, 16
      %v3004 = vpop.permute.xlu0 %3003
      %v3005 = vsel %vm670, %v2998, %v3000
      %v3006 = vsel %vm670, %v3002, %v3004
      %v3009 = vadd.f32 %v2978, %v3005
      %v3010 = vadd.f32 %v2979, %v3006
      %v3011 = vld [vmem:[%s7 + $0x51] sm:$0x1]
      %v3012 = vlaneseq
      %v3013 = vshrl.u32 %v3012, 7
      %v3014 = vsub.s32 0, %v3013
      %v3015 = vrot.slane %v3011, %v3014
      %3017 = vrot.lane.b32.xlu0 %v3015, 120
      %v3018 = vpop.permute.xlu0 %3017
      %v3020 = vmul.f32 %v2564, %v3018
      %v3021 = vmul.f32 %v2573, %v3018
      %v3022 = vmul.f32 %v2565, %v3018
      %v3023 = vmul.f32 %v2574, %v3018
      %3028 = vrot.lane.b32.xlu0 %v3020, 8
      %v3029 = vpop.permute.xlu0 %3028
      %3030 = vrot.lane.b32.xlu0 %v3021, 8
      %v3031 = vpop.permute.xlu0 %3030
      %3032 = vrot.lane.b32.xlu0 %v3022, 8
      %v3033 = vpop.permute.xlu0 %3032
      %3034 = vrot.lane.b32.xlu0 %v3023, 8
      %v3035 = vpop.permute.xlu0 %3034
      %vm3036 = vcmask 64512
      %v3037 = vsel %vm3036, %v3029, %v3031
      %v3038 = vsel %vm3036, %v3033, %v3035
      %v3041 = vadd.f32 %v3009, %v3037
      %v3042 = vadd.f32 %v3010, %v3038
      %v3043 = vld [vmem:[%s7 + $0x52] sm:$0x1]
      %v3044 = vlaneseq
      %v3045 = vshrl.u32 %v3044, 7
      %v3046 = vsub.s32 0, %v3045
      %v3047 = vrot.slane %v3043, %v3046
      %v3048 = vmul.f32 %v2573, %v3047
      %v3049 = vmul.f32 %v2574, %v3047
      %v3050 = vadd.f32 %v3041, %v3048
      %v3051 = vadd.f32 %v3042, %v3049
      %v3052 = vld [vmem:[#allocation3 + $0x10] sm:$0xff]
      %v3053 = vld [vmem:[#allocation3 + $0x28] sm:$0xff]
      %v3054 = vld [vmem:[%s7 + $0x53] sm:$0x1]
      %v3055 = vlaneseq
      %v3056 = vshrl.u32 %v3055, 7
      %v3057 = vsub.s32 0, %v3056
      %v3058 = vrot.slane %v3054, %v3057
      %3060 = vrot.lane.b32.xlu0 %v3058, 8
      %v3061 = vpop.permute.xlu0 %3060
      %v3063 = vmul.f32 %v2573, %v3061
      %v3064 = vmul.f32 %v3052, %v3061
      %v3065 = vmul.f32 %v2574, %v3061
      %v3066 = vmul.f32 %v3053, %v3061
      %3071 = vrot.lane.b32.xlu0 %v3063, 120
      %v3072 = vpop.permute.xlu0 %3071
      %3073 = vrot.lane.b32.xlu0 %v3064, 120
      %v3074 = vpop.permute.xlu0 %3073
      %3075 = vrot.lane.b32.xlu0 %v3065, 120
      %v3076 = vpop.permute.xlu0 %3075
      %3077 = vrot.lane.b32.xlu0 %v3066, 120
      %v3078 = vpop.permute.xlu0 %3077
      %v3079 = vsel %vm752, %v3072, %v3074
      %v3080 = vsel %vm752, %v3076, %v3078
      %v3083 = vadd.f32 %v3050, %v3079
      %v3084 = vadd.f32 %v3051, %v3080
      %v3085 = vld [vmem:[%s7 + $0x54] sm:$0x1]
      %v3086 = vlaneseq
      %v3087 = vshrl.u32 %v3086, 7
      %v3088 = vsub.s32 0, %v3087
      %v3089 = vrot.slane %v3085, %v3088
      %3091 = vrot.lane.b32.xlu0 %v3089, 16
      %v3092 = vpop.permute.xlu0 %3091
      %v3094 = vmul.f32 %v2573, %v3092
      %v3095 = vmul.f32 %v3052, %v3092
      %v3096 = vmul.f32 %v2574, %v3092
      %v3097 = vmul.f32 %v3053, %v3092
      %3102 = vrot.lane.b32.xlu0 %v3094, 112
      %v3103 = vpop.permute.xlu0 %3102
      %3104 = vrot.lane.b32.xlu0 %v3095, 112
      %v3105 = vpop.permute.xlu0 %3104
      %3106 = vrot.lane.b32.xlu0 %v3096, 112
      %v3107 = vpop.permute.xlu0 %3106
      %3108 = vrot.lane.b32.xlu0 %v3097, 112
      %v3109 = vpop.permute.xlu0 %3108
      %v3110 = vsel %vm784, %v3103, %v3105
      %v3111 = vsel %vm784, %v3107, %v3109
      %v3114 = vadd.f32 %v3083, %v3110
      %v3115 = vadd.f32 %v3084, %v3111
      %v3116 = vld [vmem:[%s7 + $0x55] sm:$0x1]
      %v3117 = vlaneseq
      %v3118 = vshrl.u32 %v3117, 7
      %v3119 = vsub.s32 0, %v3118
      %v3120 = vrot.slane %v3116, %v3119
      %3122 = vrot.lane.b32.xlu0 %v3120, 24
      %v3123 = vpop.permute.xlu0 %3122
      %v3125 = vmul.f32 %v2573, %v3123
      %v3126 = vmul.f32 %v3052, %v3123
      %v3127 = vmul.f32 %v2574, %v3123
      %v3128 = vmul.f32 %v3053, %v3123
      %3133 = vrot.lane.b32.xlu0 %v3125, 104
      %v3134 = vpop.permute.xlu0 %3133
      %3135 = vrot.lane.b32.xlu0 %v3126, 104
      %v3136 = vpop.permute.xlu0 %3135
      %3137 = vrot.lane.b32.xlu0 %v3127, 104
      %v3138 = vpop.permute.xlu0 %3137
      %3139 = vrot.lane.b32.xlu0 %v3128, 104
      %v3140 = vpop.permute.xlu0 %3139
      %v3141 = vsel %vm816, %v3134, %v3136
      %v3142 = vsel %vm816, %v3138, %v3140
      %v3145 = vadd.f32 %v3114, %v3141
      %v3146 = vadd.f32 %v3115, %v3142
      %v3147 = vld [vmem:[%s7 + $0x56] sm:$0x1]
      %v3148 = vlaneseq
      %v3149 = vshrl.u32 %v3148, 7
      %v3150 = vsub.s32 0, %v3149
      %v3151 = vrot.slane %v3147, %v3150
      %3153 = vrot.lane.b32.xlu0 %v3151, 32
      %v3154 = vpop.permute.xlu0 %3153
      %v3156 = vmul.f32 %v2573, %v3154
      %v3157 = vmul.f32 %v3052, %v3154
      %v3158 = vmul.f32 %v2574, %v3154
      %v3159 = vmul.f32 %v3053, %v3154
      %3164 = vrot.lane.b32.xlu0 %v3156, 96
      %v3165 = vpop.permute.xlu0 %3164
      %3166 = vrot.lane.b32.xlu0 %v3157, 96
      %v3167 = vpop.permute.xlu0 %3166
      %3168 = vrot.lane.b32.xlu0 %v3158, 96
      %v3169 = vpop.permute.xlu0 %3168
      %3170 = vrot.lane.b32.xlu0 %v3159, 96
      %v3171 = vpop.permute.xlu0 %3170
      %v3172 = vsel %vm848, %v3165, %v3167
      %v3173 = vsel %vm848, %v3169, %v3171
      %v3176 = vadd.f32 %v3145, %v3172
      %v3177 = vadd.f32 %v3146, %v3173
      %v3178 = vld [vmem:[%s7 + $0x57] sm:$0x1]
      %v3179 = vlaneseq
      %v3180 = vshrl.u32 %v3179, 7
      %v3181 = vsub.s32 0, %v3180
      %v3182 = vrot.slane %v3178, %v3181
      %v3183 = vadd.f32 %v3176, %v3182
      %v3184 = vadd.f32 %v3177, %v3182
      %3185 = vst [vmem:[#allocation4 + $0xa] sm:$0xff] %v3183
      %3186 = vst [vmem:[#allocation4 + $0x12] sm:$0xff] %v3184
      %v3187 = vld [vmem:[#allocation4] sm:$0xff]
      %v3188 = vld [vmem:[#allocation4 + $0x8] sm:$0xff]
      %v3189 = vld [vmem:[%s7 + $0x58] sm:$0x1]
      %v3190 = vlaneseq
      %v3191 = vshrl.u32 %v3190, 7
      %v3192 = vsub.s32 0, %v3191
      %v3193 = vrot.slane %v3189, %v3192
      %v3194 = vmul.f32 %v3187, %v3193
      %v3195 = vmul.f32 %v3188, %v3193
      %v3196 = vld [vmem:[#allocation4 + $0x1] sm:$0xff]
      %v3197 = vld [vmem:[#allocation4 + $0x9] sm:$0xff]
      %v3198 = vld [vmem:[%s7 + $0x59] sm:$0x1]
      %v3199 = vlaneseq
      %v3200 = vshrl.u32 %v3199, 7
      %v3201 = vsub.s32 0, %v3200
      %v3202 = vrot.slane %v3198, %v3201
      %v3203 = vmul.f32 %v3196, %v3202
      %v3204 = vmul.f32 %v3197, %v3202
      %v3205 = vadd.f32 %v3194, %v3203
      %v3206 = vadd.f32 %v3195, %v3204
      %v3207 = vld [vmem:[#allocation4 + $0x2] sm:$0xff]
      %v3208 = vld [vmem:[#allocation4 + $0xa] sm:$0xff]
      %v3209 = vld [vmem:[%s7 + $0x5a] sm:$0x1]
      %v3210 = vlaneseq
      %v3211 = vshrl.u32 %v3210, 7
      %v3212 = vsub.s32 0, %v3211
      %v3213 = vrot.slane %v3209, %v3212
      %v3214 = vmul.f32 %v3207, %v3213
      %v3215 = vmul.f32 %v3208, %v3213
      %v3216 = vadd.f32 %v3205, %v3214
      %v3217 = vadd.f32 %v3206, %v3215
      %v3218 = vld [vmem:[#allocation4 + $0x3] sm:$0xff]
      %v3219 = vld [vmem:[#allocation4 + $0xb] sm:$0xff]
      %v3220 = vld [vmem:[%s7 + $0x5b] sm:$0x1]
      %v3221 = vlaneseq
      %v3222 = vshrl.u32 %v3221, 7
      %v3223 = vsub.s32 0, %v3222
      %v3224 = vrot.slane %v3220, %v3223
      %v3225 = vmul.f32 %v3218, %v3224
      %v3226 = vmul.f32 %v3219, %v3224
      %v3227 = vadd.f32 %v3216, %v3225
      %v3228 = vadd.f32 %v3217, %v3226
      %v3229 = vld [vmem:[#allocation4 + $0x4] sm:$0xff]
      %v3230 = vld [vmem:[#allocation4 + $0xc] sm:$0xff]
      %v3231 = vld [vmem:[%s7 + $0x5c] sm:$0x1]
      %v3232 = vlaneseq
      %v3233 = vshrl.u32 %v3232, 7
      %v3234 = vsub.s32 0, %v3233
      %v3235 = vrot.slane %v3231, %v3234
      %v3236 = vmul.f32 %v3229, %v3235
      %v3237 = vmul.f32 %v3230, %v3235
      %v3238 = vadd.f32 %v3227, %v3236
      %v3239 = vadd.f32 %v3228, %v3237
      %v3240 = vld [vmem:[#allocation4 + $0x5] sm:$0xff]
      %v3241 = vld [vmem:[#allocation4 + $0xd] sm:$0xff]
      %v3242 = vld [vmem:[%s7 + $0x5d] sm:$0x1]
      %v3243 = vlaneseq
      %v3244 = vshrl.u32 %v3243, 7
      %v3245 = vsub.s32 0, %v3244
      %v3246 = vrot.slane %v3242, %v3245
      %v3247 = vmul.f32 %v3240, %v3246
      %v3248 = vmul.f32 %v3241, %v3246
      %v3249 = vadd.f32 %v3238, %v3247
      %v3250 = vadd.f32 %v3239, %v3248
      %v3251 = vld [vmem:[#allocation4 + $0x6] sm:$0xff]
      %v3252 = vld [vmem:[#allocation4 + $0xe] sm:$0xff]
      %v3253 = vld [vmem:[%s7 + $0x5e] sm:$0x1]
      %v3254 = vlaneseq
      %v3255 = vshrl.u32 %v3254, 7
      %v3256 = vsub.s32 0, %v3255
      %v3257 = vrot.slane %v3253, %v3256
      %v3258 = vmul.f32 %v3251, %v3257
      %v3259 = vmul.f32 %v3252, %v3257
      %v3260 = vadd.f32 %v3249, %v3258
      %v3261 = vadd.f32 %v3250, %v3259
      %v3262 = vld [vmem:[#allocation4 + $0x7] sm:$0xff]
      %v3263 = vld [vmem:[#allocation4 + $0xf] sm:$0xff]
      %v3264 = vld [vmem:[%s7 + $0x5f] sm:$0x1]
      %v3265 = vlaneseq
      %v3266 = vshrl.u32 %v3265, 7
      %v3267 = vsub.s32 0, %v3266
      %v3268 = vrot.slane %v3264, %v3267
      %v3269 = vmul.f32 %v3262, %v3268
      %v3270 = vmul.f32 %v3263, %v3268
      %v3271 = vadd.f32 %v3260, %v3269
      %v3272 = vadd.f32 %v3261, %v3270
      %v3273 = vld [vmem:[#allocation4 + $0x10] sm:$0xff]
      %v3274 = vld [vmem:[%s7 + $0x60] sm:$0x1]
      %v3275 = vlaneseq
      %v3276 = vshrl.u32 %v3275, 7
      %v3277 = vsub.s32 0, %v3276
      %v3278 = vrot.slane %v3274, %v3277
      %v3279 = vmul.f32 %v3188, %v3278
      %v3280 = vmul.f32 %v3273, %v3278
      %v3281 = vadd.f32 %v3271, %v3279
      %v3282 = vadd.f32 %v3272, %v3280
      %v3283 = vld [vmem:[#allocation4 + $0x11] sm:$0xff]
      %v3284 = vld [vmem:[%s7 + $0x61] sm:$0x1]
      %v3285 = vlaneseq
      %v3286 = vshrl.u32 %v3285, 7
      %v3287 = vsub.s32 0, %v3286
      %v3288 = vrot.slane %v3284, %v3287
      %v3289 = vmul.f32 %v3197, %v3288
      %v3290 = vmul.f32 %v3283, %v3288
      %v3291 = vadd.f32 %v3281, %v3289
      %v3292 = vadd.f32 %v3282, %v3290
      %v3293 = vld [vmem:[#allocation4 + $0x12] sm:$0xff]
      %v3294 = vld [vmem:[%s7 + $0x62] sm:$0x1]
      %v3295 = vlaneseq
      %v3296 = vshrl.u32 %v3295, 7
      %v3297 = vsub.s32 0, %v3296
      %v3298 = vrot.slane %v3294, %v3297
      %v3299 = vmul.f32 %v3208, %v3298
      %v3300 = vmul.f32 %v3293, %v3298
      %v3301 = vadd.f32 %v3291, %v3299
      %v3302 = vadd.f32 %v3292, %v3300
      %v3303 = vld [vmem:[#allocation4 + $0x13] sm:$0xff]
      %v3304 = vld [vmem:[%s7 + $0x63] sm:$0x1]
      %v3305 = vlaneseq
      %v3306 = vshrl.u32 %v3305, 7
      %v3307 = vsub.s32 0, %v3306
      %v3308 = vrot.slane %v3304, %v3307
      %v3309 = vmul.f32 %v3219, %v3308
      %v3310 = vmul.f32 %v3303, %v3308
      %v3311 = vadd.f32 %v3301, %v3309
      %v3312 = vadd.f32 %v3302, %v3310
      %v3313 = vld [vmem:[#allocation4 + $0x14] sm:$0xff]
      %v3314 = vld [vmem:[%s7 + $0x64] sm:$0x1]
      %v3315 = vlaneseq
      %v3316 = vshrl.u32 %v3315, 7
      %v3317 = vsub.s32 0, %v3316
      %v3318 = vrot.slane %v3314, %v3317
      %v3319 = vmul.f32 %v3230, %v3318
      %v3320 = vmul.f32 %v3313, %v3318
      %v3321 = vadd.f32 %v3311, %v3319
      %v3322 = vadd.f32 %v3312, %v3320
      %v3323 = vld [vmem:[#allocation4 + $0x15] sm:$0xff]
      %v3324 = vld [vmem:[%s7 + $0x65] sm:$0x1]
      %v3325 = vlaneseq
      %v3326 = vshrl.u32 %v3325, 7
      %v3327 = vsub.s32 0, %v3326
      %v3328 = vrot.slane %v3324, %v3327
      %v3329 = vmul.f32 %v3241, %v3328
      %v3330 = vmul.f32 %v3323, %v3328
      %v3331 = vadd.f32 %v3321, %v3329
      %v3332 = vadd.f32 %v3322, %v3330
      %v3333 = vld [vmem:[#allocation4 + $0x16] sm:$0xff]
      %v3334 = vld [vmem:[%s7 + $0x66] sm:$0x1]
      %v3335 = vlaneseq
      %v3336 = vshrl.u32 %v3335, 7
      %v3337 = vsub.s32 0, %v3336
      %v3338 = vrot.slane %v3334, %v3337
      %v3339 = vmul.f32 %v3252, %v3338
      %v3340 = vmul.f32 %v3333, %v3338
      %v3341 = vadd.f32 %v3331, %v3339
      %v3342 = vadd.f32 %v3332, %v3340
      %v3343 = vld [vmem:[#allocation4 + $0x17] sm:$0xff]
      %v3344 = vld [vmem:[%s7 + $0x67] sm:$0x1]
      %v3345 = vlaneseq
      %v3346 = vshrl.u32 %v3345, 7
      %v3347 = vsub.s32 0, %v3346
      %v3348 = vrot.slane %v3344, %v3347
      %v3349 = vmul.f32 %v3263, %v3348
      %v3350 = vmul.f32 %v3343, %v3348
      %v3351 = vadd.f32 %v3341, %v3349
      %v3352 = vadd.f32 %v3342, %v3350
      %v3353 = vld [vmem:[#allocation4 + $0x18] sm:$0xff]
      %v3354 = vld [vmem:[%s7 + $0x68] sm:$0x1]
      %v3355 = vlaneseq
      %v3356 = vshrl.u32 %v3355, 7
      %v3357 = vsub.s32 0, %v3356
      %v3358 = vrot.slane %v3354, %v3357
      %v3359 = vmul.f32 %v3273, %v3358
      %v3360 = vmul.f32 %v3353, %v3358
      %v3361 = vadd.f32 %v3351, %v3359
      %v3362 = vadd.f32 %v3352, %v3360
      %v3363 = vld [vmem:[#allocation4 + $0x19] sm:$0xff]
      %v3364 = vld [vmem:[%s7 + $0x69] sm:$0x1]
      %v3365 = vlaneseq
      %v3366 = vshrl.u32 %v3365, 7
      %v3367 = vsub.s32 0, %v3366
      %v3368 = vrot.slane %v3364, %v3367
      %v3369 = vmul.f32 %v3283, %v3368
      %v3370 = vmul.f32 %v3363, %v3368
      %v3371 = vadd.f32 %v3361, %v3369
      %v3372 = vadd.f32 %v3362, %v3370
      %v3373 = vld [vmem:[#allocation4 + $0x1a] sm:$0xff]
      %v3374 = vld [vmem:[%s7 + $0x6a] sm:$0x1]
      %v3375 = vlaneseq
      %v3376 = vshrl.u32 %v3375, 7
      %v3377 = vsub.s32 0, %v3376
      %v3378 = vrot.slane %v3374, %v3377
      %v3379 = vmul.f32 %v3293, %v3378
      %v3380 = vmul.f32 %v3373, %v3378
      %v3381 = vadd.f32 %v3371, %v3379
      %v3382 = vadd.f32 %v3372, %v3380
      %v3383 = vld [vmem:[#allocation4 + $0x1b] sm:$0xff]
      %v3384 = vld [vmem:[%s7 + $0x6b] sm:$0x1]
      %v3385 = vlaneseq
      %v3386 = vshrl.u32 %v3385, 7
      %v3387 = vsub.s32 0, %v3386
      %v3388 = vrot.slane %v3384, %v3387
      %v3389 = vmul.f32 %v3303, %v3388
      %v3390 = vmul.f32 %v3383, %v3388
      %v3391 = vadd.f32 %v3381, %v3389
      %v3392 = vadd.f32 %v3382, %v3390
      %v3393 = vld [vmem:[#allocation4 + $0x14] sm:$0xff]
      %v3394 = vld [vmem:[#allocation4 + $0x1c] sm:$0xff]
      %v3395 = vld [vmem:[%s7 + $0x6c] sm:$0x1]
      %v3396 = vlaneseq
      %v3397 = vshrl.u32 %v3396, 7
      %v3398 = vsub.s32 0, %v3397
      %v3399 = vrot.slane %v3395, %v3398
      %v3400 = vmul.f32 %v3393, %v3399
      %v3401 = vmul.f32 %v3394, %v3399
      %v3402 = vadd.f32 %v3391, %v3400
      %v3403 = vadd.f32 %v3392, %v3401
      %v3404 = vadd.f32 %v2562, %v3402
      %v3405 = vadd.f32 %v2563, %v3403
      %v3406 = vld [vmem:[%s7 + $0x6d] sm:$0x1]
      %v3407 = vlaneseq
      %v3408 = vshrl.u32 %v3407, 7
      %v3409 = vsub.s32 0, %v3408
      %v3410 = vrot.slane %v3406, %v3409
      %v3411 = vadd.f32 %v3404, %v3410
      %v3412 = vadd.f32 %v3405, %v3410
      %3413 = vmatprep.subr.mxu0 0.0
      %3414 = vmatpush1.msra.mxu0 %v306
      %3415 = vmatprep.subr.mxu0 0.0
      %3416 = vmatpush1.msra.mxu0 %v307
      %3417 = vmatprep.subr.mxu0 0.0
      %3418 = vmatpush1.msra.mxu0 %v308
      %3419 = vmatprep.subr.mxu0 0.0
      %3420 = vmatpush1.msra.mxu0 %v309
      %3421 = vmatprep.subr.mxu0 0.0
      %3422 = vmatpush1.msra.mxu0 %v310
      %3423 = vmatprep.subr.mxu0 0.0
      %3424 = vmatpush1.msra.mxu0 %v311
      %3425 = vmatprep.subr.mxu0 0.0
      %3426 = vmatpush1.msra.mxu0 %v312
      %3427 = vmatprep.subr.mxu0 0.0
      %3428 = vmatpush1.msra.mxu0 %v313
      %3429 = vmatprep.subr.mxu0 0.0
      %3430 = vmatpush1.msra.mxu0 %v314
      %3431 = vmatprep.subr.mxu0 0.0
      %3432 = vmatpush1.msra.mxu0 %v315
      %3433 = vmatprep.subr.mxu0 0.0
      %3434 = vmatpush1.msra.mxu0 %v316
      %3435 = vmatprep.subr.mxu0 0.0
      %3436 = vmatpush1.msra.mxu0 %v317
      %3437 = vmatprep.subr.mxu0 0.0
      %3438 = vmatpush1.msra.mxu0 %v318
      %3439 = vmatprep.subr.mxu0 0.0
      %3440 = vmatpush1.msra.mxu0 %v319
      %3441 = vmatprep.subr.mxu0 0.0
      %3442 = vmatpush1.msra.mxu0 %v320
      %3443 = vmatprep.subr.mxu0 0.0
      %3444 = vmatpush1.msra.mxu0 %v321
      %3445 = vmatprep.subr.mxu0 0.0
      %3446 = vmatpush1.msra.mxu0 0.0
      %3447 = vmatprep.subr.mxu0 0.0
      %3448 = vmatpush1.msra.mxu0 0.0
      %3449 = vmatprep.subr.mxu0 0.0
      %3450 = vmatpush1.msra.mxu0 0.0
      %3451 = vmatprep.subr.mxu0 0.0
      %3452 = vmatpush1.msra.mxu0 0.0
      %3453 = vmatprep.subr.mxu0 0.0
      %3454 = vmatpush1.msra.mxu0 0.0
      %3455 = vmatprep.subr.mxu0 0.0
      %3456 = vmatpush1.msra.mxu0 0.0
      %3457 = vmatprep.subr.mxu0 0.0
      %3458 = vmatpush1.msra.mxu0 0.0
      %3459 = vmatprep.subr.mxu0 0.0
      %3460 = vmatpush1.msra.mxu0 0.0
      %3461 = vmatprep.subr.mxu0 0.0
      %3462 = vmatpush1.msra.mxu0 0.0
      %3463 = vmatprep.subr.mxu0 0.0
      %3464 = vmatpush1.msra.mxu0 0.0
      %3465 = vmatprep.subr.mxu0 0.0
      %3466 = vmatpush1.msra.mxu0 0.0
      %3467 = vmatprep.subr.mxu0 0.0
      %3468 = vmatpush1.msra.mxu0 0.0
      %3469 = vmatprep.subr.mxu0 0.0
      %3470 = vmatpush1.msra.mxu0 0.0
      %3471 = vmatprep.subr.mxu0 0.0
      %3472 = vmatpush1.msra.mxu0 0.0
      %3473 = vmatprep.subr.mxu0 0.0
      %3474 = vmatpush1.msra.mxu0 0.0
      %3475 = vmatprep.subr.mxu0 0.0
      %3476 = vmatpush1.msra.mxu0 0.0
      %3477 = vmatprep.mubr.f32.mxu0 0.0
      %3478 = vmatmul.mubr.f32.gmra.mrb[0].mxu0 %v3411
      %v3479 = vpop.f32.mrb[0].mxu0
      %v3480 = vadd.f32 %v329, %v3479
      %v3481 = vpop.f32.mrb[0].mxu0
      %3482 = vmatprep.mubr.f32.mxu0 0.0
      %3483 = vmatmul.mubr.f32.gmra.mrb[0].mxu0 %v3412
      %v3484 = vpop.f32.mrb[0].mxu0
      %v3485 = vadd.f32 %v329, %v3484
      %v3486 = vpop.f32.mrb[0].mxu0
      %3487 = vdwg.mxu0
      %v3488 = vmul.f32 %v3480, %v660
      %v3489 = vmul.f32 %v3485, %v661
      %3490 = vmatprep.subr.mxu0 0.0
      %3491 = vmatpush1.msra.mxu0 %v306
      %3492 = vmatprep.subr.mxu0 0.0
      %3493 = vmatpush1.msra.mxu0 %v307
      %3494 = vmatprep.subr.mxu0 0.0
      %3495 = vmatpush1.msra.mxu0 %v308
      %3496 = vmatprep.subr.mxu0 0.0
      %3497 = vmatpush1.msra.mxu0 %v309
      %3498 = vmatprep.subr.mxu0 0.0
      %3499 = vmatpush1.msra.mxu0 %v310
      %3500 = vmatprep.subr.mxu0 0.0
      %3501 = vmatpush1.msra.mxu0 %v311
      %3502 = vmatprep.subr.mxu0 0.0
      %3503 = vmatpush1.msra.mxu0 %v312
      %3504 = vmatprep.subr.mxu0 0.0
      %3505 = vmatpush1.msra.mxu0 %v313
      %3506 = vmatprep.subr.mxu0 0.0
      %3507 = vmatpush1.msra.mxu0 %v314
      %3508 = vmatprep.subr.mxu0 0.0
      %3509 = vmatpush1.msra.mxu0 %v315
      %3510 = vmatprep.subr.mxu0 0.0
      %3511 = vmatpush1.msra.mxu0 %v316
      %3512 = vmatprep.subr.mxu0 0.0
      %3513 = vmatpush1.msra.mxu0 %v317
      %3514 = vmatprep.subr.mxu0 0.0
      %3515 = vmatpush1.msra.mxu0 %v318
      %3516 = vmatprep.subr.mxu0 0.0
      %3517 = vmatpush1.msra.mxu0 %v319
      %3518 = vmatprep.subr.mxu0 0.0
      %3519 = vmatpush1.msra.mxu0 %v320
      %3520 = vmatprep.subr.mxu0 0.0
      %3521 = vmatpush1.msra.mxu0 %v321
      %3522 = vmatprep.subr.mxu0 0.0
      %3523 = vmatpush1.msra.mxu0 0.0
      %3524 = vmatprep.subr.mxu0 0.0
      %3525 = vmatpush1.msra.mxu0 0.0
      %3526 = vmatprep.subr.mxu0 0.0
      %3527 = vmatpush1.msra.mxu0 0.0
      %3528 = vmatprep.subr.mxu0 0.0
      %3529 = vmatpush1.msra.mxu0 0.0
      %3530 = vmatprep.subr.mxu0 0.0
      %3531 = vmatpush1.msra.mxu0 0.0
      %3532 = vmatprep.subr.mxu0 0.0
      %3533 = vmatpush1.msra.mxu0 0.0
      %3534 = vmatprep.subr.mxu0 0.0
      %3535 = vmatpush1.msra.mxu0 0.0
      %3536 = vmatprep.subr.mxu0 0.0
      %3537 = vmatpush1.msra.mxu0 0.0
      %3538 = vmatprep.subr.mxu0 0.0
      %3539 = vmatpush1.msra.mxu0 0.0
      %3540 = vmatprep.subr.mxu0 0.0
      %3541 = vmatpush1.msra.mxu0 0.0
      %3542 = vmatprep.subr.mxu0 0.0
      %3543 = vmatpush1.msra.mxu0 0.0
      %3544 = vmatprep.subr.mxu0 0.0
      %3545 = vmatpush1.msra.mxu0 0.0
      %3546 = vmatprep.subr.mxu0 0.0
      %3547 = vmatpush1.msra.mxu0 0.0
      %3548 = vmatprep.subr.mxu0 0.0
      %3549 = vmatpush1.msra.mxu0 0.0
      %3550 = vmatprep.subr.mxu0 0.0
      %3551 = vmatpush1.msra.mxu0 0.0
      %3552 = vmatprep.subr.mxu0 0.0
      %3553 = vmatpush1.msra.mxu0 0.0
      %3554 = vmatprep.mubr.f32.mxu0 0.0
      %3555 = vmatmul.mubr.f32.gmra.mrb[0].mxu0 %v3488
      %v3556 = vpop.f32.mrb[0].mxu0
      %v3557 = vadd.f32 %v329, %v3556
      %v3558 = vpop.f32.mrb[0].mxu0
      %3559 = vmatprep.mubr.f32.mxu0 0.0
      %3560 = vmatmul.mubr.f32.gmra.mrb[0].mxu0 %v3489
      %v3561 = vpop.f32.mrb[0].mxu0
      %v3562 = vadd.f32 %v329, %v3561
      %v3563 = vpop.f32.mrb[0].mxu0
      %3564 = vdwg.mxu0
      %3565 = vst [vmem:[%s305] sm:$0xff] %v3557
      %3566 = vst [vmem:[%s305 + $0x8] sm:$0xff] %v3562
      %p3567 = scmp.lt.s32.totalorder %s19, 1
      %s3568 = scalar_select %p3567, %s19, 1
      %s3569 = smul.addr %s3568, 2
      %s3570 = smul.addr %s3569, 8
      %s3571 = scalar_lea.vmem %s8, %s3570
      // Predicated region
      $region53: #{cpca_forward.1} parent=51 // pred_check
        %p3572 = pneg %p210
      $region54: #{cpca_forward.1} parent=51 // pred_check_branch
        %3574 = sbr.rel (%p3572) target = $region56
      $region55: #{cpca_forward.1} parent=51 // pred_region
        _
      $region56: #{cpca_forward.1} parent=51 // pred_fallthru
        _
    $region52: #{cpca_forward.1} parent=5 // pred_fallthru
      _
    %p3575 = scmp.le.s32.totalorder 2, %s14
    // Predicated region
    $region57: #{cpca_forward.1} parent=5 // pred_check
      %p3576 = pneg %p3575
    $region58: #{cpca_forward.1} parent=5 // pred_check_branch
      %3578 = sbr.rel (%p3576) target = $region60
    $region59: #{cpca_forward.1} parent=5 // pred_region
      %s3579 = ssub.s32 %s14, 2
      // Predicated region
      $region61: #{cpca_forward.1} parent=59 // pred_check
        %p3580 = pneg %p216
      $region62: #{cpca_forward.1} parent=59 // pred_check_branch
        %3582 = sbr.rel (%p3580) target = $region64
      $region63: #{cpca_forward.1} parent=59 // pred_region
        %p3583 = scmp.lt.s32.totalorder %s20, 1
        %s3584 = scalar_select %p3583, %s20, 1
        %s3585 = smul.addr %s3584, 2
        %s3586 = smul.addr %s3585, 8
        %s3587 = scalar_lea.vmem %s8, %s3586
      $region64: #{cpca_forward.1} parent=59 // pred_fallthru
        _
    $region60: #{cpca_forward.1} parent=5 // pred_fallthru
      _
  $region6: #{cpca_forward.1} parent=0 // loop_footer
    %s18 = sadd.s32 1, %s14
  $region7: #{cpca_forward.1} parent=0 // loop_footer_branch
    %13 = sbr.rel target = $region3
  $region8: #{cpca_forward.1} parent=0 // loop_exit
    _

</llo_original>
